<compile_context>
chip_gen: v7x
topology: tpu7x:2x2x1
jax: 0.10.0
libtpu: 0.0.40
codegen_flags: <defaults>
</compile_context>

<pallas_src>
import functools

import jax
import jax.numpy as jnp
from jax.experimental import pallas as pl
from jax.experimental.pallas import tpu as pltpu


NUM_NEIGHBORS = 10            # EdgeConv hardcodes k=10 in the reference module
BF16 = jnp.bfloat16
VMEM_LIMIT_BYTES = 48 * 1024 * 1024   # headroomed for v7x (64 MiB), fine on v5e/v6e

BN_ROW_BLOCK = 1024
PDIST_COL_BLOCK = 512         # v7x-safe; can be raised to 1024-2048 on v5e/v6e
EC_ROW_BLOCK = 512            # EdgeConv point tile (K*tn rows per matmul)
MLP2_ROW_BLOCK = 2048


def _cparams(sem):
    return pltpu.CompilerParams(dimension_semantics=sem,
                                vmem_limit_bytes=VMEM_LIMIT_BYTES)


# ----------------------------------------------------------------------------
# Kernels
# ----------------------------------------------------------------------------
def bn_stats_kernel(x_ref, sum_ref, sumsq_ref, *, total_rows, needs_mask):
    """Pass 1 of BatchNorm1d: accumulate global sum / sum-of-squares per channel.

    Output blocks are grid-resident accumulators (same block index every step).
    Partial row tiles are masked so the statistics stay exact.
    """
    i = pl.program_id(0)

    @pl.when(i == 0)
    def _():
        sum_ref[...] = jnp.zeros_like(sum_ref)
        sumsq_ref[...] = jnp.zeros_like(sumsq_ref)

    x = x_ref[...].astype(jnp.float32)
    if needs_mask:
        tm = x.shape[0]
        row = i * tm + jax.lax.broadcasted_iota(jnp.int32, (tm, 1), 0)
        x = jnp.where(row < total_rows, x, 0.0)
    sum_ref[...] += jnp.sum(x, axis=0, keepdims=True)
    sumsq_ref[...] += jnp.sum(x * x, axis=0, keepdims=True)


def bn_linear_kernel(x_ref, scale_ref, shift_ref, w_ref, b_ref, o_ref):
    """Pass 2: x*scale+shift (folded BN normalize) + Linear(Cin,64) + ReLU."""
    xn = x_ref[...] * scale_ref[...] + shift_ref[...]
    h = jnp.dot(xn.astype(BF16), w_ref[...],
                preferred_element_type=jnp.float32) + b_ref[...]
    o_ref[...] = jnp.maximum(h, 0.0).astype(o_ref.dtype)


def pdist_kernel(xi_ref, xj_ref, sqi_ref, sqj_ref, o_ref):
    """Negative squared pairwise distances, one (N, tn) column tile per step.

    |x|^2 terms are precomputed outside the kernel; the inner product runs on
    bf16 MXU operands with f32 accumulation.
    """
    inner = jax.lax.dot_general(xi_ref[0], xj_ref[0], (((1,), (1,)), ((), ())),
                                preferred_element_type=jnp.float32)   # (N, tn)
    o_ref[0] = (2.0 * inner - sqi_ref[0] - sqj_ref[0]).astype(o_ref.dtype)


def edge_conv_kernel(x_ref, nbr_ref, w1a_ref, w1b_ref, b1_ref,
                     w2_ref, b2_ref, w3_ref, b3_ref, o_ref):
    """E stacked EdgeConvs sharing one input tile; one (batch, point-tile) cell.

    x:(1,tn,C) bf16, nbr:(1,K,tn,C) bf16; weights bf16 / biases f32 with a
    leading conv dim E.  MLP: relu([x_i, x_j-x_i]@W1+b1) -> relu(@W2+b2)
    -> relu(@W3+b3), max over K.  W1 = [W1a; W1b] so the edge-feature concat
    never materializes and the center projection is computed once per conv.
    The K neighbors are folded into the matmul row dim (one (K*tn,.) matmul
    per layer) and the E conv outputs are written as one lane-dense
    (tn, E*64) slab.
    """
    x = x_ref[0]                                               # (tn, C) bf16
    nbr = nbr_ref[0]                                           # (K, tn, C) bf16
    K, tn, C = nbr.shape
    E = w1a_ref.shape[0]

    # Shared across all E convs: neighbor-difference rows.
    diff = (nbr - x[None]).reshape(K * tn, C)                  # (K*tn, C) bf16

    outs = []
    for e in range(E):                                         # static unroll
        w1a, w1b, b1 = w1a_ref[e], w1b_ref[e], b1_ref[e]
        w2, b2 = w2_ref[e], b2_ref[e]
        w3, b3 = w3_ref[e], b3_ref[e]
        H1 = w1a.shape[1]
        H3 = w3.shape[1]

        # Center projection, shared across the K neighbors.
        cp = jnp.dot(x, w1a, preferred_element_type=jnp.float32) + b1   # (tn,H1)
        h = jnp.dot(diff, w1b, preferred_element_type=jnp.float32)      # (K*tn,H1)
        h = jnp.maximum(h.reshape(K, tn, H1) + cp[None], 0.0).reshape(K * tn, H1)
        h = jnp.maximum(jnp.dot(h.astype(BF16), w2,
                                preferred_element_type=jnp.float32) + b2, 0.0)
        h = jnp.maximum(jnp.dot(h.astype(BF16), w3,
                                preferred_element_type=jnp.float32) + b3, 0.0)
        outs.append(jnp.max(h.reshape(K, tn, H3), axis=0))               # (tn,H3)

    o_ref[0] = jnp.concatenate(outs, axis=-1).astype(o_ref.dtype)


def mlp2_kernel(f_ref, w1_ref, b1_ref, w2_ref, b2_ref, o_ref):
    """mlp2: relu(f @ W1 + b1) @ W2 + b2 -> relu, one lane-dense row tile.

    f is already the lane-dense (tm, 192) concat emitted by the EdgeConv stage,
    so the first layer is a single 192-deep contraction (full MXU depth).
    """
    h = jnp.dot(f_ref[...], w1_ref[...],
                preferred_element_type=jnp.float32) + b1_ref[...]
    h = jnp.maximum(h, 0.0)
    out = jnp.dot(h.astype(BF16), w2_ref[...],
                  preferred_element_type=jnp.float32) + b2_ref[...]
    o_ref[...] = jnp.maximum(out, 0.0).astype(o_ref.dtype)


# ----------------------------------------------------------------------------
# Pallas wrappers
# ----------------------------------------------------------------------------
def bn_pre_pallas(x, gamma, beta, w, b, *, row_block=BN_ROW_BLOCK):
    """Two-pass BatchNorm1d (training-mode, global batch stats) + Linear + ReLU."""
    M, Cin = x.shape
    H = w.shape[1]
    tm = M if M <= row_block else row_block
    grid = (pl.cdiv(M, tm),)
    needs_mask = (M % tm) != 0

    s, ss = pl.pallas_call(
        functools.partial(bn_stats_kernel, total_rows=M, needs_mask=needs_mask),
        out_shape=(jax.ShapeDtypeStruct((1, Cin), jnp.float32),
                   jax.ShapeDtypeStruct((1, Cin), jnp.float32)),
        grid=grid,
        in_specs=[pl.BlockSpec((tm, Cin), lambda i: (i, 0))],
        out_specs=(pl.BlockSpec((1, Cin), lambda i: (0, 0)),
                   pl.BlockSpec((1, Cin), lambda i: (0, 0))),
        compiler_params=_cparams(("arbitrary",)),
    )(x)

    # Tiny O(Cin) stats combine in plain JAX (exact, global over all B*N rows).
    mean = s / M
    var = jnp.maximum(ss / M - mean * mean, 0.0)       # biased var (BN training)
    scale = gamma * jax.lax.rsqrt(var + 1e-5)
    shift = beta - mean * scale

    return pl.pallas_call(
        bn_linear_kernel,
        out_shape=jax.ShapeDtypeStruct((M, H), BF16),
        grid=grid,
        in_specs=[pl.BlockSpec((tm, Cin), lambda i: (i, 0)),
                  pl.BlockSpec((1, Cin), lambda i: (0, 0)),
                  pl.BlockSpec((1, Cin), lambda i: (0, 0)),
                  pl.BlockSpec((Cin, H), lambda i: (0, 0)),
                  pl.BlockSpec((1, H), lambda i: (0, 0))],
        out_specs=pl.BlockSpec((tm, H), lambda i: (i, 0)),
        compiler_params=_cparams(("parallel",)),
    )(x, scale, shift, w, b)


def pdist_pallas(x, sq, *, col_block=PDIST_COL_BLOCK):
    B, N, C = x.shape
    tn = N if N <= col_block else col_block
    sq_row = sq[:, :, None]                                # (B, N, 1) f32
    sq_col = sq[:, None, :]                                # (B, 1, N) f32
    return pl.pallas_call(
        pdist_kernel,
        out_shape=jax.ShapeDtypeStruct((B, N, N), jnp.float32),
        grid=(B, pl.cdiv(N, tn)),
        in_specs=[pl.BlockSpec((1, N, C), lambda b, j: (b, 0, 0)),
                  pl.BlockSpec((1, tn, C), lambda b, j: (b, j, 0)),
                  pl.BlockSpec((1, N, 1), lambda b, j: (b, 0, 0)),
                  pl.BlockSpec((1, 1, tn), lambda b, j: (b, 0, j))],
        out_specs=pl.BlockSpec((1, N, tn), lambda b, j: (b, 0, j)),
        compiler_params=_cparams(("parallel", "parallel")),
    )(x, x, sq_row, sq_col)


def edge_convs_pallas(x, nbr, p, *, row_block=EC_ROW_BLOCK):
    """Run E stacked EdgeConvs that share the same input x / neighbor tensor.

    Emits a lane-dense (B, N, E*64) slab (per-conv outputs already concatenated
    along channels), so mlp2 needs no concat and gets a 192-wide input.
    """
    B, N, C = x.shape
    K = nbr.shape[1]
    E, _, H1 = p["w1a"].shape
    H3 = p["w3"].shape[2]
    tn = N if N <= row_block else row_block
    return pl.pallas_call(
        edge_conv_kernel,
        out_shape=jax.ShapeDtypeStruct((B, N, E * H3), BF16),
        grid=(B, pl.cdiv(N, tn)),
        in_specs=[
            pl.BlockSpec((1, tn, C), lambda b, j: (b, j, 0)),
            pl.BlockSpec((1, K, tn, C), lambda b, j: (b, 0, j, 0)),
            pl.BlockSpec(p["w1a"].shape, lambda b, j: (0, 0, 0)),
            pl.BlockSpec(p["w1b"].shape, lambda b, j: (0, 0, 0)),
            pl.BlockSpec(p["b1"].shape, lambda b, j: (0, 0, 0)),
            pl.BlockSpec(p["w2"].shape, lambda b, j: (0, 0, 0)),
            pl.BlockSpec(p["b2"].shape, lambda b, j: (0, 0, 0)),
            pl.BlockSpec(p["w3"].shape, lambda b, j: (0, 0, 0)),
            pl.BlockSpec(p["b3"].shape, lambda b, j: (0, 0, 0)),
        ],
        out_specs=pl.BlockSpec((1, tn, E * H3), lambda b, j: (b, j, 0)),
        compiler_params=_cparams(("parallel", "parallel")),
    )(x, nbr, p["w1a"], p["w1b"], p["b1"], p["w2"], p["b2"], p["w3"], p["b3"])


def mlp2_pallas(f, p, *, row_block=MLP2_ROW_BLOCK):
    M, H = f.shape
    D = p["w2"].shape[1]
    tm = M if M <= row_block else row_block
    return pl.pallas_call(
        mlp2_kernel,
        out_shape=jax.ShapeDtypeStruct((M, D), jnp.float32),
        grid=(pl.cdiv(M, tm),),
        in_specs=[pl.BlockSpec((tm, H), lambda i: (i, 0)),
                  pl.BlockSpec((H, D), lambda i: (0, 0)),
                  pl.BlockSpec((1, D), lambda i: (0, 0)),
                  pl.BlockSpec((D, D), lambda i: (0, 0)),
                  pl.BlockSpec((1, D), lambda i: (0, 0))],
        out_specs=pl.BlockSpec((tm, D), lambda i: (i, 0)),
        compiler_params=_cparams(("parallel",)),
    )(f, p["w1"], p["b1"], p["w2"], p["b2"])


# ----------------------------------------------------------------------------
# Model glue (parameter init + forward)
# ----------------------------------------------------------------------------
def init_params(key, input_size):
    keys = iter(jax.random.split(key, 64))

    def linear(cin, cout):
        bound = 1.0 / (cin ** 0.5)              # PyTorch nn.Linear default init
        w = jax.random.uniform(next(keys), (cin, cout), jnp.float32, -bound, bound)
        b = jax.random.uniform(next(keys), (1, cout), jnp.float32, -bound, bound)
        return w, b

    pre_w, pre_b = linear(input_size, 64)
    params = {
        "bn_gamma": jnp.ones((1, input_size), jnp.float32),
        "bn_beta": jnp.zeros((1, input_size), jnp.float32),
        "pre_w": pre_w.astype(BF16),            # bf16 MXU operands, f32 accumulate
        "pre_b": pre_b,
    }

    def edge_params():                          # mlp_layers=[128, 64, 64]
        w1, b1 = linear(2 * 64, 128)
        w2, b2 = linear(128, 64)
        w3, b3 = linear(64, 64)
        return dict(w1a=w1[:64], w1b=w1[64:], b1=b1, w2=w2, b2=b2, w3=w3, b3=b3)

    def stack(plist):
        out = {}
        for name in plist[0]:
            s = jnp.stack([q[name] for q in plist])
            out[name] = s.astype(BF16) if name.startswith("w") else s
        return out

    edges = [edge_params() for _ in range(4)]
    params["edge0"] = stack(edges[:1])          # leading conv dim = 1
    params["edge123"] = stack(edges[1:])        # leading conv dim = 3 (shared input)

    m1_w, m1_b = linear(192, 192)
    m2_w, m2_b = linear(192, 192)
    params["mlp2"] = dict(w1=m1_w.astype(BF16), b1=m1_b,
                          w2=m2_w.astype(BF16), b2=m2_b)
    return params


def knn_gather(x, k):
    """k-NN graph + neighbor gather on (B, N, C) bf16 features.

    Distances come from the Pallas pdist kernel (|x|^2 hoisted, bf16 operands,
    f32 accumulation / output to keep neighbor ranking faithful).
    # TODO(synk): top_k selection and the data-dependent gather stay in plain
    # JAX; an in-kernel gather (scalar-prefetched indices + gather from a
    # VMEM-resident x tile) would avoid materializing (B, K, N, C) in HBM and
    # fusing a running top-10 over column tiles would drop the (B,N,N) round
    # trip entirely.  The gathered tensor is already bf16, halving its DMA.
    """
    sq = jnp.sum(x.astype(jnp.float32) ** 2, axis=-1)    # (B, N), tiny
    neg_dist = pdist_pallas(x, sq)                       # (B, N, N) f32
    _, idx = jax.lax.top_k(neg_dist, k)                  # (B, N, K)
    idx = jnp.transpose(idx, (0, 2, 1))                  # (B, K, N)
    b_idx = jnp.arange(x.shape[0])[:, None, None]
    return x[b_idx, idx]                                 # (B, K, N, C) bf16


def dgcnn_segment_forward(feat, params):
    B, N, C = feat.shape
    # BatchNorm1d (training-mode global batch stats, two-pass) + Linear + ReLU.
    x = bn_pre_pallas(feat.reshape(B * N, C), params["bn_gamma"],
                      params["bn_beta"], params["pre_w"], params["pre_b"])
    x = x.reshape(B, N, 64)                              # bf16

    # EdgeConv 0 (its own kNN graph on the preprocessed features).
    x = edge_convs_pallas(x, knn_gather(x, NUM_NEIGHBORS), params["edge0"])

    # EdgeConvs 1..3 all consume the same x (matches the PyTorch reference):
    # one kNN graph, one kernel for all three convs, lane-dense 192-wide output.
    nbr = knn_gather(x, NUM_NEIGHBORS)
    f = edge_convs_pallas(x, nbr, params["edge123"])     # (B, N, 192) bf16

    # mlp2 (Linear 192->192 + ReLU, twice); concat already done by the
    # EdgeConv output layout, so the first layer is a single 192-deep matmul.
    out = mlp2_pallas(f.reshape(B * N, 192), params["mlp2"])
    return out.reshape(B, N, 192)


# ----------------------------------------------------------------------------
if __name__ == "__main__":
    key = jax.random.PRNGKey(0)
    pkey, xkey = jax.random.split(key)

    input_size = 32          # small-shape instance of DgcnnSegment(input_size=32)
    B, N = 2, 16             # batch of 2 point clouds, 16 points each (>= k=10)

    params = init_params(pkey, input_size)
    feat = jax.random.normal(xkey, (B, N, input_size), jnp.float32)

    out = jax.jit(dgcnn_segment_forward)(feat, params)
    out = jax.block_until_ready(out)

    assert out.shape == (B, N, 192), out.shape
    assert jnp.isfinite(out).all()
    print("KERNEL_OK")
</pallas_src>

<mosaic_0001>
module attributes {stable_mosaic.version = 11 : i64} {
  func.func @bn_linear_kernel(%arg0: i32, %arg1: memref<32x32xf32, #tpu.memory_space<vmem>>, %arg2: memref<1x32xf32, #tpu.memory_space<vmem>>, %arg3: memref<1x32xf32, #tpu.memory_space<vmem>>, %arg4: memref<32x64xbf16, #tpu.memory_space<vmem>>, %arg5: memref<1x64xf32, #tpu.memory_space<vmem>>, %arg6: memref<32x64xbf16, #tpu.memory_space<vmem>>) attributes {dimension_semantics = [#tpu.dimension_semantics<parallel>], iteration_bounds = array<i64: 1>, scalar_prefetch = 0 : i64, scratch_operands = 0 : i64, tpu.core_type = #tpu.core_type<tc>, window_params = [{transform_indices = @transform_0, window_bounds = array<i64: 32, 32>}, {pipeline_mode = #tpu.pipeline_mode<synchronous>, transform_indices = @transform_1, window_bounds = array<i64: 1, 32>}, {pipeline_mode = #tpu.pipeline_mode<synchronous>, transform_indices = @transform_2, window_bounds = array<i64: 1, 32>}, {pipeline_mode = #tpu.pipeline_mode<synchronous>, transform_indices = @transform_3, window_bounds = array<i64: 32, 64>}, {pipeline_mode = #tpu.pipeline_mode<synchronous>, transform_indices = @transform_4, window_bounds = array<i64: 1, 64>}, {transform_indices = @transform_5, window_bounds = array<i64: 32, 64>}]} {
    %c0 = arith.constant 0 : index
    %c0_0 = arith.constant 0 : index
    %0 = vector.load %arg1[%c0, %c0_0] : memref<32x32xf32, #tpu.memory_space<vmem>>, vector<32x32xf32>
    %c0_1 = arith.constant 0 : index
    %c0_2 = arith.constant 0 : index
    %1 = vector.load %arg2[%c0_1, %c0_2] : memref<1x32xf32, #tpu.memory_space<vmem>>, vector<1x32xf32>
    %2 = vector.broadcast %1 : vector<1x32xf32> to vector<32x32xf32>
    %3 = arith.mulf %0, %2 : vector<32x32xf32>
    %c0_3 = arith.constant 0 : index
    %c0_4 = arith.constant 0 : index
    %4 = vector.load %arg3[%c0_3, %c0_4] : memref<1x32xf32, #tpu.memory_space<vmem>>, vector<1x32xf32>
    %5 = vector.broadcast %4 : vector<1x32xf32> to vector<32x32xf32>
    %6 = arith.addf %3, %5 : vector<32x32xf32>
    %7 = arith.truncf %6 : vector<32x32xf32> to vector<32x32xbf16>
    %c0_5 = arith.constant 0 : index
    %c0_6 = arith.constant 0 : index
    %8 = vector.load %arg4[%c0_5, %c0_6] : memref<32x64xbf16, #tpu.memory_space<vmem>>, vector<32x64xbf16>
    %cst = arith.constant dense<0.000000e+00> : vector<32x64xf32>
    %9 = tpu.matmul %7, %8, %cst {dimension_numbers = #tpu.dot_dimension_numbers<[1], [0], [0], [1], [0, 0, 1, 1], [], []>} : vector<32x32xbf16>, vector<32x64xbf16>, vector<32x64xf32> -> vector<32x64xf32>
    %c0_7 = arith.constant 0 : index
    %c0_8 = arith.constant 0 : index
    %10 = vector.load %arg5[%c0_7, %c0_8] : memref<1x64xf32, #tpu.memory_space<vmem>>, vector<1x64xf32>
    %11 = vector.broadcast %10 : vector<1x64xf32> to vector<32x64xf32>
    %12 = arith.addf %9, %11 : vector<32x64xf32>
    %cst_9 = arith.constant 0.000000e+00 : f32
    %13 = vector.broadcast %cst_9 : f32 to vector<32x64xf32>
    %14 = arith.maximumf %12, %13 : vector<32x64xf32>
    %15 = arith.truncf %14 : vector<32x64xf32> to vector<32x64xbf16>
    %c0_10 = arith.constant 0 : index
    %c0_11 = arith.constant 0 : index
    %16 = vector.load %arg6[%c0_10, %c0_11] : memref<32x64xbf16, #tpu.memory_space<vmem>>, vector<32x64xbf16>
    tpu.vector_store %arg6[%c0_10, %c0_11], %15 {strides = array<i32>} : memref<32x64xbf16, #tpu.memory_space<vmem>>, vector<32x64xbf16>,
    return
  }
  func.func @transform_0(%arg0: i32) -> (i32, i32) {
    %c0_i32 = arith.constant 0 : i32
    %c0_i32_0 = arith.constant 0 : i32
    return %arg0, %c0_i32 : i32, i32
  }
  func.func @transform_1(%arg0: i32) -> (i32, i32) {
    %c0_i32 = arith.constant 0 : i32
    %c0_i32_0 = arith.constant 0 : i32
    %c0_i32_1 = arith.constant 0 : i32
    return %c0_i32, %c0_i32_0 : i32, i32
  }
  func.func @transform_2(%arg0: i32) -> (i32, i32) {
    %c0_i32 = arith.constant 0 : i32
    %c0_i32_0 = arith.constant 0 : i32
    %c0_i32_1 = arith.constant 0 : i32
    return %c0_i32, %c0_i32_0 : i32, i32
  }
  func.func @transform_3(%arg0: i32) -> (i32, i32) {
    %c0_i32 = arith.constant 0 : i32
    %c0_i32_0 = arith.constant 0 : i32
    %c0_i32_1 = arith.constant 0 : i32
    return %c0_i32, %c0_i32_0 : i32, i32
  }
  func.func @transform_4(%arg0: i32) -> (i32, i32) {
    %c0_i32 = arith.constant 0 : i32
    %c0_i32_0 = arith.constant 0 : i32
    %c0_i32_1 = arith.constant 0 : i32
    return %c0_i32, %c0_i32_0 : i32, i32
  }
  func.func @transform_5(%arg0: i32) -> (i32, i32) {
    %c0_i32 = arith.constant 0 : i32
    %c0_i32_0 = arith.constant 0 : i32
    return %arg0, %c0_i32 : i32, i32
  }
}

module attributes {stable_mosaic.version = 11 : i64} {
  func.func @bn_stats_kernel(%arg0: i32, %arg1: memref<32x32xf32, #tpu.memory_space<vmem>>, %arg2: memref<1x32xf32, #tpu.memory_space<vmem>>, %arg3: memref<1x32xf32, #tpu.memory_space<vmem>>) attributes {dimension_semantics = [#tpu.dimension_semantics<arbitrary>], iteration_bounds = array<i64: 1>, scalar_prefetch = 0 : i64, scratch_operands = 0 : i64, tpu.core_type = #tpu.core_type<tc>, window_params = [{transform_indices = @transform_0, window_bounds = array<i64: 32, 32>}, {pipeline_mode = #tpu.pipeline_mode<synchronous>, transform_indices = @transform_1, window_bounds = array<i64: 1, 32>}, {pipeline_mode = #tpu.pipeline_mode<synchronous>, transform_indices = @transform_2, window_bounds = array<i64: 1, 32>}]} {
    %c0_i32 = arith.constant 0 : i32
    %0 = arith.cmpi eq, %arg0, %c0_i32 : i32
    %1 = arith.extui %0 : i1 to i32
    %c0_i32_0 = arith.constant 0 : i32
    %2 = arith.cmpi ne, %1, %c0_i32_0 : i32
    scf.if %2 {
      %cst_11 = arith.constant 0.000000e+00 : f32
      %15 = vector.broadcast %cst_11 : f32 to vector<1x32xf32>
      %c0_12 = arith.constant 0 : index
      %c0_13 = arith.constant 0 : index
      %16 = vector.load %arg2[%c0_12, %c0_13] : memref<1x32xf32, #tpu.memory_space<vmem>>, vector<1x32xf32>
      tpu.vector_store %arg2[%c0_12, %c0_13], %15 {strides = array<i32>} : memref<1x32xf32, #tpu.memory_space<vmem>>, vector<1x32xf32>,
      %cst_14 = arith.constant 0.000000e+00 : f32
      %17 = vector.broadcast %cst_14 : f32 to vector<1x32xf32>
      %c0_15 = arith.constant 0 : index
      %c0_16 = arith.constant 0 : index
      %18 = vector.load %arg3[%c0_15, %c0_16] : memref<1x32xf32, #tpu.memory_space<vmem>>, vector<1x32xf32>
      tpu.vector_store %arg3[%c0_15, %c0_16], %17 {strides = array<i32>} : memref<1x32xf32, #tpu.memory_space<vmem>>, vector<1x32xf32>,
    } else {
    }
    %c0 = arith.constant 0 : index
    %c0_1 = arith.constant 0 : index
    %3 = vector.load %arg1[%c0, %c0_1] : memref<32x32xf32, #tpu.memory_space<vmem>>, vector<32x32xf32>
    %c0_2 = arith.constant 0 : index
    %c0_3 = arith.constant 0 : index
    %4 = vector.load %arg2[%c0_2, %c0_3] : memref<1x32xf32, #tpu.memory_space<vmem>>, vector<1x32xf32>
    %cst = arith.constant dense<0.000000e+00> : vector<32xf32>
    %5 = vector.multi_reduction <add>, %3, %cst [0] : vector<32x32xf32> to vector<32xf32>
    %6 = vector.shape_cast %5 : vector<32xf32> to vector<1x32xf32>
    %7 = arith.addf %4, %6 : vector<1x32xf32>
    %c0_4 = arith.constant 0 : index
    %c0_5 = arith.constant 0 : index
    %8 = vector.load %arg2[%c0_4, %c0_5] : memref<1x32xf32, #tpu.memory_space<vmem>>, vector<1x32xf32>
    tpu.vector_store %arg2[%c0_4, %c0_5], %7 {strides = array<i32>} : memref<1x32xf32, #tpu.memory_space<vmem>>, vector<1x32xf32>,
    %c0_6 = arith.constant 0 : index
    %c0_7 = arith.constant 0 : index
    %9 = vector.load %arg3[%c0_6, %c0_7] : memref<1x32xf32, #tpu.memory_space<vmem>>, vector<1x32xf32>
    %10 = arith.mulf %3, %3 : vector<32x32xf32>
    %cst_8 = arith.constant dense<0.000000e+00> : vector<32xf32>
    %11 = vector.multi_reduction <add>, %10, %cst_8 [0] : vector<32x32xf32> to vector<32xf32>
    %12 = vector.shape_cast %11 : vector<32xf32> to vector<1x32xf32>
    %13 = arith.addf %9, %12 : vector<1x32xf32>
    %c0_9 = arith.constant 0 : index
    %c0_10 = arith.constant 0 : index
    %14 = vector.load %arg3[%c0_9, %c0_10] : memref<1x32xf32, #tpu.memory_space<vmem>>, vector<1x32xf32>
    tpu.vector_store %arg3[%c0_9, %c0_10], %13 {strides = array<i32>} : memref<1x32xf32, #tpu.memory_space<vmem>>, vector<1x32xf32>,
    return
  }
  func.func @transform_0(%arg0: i32) -> (i32, i32) {
    %c0_i32 = arith.constant 0 : i32
    %c0_i32_0 = arith.constant 0 : i32
    return %arg0, %c0_i32 : i32, i32
  }
  func.func @transform_1(%arg0: i32) -> (i32, i32) {
    %c0_i32 = arith.constant 0 : i32
    %c0_i32_0 = arith.constant 0 : i32
    %c0_i32_1 = arith.constant 0 : i32
    return %c0_i32, %c0_i32_0 : i32, i32
  }
  func.func @transform_2(%arg0: i32) -> (i32, i32) {
    %c0_i32 = arith.constant 0 : i32
    %c0_i32_0 = arith.constant 0 : i32
    %c0_i32_1 = arith.constant 0 : i32
    return %c0_i32, %c0_i32_0 : i32, i32
  }
}

module attributes {stable_mosaic.version = 11 : i64} {
  func.func @pdist_kernel(%arg0: i32, %arg1: i32, %arg2: memref<1x16x64xbf16, #tpu.memory_space<vmem>>, %arg3: memref<1x16x64xbf16, #tpu.memory_space<vmem>>, %arg4: memref<1x16x1xf32, #tpu.memory_space<vmem>>, %arg5: memref<1x1x16xf32, #tpu.memory_space<vmem>>, %arg6: memref<1x16x16xf32, #tpu.memory_space<vmem>>) attributes {dimension_semantics = [#tpu.dimension_semantics<parallel>, #tpu.dimension_semantics<parallel>], iteration_bounds = array<i64: 2, 1>, scalar_prefetch = 0 : i64, scratch_operands = 0 : i64, tpu.core_type = #tpu.core_type<tc>, window_params = [{transform_indices = @transform_0, window_bounds = array<i64: 1, 16, 64>}, {transform_indices = @transform_1, window_bounds = array<i64: 1, 16, 64>}, {transform_indices = @transform_2, window_bounds = array<i64: 1, 16, 1>}, {transform_indices = @transform_3, window_bounds = array<i64: 1, 1, 16>}, {transform_indices = @transform_4, window_bounds = array<i64: 1, 16, 16>}]} {
    %c0 = arith.constant 0 : index
    %c0_0 = arith.constant 0 : index
    %c0_1 = arith.constant 0 : index
    %0 = vector.load %arg2[%c0, %c0_0, %c0_1] : memref<1x16x64xbf16, #tpu.memory_space<vmem>>, vector<1x16x64xbf16>
    %1 = vector.shape_cast %0 : vector<1x16x64xbf16> to vector<16x64xbf16>
    %c0_2 = arith.constant 0 : index
    %c0_3 = arith.constant 0 : index
    %c0_4 = arith.constant 0 : index
    %2 = vector.load %arg3[%c0_2, %c0_3, %c0_4] : memref<1x16x64xbf16, #tpu.memory_space<vmem>>, vector<1x16x64xbf16>
    %3 = vector.shape_cast %2 : vector<1x16x64xbf16> to vector<16x64xbf16>
    %cst = arith.constant dense<0.000000e+00> : vector<16x16xf32>
    %4 = tpu.matmul %1, %3, %cst {dimension_numbers = #tpu.dot_dimension_numbers<[1], [1], [0], [0], [0, 0, 1, 0], [], []>} : vector<16x64xbf16>, vector<16x64xbf16>, vector<16x16xf32> -> vector<16x16xf32>
    %cst_5 = arith.constant 2.000000e+00 : f32
    %5 = vector.broadcast %cst_5 : f32 to vector<16x16xf32>
    %6 = arith.mulf %5, %4 : vector<16x16xf32>
    %c0_6 = arith.constant 0 : index
    %c0_7 = arith.constant 0 : index
    %c0_8 = arith.constant 0 : index
    %7 = vector.load %arg4[%c0_6, %c0_7, %c0_8] : memref<1x16x1xf32, #tpu.memory_space<vmem>>, vector<1x16x1xf32>
    %8 = vector.shape_cast %7 : vector<1x16x1xf32> to vector<16x1xf32>
    %9 = vector.broadcast %8 : vector<16x1xf32> to vector<16x16xf32>
    %10 = arith.subf %6, %9 : vector<16x16xf32>
    %c0_9 = arith.constant 0 : index
    %c0_10 = arith.constant 0 : index
    %c0_11 = arith.constant 0 : index
    %11 = vector.load %arg5[%c0_9, %c0_10, %c0_11] : memref<1x1x16xf32, #tpu.memory_space<vmem>>, vector<1x1x16xf32>
    %12 = vector.shape_cast %11 : vector<1x1x16xf32> to vector<1x16xf32>
    %13 = vector.broadcast %12 : vector<1x16xf32> to vector<16x16xf32>
    %14 = arith.subf %10, %13 : vector<16x16xf32>
    %c0_12 = arith.constant 0 : index
    %c0_13 = arith.constant 0 : index
    %c0_14 = arith.constant 0 : index
    %15 = vector.load %arg6[%c0_12, %c0_13, %c0_14] : memref<1x16x16xf32, #tpu.memory_space<vmem>>, vector<1x16x16xf32>
    %16 = vector.shape_cast %15 : vector<1x16x16xf32> to vector<16x16xf32>
    %17 = vector.shape_cast %14 : vector<16x16xf32> to vector<1x16x16xf32>
    tpu.vector_store %arg6[%c0_12, %c0_13, %c0_14], %17 {strides = array<i32>} : memref<1x16x16xf32, #tpu.memory_space<vmem>>, vector<1x16x16xf32>,
    return
  }
  func.func @transform_0(%arg0: i32, %arg1: i32) -> (i32, i32, i32) {
    %c0_i32 = arith.constant 0 : i32
    %c0_i32_0 = arith.constant 0 : i32
    %c0_i32_1 = arith.constant 0 : i32
    return %arg0, %c0_i32, %c0_i32_0 : i32, i32, i32
  }
  func.func @transform_1(%arg0: i32, %arg1: i32) -> (i32, i32, i32) {
    %c0_i32 = arith.constant 0 : i32
    %c0_i32_0 = arith.constant 0 : i32
    return %arg0, %arg1, %c0_i32 : i32, i32, i32
  }
  func.func @transform_2(%arg0: i32, %arg1: i32) -> (i32, i32, i32) {
    %c0_i32 = arith.constant 0 : i32
    %c0_i32_0 = arith.constant 0 : i32
    %c0_i32_1 = arith.constant 0 : i32
    return %arg0, %c0_i32, %c0_i32_0 : i32, i32, i32
  }
  func.func @transform_3(%arg0: i32, %arg1: i32) -> (i32, i32, i32) {
    %c0_i32 = arith.constant 0 : i32
    %c0_i32_0 = arith.constant 0 : i32
    return %arg0, %c0_i32, %arg1 : i32, i32, i32
  }
  func.func @transform_4(%arg0: i32, %arg1: i32) -> (i32, i32, i32) {
    %c0_i32 = arith.constant 0 : i32
    %c0_i32_0 = arith.constant 0 : i32
    return %arg0, %c0_i32, %arg1 : i32, i32, i32
  }
}

module attributes {stable_mosaic.version = 11 : i64} {
  func.func @edge_conv_kernel(%arg0: i32, %arg1: i32, %arg2: memref<1x16x64xbf16, #tpu.memory_space<vmem>>, %arg3: memref<1x10x16x64xbf16, #tpu.memory_space<vmem>>, %arg4: memref<1x64x128xbf16, #tpu.memory_space<vmem>>, %arg5: memref<1x64x128xbf16, #tpu.memory_space<vmem>>, %arg6: memref<1x1x128xf32, #tpu.memory_space<vmem>>, %arg7: memref<1x128x64xbf16, #tpu.memory_space<vmem>>, %arg8: memref<1x1x64xf32, #tpu.memory_space<vmem>>, %arg9: memref<1x64x64xbf16, #tpu.memory_space<vmem>>, %arg10: memref<1x1x64xf32, #tpu.memory_space<vmem>>, %arg11: memref<1x16x64xbf16, #tpu.memory_space<vmem>>) attributes {dimension_semantics = [#tpu.dimension_semantics<parallel>, #tpu.dimension_semantics<parallel>], iteration_bounds = array<i64: 2, 1>, scalar_prefetch = 0 : i64, scratch_operands = 0 : i64, tpu.core_type = #tpu.core_type<tc>, window_params = [{transform_indices = @transform_0, window_bounds = array<i64: 1, 16, 64>}, {transform_indices = @transform_1, window_bounds = array<i64: 1, 10, 16, 64>}, {pipeline_mode = #tpu.pipeline_mode<synchronous>, transform_indices = @transform_2, window_bounds = array<i64: 1, 64, 128>}, {pipeline_mode = #tpu.pipeline_mode<synchronous>, transform_indices = @transform_3, window_bounds = array<i64: 1, 64, 128>}, {pipeline_mode = #tpu.pipeline_mode<synchronous>, transform_indices = @transform_4, window_bounds = array<i64: 1, 1, 128>}, {pipeline_mode = #tpu.pipeline_mode<synchronous>, transform_indices = @transform_5, window_bounds = array<i64: 1, 128, 64>}, {pipeline_mode = #tpu.pipeline_mode<synchronous>, transform_indices = @transform_6, window_bounds = array<i64: 1, 1, 64>}, {pipeline_mode = #tpu.pipeline_mode<synchronous>, transform_indices = @transform_7, window_bounds = array<i64: 1, 64, 64>}, {pipeline_mode = #tpu.pipeline_mode<synchronous>, transform_indices = @transform_8, window_bounds = array<i64: 1, 1, 64>}, {transform_indices = @transform_9, window_bounds = array<i64: 1, 16, 64>}]} {
    %c0 = arith.constant 0 : index
    %c0_0 = arith.constant 0 : index
    %c0_1 = arith.constant 0 : index
    %0 = vector.load %arg2[%c0, %c0_0, %c0_1] : memref<1x16x64xbf16, #tpu.memory_space<vmem>>, vector<1x16x64xbf16>
    %1 = vector.shape_cast %0 : vector<1x16x64xbf16> to vector<16x64xbf16>
    %c0_2 = arith.constant 0 : index
    %c0_3 = arith.constant 0 : index
    %c0_4 = arith.constant 0 : index
    %c0_5 = arith.constant 0 : index
    %2 = vector.load %arg3[%c0_2, %c0_3, %c0_4, %c0_5] : memref<1x10x16x64xbf16, #tpu.memory_space<vmem>>, vector<1x10x16x64xbf16>
    %3 = vector.shape_cast %2 : vector<1x10x16x64xbf16> to vector<10x16x64xbf16>
    %4 = vector.shape_cast %1 : vector<16x64xbf16> to vector<1x16x64xbf16>
    %5 = vector.broadcast %4 : vector<1x16x64xbf16> to vector<10x16x64xbf16>
    %6 = arith.subf %3, %5 : vector<10x16x64xbf16>
    %7 = vector.shape_cast %6 : vector<10x16x64xbf16> to vector<160x64xbf16>
    %c0_6 = arith.constant 0 : index
    %c0_7 = arith.constant 0 : index
    %c0_8 = arith.constant 0 : index
    %8 = vector.load %arg4[%c0_6, %c0_7, %c0_8] : memref<1x64x128xbf16, #tpu.memory_space<vmem>>, vector<1x64x128xbf16>
    %9 = vector.shape_cast %8 : vector<1x64x128xbf16> to vector<64x128xbf16>
    %c0_9 = arith.constant 0 : index
    %c0_10 = arith.constant 0 : index
    %c0_11 = arith.constant 0 : index
    %10 = vector.load %arg5[%c0_9, %c0_10, %c0_11] : memref<1x64x128xbf16, #tpu.memory_space<vmem>>, vector<1x64x128xbf16>
    %11 = vector.shape_cast %10 : vector<1x64x128xbf16> to vector<64x128xbf16>
    %c0_12 = arith.constant 0 : index
    %c0_13 = arith.constant 0 : index
    %c0_14 = arith.constant 0 : index
    %12 = vector.load %arg6[%c0_12, %c0_13, %c0_14] : memref<1x1x128xf32, #tpu.memory_space<vmem>>, vector<1x1x128xf32>
    %13 = vector.shape_cast %12 : vector<1x1x128xf32> to vector<1x128xf32>
    %c0_15 = arith.constant 0 : index
    %c0_16 = arith.constant 0 : index
    %c0_17 = arith.constant 0 : index
    %14 = vector.load %arg7[%c0_15, %c0_16, %c0_17] : memref<1x128x64xbf16, #tpu.memory_space<vmem>>, vector<1x128x64xbf16>
    %15 = vector.shape_cast %14 : vector<1x128x64xbf16> to vector<128x64xbf16>
    %c0_18 = arith.constant 0 : index
    %c0_19 = arith.constant 0 : index
    %c0_20 = arith.constant 0 : index
    %16 = vector.load %arg8[%c0_18, %c0_19, %c0_20] : memref<1x1x64xf32, #tpu.memory_space<vmem>>, vector<1x1x64xf32>
    %17 = vector.shape_cast %16 : vector<1x1x64xf32> to vector<1x64xf32>
    %c0_21 = arith.constant 0 : index
    %c0_22 = arith.constant 0 : index
    %c0_23 = arith.constant 0 : index
    %18 = vector.load %arg9[%c0_21, %c0_22, %c0_23] : memref<1x64x64xbf16, #tpu.memory_space<vmem>>, vector<1x64x64xbf16>
    %19 = vector.shape_cast %18 : vector<1x64x64xbf16> to vector<64x64xbf16>
    %c0_24 = arith.constant 0 : index
    %c0_25 = arith.constant 0 : index
    %c0_26 = arith.constant 0 : index
    %20 = vector.load %arg10[%c0_24, %c0_25, %c0_26] : memref<1x1x64xf32, #tpu.memory_space<vmem>>, vector<1x1x64xf32>
    %21 = vector.shape_cast %20 : vector<1x1x64xf32> to vector<1x64xf32>
    %cst = arith.constant dense<0.000000e+00> : vector<16x128xf32>
    %22 = tpu.matmul %1, %9, %cst {dimension_numbers = #tpu.dot_dimension_numbers<[1], [0], [0], [1], [0, 0, 1, 1], [], []>} : vector<16x64xbf16>, vector<64x128xbf16>, vector<16x128xf32> -> vector<16x128xf32>
    %23 = vector.broadcast %13 : vector<1x128xf32> to vector<16x128xf32>
    %24 = arith.addf %22, %23 : vector<16x128xf32>
    %cst_27 = arith.constant dense<0.000000e+00> : vector<160x128xf32>
    %25 = tpu.matmul %7, %11, %cst_27 {dimension_numbers = #tpu.dot_dimension_numbers<[1], [0], [0], [1], [0, 0, 1, 1], [], []>} : vector<160x64xbf16>, vector<64x128xbf16>, vector<160x128xf32> -> vector<160x128xf32>
    %26 = vector.shape_cast %25 : vector<160x128xf32> to vector<10x16x128xf32>
    %27 = vector.shape_cast %24 : vector<16x128xf32> to vector<1x16x128xf32>
    %28 = vector.broadcast %27 : vector<1x16x128xf32> to vector<10x16x128xf32>
    %29 = arith.addf %26, %28 : vector<10x16x128xf32>
    %cst_28 = arith.constant 0.000000e+00 : f32
    %30 = vector.broadcast %cst_28 : f32 to vector<10x16x128xf32>
    %31 = arith.maximumf %29, %30 : vector<10x16x128xf32>
    %32 = vector.shape_cast %31 : vector<10x16x128xf32> to vector<160x128xf32>
    %33 = arith.truncf %32 : vector<160x128xf32> to vector<160x128xbf16>
    %cst_29 = arith.constant dense<0.000000e+00> : vector<160x64xf32>
    %34 = tpu.matmul %33, %15, %cst_29 {dimension_numbers = #tpu.dot_dimension_numbers<[1], [0], [0], [1], [0, 0, 1, 1], [], []>} : vector<160x128xbf16>, vector<128x64xbf16>, vector<160x64xf32> -> vector<160x64xf32>
    %35 = vector.broadcast %17 : vector<1x64xf32> to vector<160x64xf32>
    %36 = arith.addf %34, %35 : vector<160x64xf32>
    %cst_30 = arith.constant 0.000000e+00 : f32
    %37 = vector.broadcast %cst_30 : f32 to vector<160x64xf32>
    %38 = arith.maximumf %36, %37 : vector<160x64xf32>
    %39 = arith.truncf %38 : vector<160x64xf32> to vector<160x64xbf16>
    %cst_31 = arith.constant dense<0.000000e+00> : vector<160x64xf32>
    %40 = tpu.matmul %39, %19, %cst_31 {dimension_numbers = #tpu.dot_dimension_numbers<[1], [0], [0], [1], [0, 0, 1, 1], [], []>} : vector<160x64xbf16>, vector<64x64xbf16>, vector<160x64xf32> -> vector<160x64xf32>
    %41 = vector.broadcast %21 : vector<1x64xf32> to vector<160x64xf32>
    %42 = arith.addf %40, %41 : vector<160x64xf32>
    %cst_32 = arith.constant 0.000000e+00 : f32
    %43 = vector.broadcast %cst_32 : f32 to vector<160x64xf32>
    %44 = arith.maximumf %42, %43 : vector<160x64xf32>
    %45 = vector.shape_cast %44 : vector<160x64xf32> to vector<10x16x64xf32>
    %cst_33 = arith.constant dense<0xFF800000> : vector<16x64xf32>
    %46 = vector.multi_reduction <maximumf>, %45, %cst_33 [0] : vector<10x16x64xf32> to vector<16x64xf32>
    %47 = arith.truncf %46 : vector<16x64xf32> to vector<16x64xbf16>
    %c0_34 = arith.constant 0 : index
    %c0_35 = arith.constant 0 : index
    %c0_36 = arith.constant 0 : index
    %48 = vector.load %arg11[%c0_34, %c0_35, %c0_36] : memref<1x16x64xbf16, #tpu.memory_space<vmem>>, vector<1x16x64xbf16>
    %49 = vector.shape_cast %48 : vector<1x16x64xbf16> to vector<16x64xbf16>
    %50 = vector.shape_cast %47 : vector<16x64xbf16> to vector<1x16x64xbf16>
    tpu.vector_store %arg11[%c0_34, %c0_35, %c0_36], %50 {strides = array<i32>} : memref<1x16x64xbf16, #tpu.memory_space<vmem>>, vector<1x16x64xbf16>,
    return
  }
  func.func @transform_0(%arg0: i32, %arg1: i32) -> (i32, i32, i32) {
    %c0_i32 = arith.constant 0 : i32
    %c0_i32_0 = arith.constant 0 : i32
    return %arg0, %arg1, %c0_i32 : i32, i32, i32
  }
  func.func @transform_1(%arg0: i32, %arg1: i32) -> (i32, i32, i32, i32) {
    %c0_i32 = arith.constant 0 : i32
    %c0_i32_0 = arith.constant 0 : i32
    %c0_i32_1 = arith.constant 0 : i32
    return %arg0, %c0_i32, %arg1, %c0_i32_0 : i32, i32, i32, i32
  }
  func.func @transform_2(%arg0: i32, %arg1: i32) -> (i32, i32, i32) {
    %c0_i32 = arith.constant 0 : i32
    %c0_i32_0 = arith.constant 0 : i32
    %c0_i32_1 = arith.constant 0 : i32
    %c0_i32_2 = arith.constant 0 : i32
    return %c0_i32, %c0_i32_0, %c0_i32_1 : i32, i32, i32
  }
  func.func @transform_3(%arg0: i32, %arg1: i32) -> (i32, i32, i32) {
    %c0_i32 = arith.constant 0 : i32
    %c0_i32_0 = arith.constant 0 : i32
    %c0_i32_1 = arith.constant 0 : i32
    %c0_i32_2 = arith.constant 0 : i32
    return %c0_i32, %c0_i32_0, %c0_i32_1 : i32, i32, i32
  }
  func.func @transform_4(%arg0: i32, %arg1: i32) -> (i32, i32, i32) {
    %c0_i32 = arith.constant 0 : i32
    %c0_i32_0 = arith.constant 0 : i32
    %c0_i32_1 = arith.constant 0 : i32
    %c0_i32_2 = arith.constant 0 : i32
    return %c0_i32, %c0_i32_0, %c0_i32_1 : i32, i32, i32
  }
  func.func @transform_5(%arg0: i32, %arg1: i32) -> (i32, i32, i32) {
    %c0_i32 = arith.constant 0 : i32
    %c0_i32_0 = arith.constant 0 : i32
    %c0_i32_1 = arith.constant 0 : i32
    %c0_i32_2 = arith.constant 0 : i32
    return %c0_i32, %c0_i32_0, %c0_i32_1 : i32, i32, i32
  }
  func.func @transform_6(%arg0: i32, %arg1: i32) -> (i32, i32, i32) {
    %c0_i32 = arith.constant 0 : i32
    %c0_i32_0 = arith.constant 0 : i32
    %c0_i32_1 = arith.constant 0 : i32
    %c0_i32_2 = arith.constant 0 : i32
    return %c0_i32, %c0_i32_0, %c0_i32_1 : i32, i32, i32
  }
  func.func @transform_7(%arg0: i32, %arg1: i32) -> (i32, i32, i32) {
    %c0_i32 = arith.constant 0 : i32
    %c0_i32_0 = arith.constant 0 : i32
    %c0_i32_1 = arith.constant 0 : i32
    %c0_i32_2 = arith.constant 0 : i32
    return %c0_i32, %c0_i32_0, %c0_i32_1 : i32, i32, i32
  }
  func.func @transform_8(%arg0: i32, %arg1: i32) -> (i32, i32, i32) {
    %c0_i32 = arith.constant 0 : i32
    %c0_i32_0 = arith.constant 0 : i32
    %c0_i32_1 = arith.constant 0 : i32
    %c0_i32_2 = arith.constant 0 : i32
    return %c0_i32, %c0_i32_0, %c0_i32_1 : i32, i32, i32
  }
  func.func @transform_9(%arg0: i32, %arg1: i32) -> (i32, i32, i32) {
    %c0_i32 = arith.constant 0 : i32
    %c0_i32_0 = arith.constant 0 : i32
    return %arg0, %arg1, %c0_i32 : i32, i32, i32
  }
}

module attributes {stable_mosaic.version = 11 : i64} {
  func.func @edge_conv_kernel(%arg0: i32, %arg1: i32, %arg2: memref<1x16x64xbf16, #tpu.memory_space<vmem>>, %arg3: memref<1x10x16x64xbf16, #tpu.memory_space<vmem>>, %arg4: memref<3x64x128xbf16, #tpu.memory_space<vmem>>, %arg5: memref<3x64x128xbf16, #tpu.memory_space<vmem>>, %arg6: memref<3x1x128xf32, #tpu.memory_space<vmem>>, %arg7: memref<3x128x64xbf16, #tpu.memory_space<vmem>>, %arg8: memref<3x1x64xf32, #tpu.memory_space<vmem>>, %arg9: memref<3x64x64xbf16, #tpu.memory_space<vmem>>, %arg10: memref<3x1x64xf32, #tpu.memory_space<vmem>>, %arg11: memref<1x16x192xbf16, #tpu.memory_space<vmem>>) attributes {dimension_semantics = [#tpu.dimension_semantics<parallel>, #tpu.dimension_semantics<parallel>], iteration_bounds = array<i64: 2, 1>, scalar_prefetch = 0 : i64, scratch_operands = 0 : i64, tpu.core_type = #tpu.core_type<tc>, window_params = [{transform_indices = @transform_0, window_bounds = array<i64: 1, 16, 64>}, {transform_indices = @transform_1, window_bounds = array<i64: 1, 10, 16, 64>}, {pipeline_mode = #tpu.pipeline_mode<synchronous>, transform_indices = @transform_2, window_bounds = array<i64: 3, 64, 128>}, {pipeline_mode = #tpu.pipeline_mode<synchronous>, transform_indices = @transform_3, window_bounds = array<i64: 3, 64, 128>}, {pipeline_mode = #tpu.pipeline_mode<synchronous>, transform_indices = @transform_4, window_bounds = array<i64: 3, 1, 128>}, {pipeline_mode = #tpu.pipeline_mode<synchronous>, transform_indices = @transform_5, window_bounds = array<i64: 3, 128, 64>}, {pipeline_mode = #tpu.pipeline_mode<synchronous>, transform_indices = @transform_6, window_bounds = array<i64: 3, 1, 64>}, {pipeline_mode = #tpu.pipeline_mode<synchronous>, transform_indices = @transform_7, window_bounds = array<i64: 3, 64, 64>}, {pipeline_mode = #tpu.pipeline_mode<synchronous>, transform_indices = @transform_8, window_bounds = array<i64: 3, 1, 64>}, {transform_indices = @transform_9, window_bounds = array<i64: 1, 16, 192>}]} {
    %c0 = arith.constant 0 : index
    %c0_0 = arith.constant 0 : index
    %c0_1 = arith.constant 0 : index
    %0 = vector.load %arg2[%c0, %c0_0, %c0_1] : memref<1x16x64xbf16, #tpu.memory_space<vmem>>, vector<1x16x64xbf16>
    %1 = vector.shape_cast %0 : vector<1x16x64xbf16> to vector<16x64xbf16>
    %c0_2 = arith.constant 0 : index
    %c0_3 = arith.constant 0 : index
    %c0_4 = arith.constant 0 : index
    %c0_5 = arith.constant 0 : index
    %2 = vector.load %arg3[%c0_2, %c0_3, %c0_4, %c0_5] : memref<1x10x16x64xbf16, #tpu.memory_space<vmem>>, vector<1x10x16x64xbf16>
    %3 = vector.shape_cast %2 : vector<1x10x16x64xbf16> to vector<10x16x64xbf16>
    %4 = vector.shape_cast %1 : vector<16x64xbf16> to vector<1x16x64xbf16>
    %5 = vector.broadcast %4 : vector<1x16x64xbf16> to vector<10x16x64xbf16>
    %6 = arith.subf %3, %5 : vector<10x16x64xbf16>
    %7 = vector.shape_cast %6 : vector<10x16x64xbf16> to vector<160x64xbf16>
    %c0_6 = arith.constant 0 : index
    %c0_7 = arith.constant 0 : index
    %c0_8 = arith.constant 0 : index
    %8 = vector.load %arg4[%c0_6, %c0_7, %c0_8] : memref<3x64x128xbf16, #tpu.memory_space<vmem>>, vector<1x64x128xbf16>
    %9 = vector.shape_cast %8 : vector<1x64x128xbf16> to vector<64x128xbf16>
    %c0_9 = arith.constant 0 : index
    %c0_10 = arith.constant 0 : index
    %c0_11 = arith.constant 0 : index
    %10 = vector.load %arg5[%c0_9, %c0_10, %c0_11] : memref<3x64x128xbf16, #tpu.memory_space<vmem>>, vector<1x64x128xbf16>
    %11 = vector.shape_cast %10 : vector<1x64x128xbf16> to vector<64x128xbf16>
    %c0_12 = arith.constant 0 : index
    %c0_13 = arith.constant 0 : index
    %c0_14 = arith.constant 0 : index
    %12 = vector.load %arg6[%c0_12, %c0_13, %c0_14] : memref<3x1x128xf32, #tpu.memory_space<vmem>>, vector<1x1x128xf32>
    %13 = vector.shape_cast %12 : vector<1x1x128xf32> to vector<1x128xf32>
    %c0_15 = arith.constant 0 : index
    %c0_16 = arith.constant 0 : index
    %c0_17 = arith.constant 0 : index
    %14 = vector.load %arg7[%c0_15, %c0_16, %c0_17] : memref<3x128x64xbf16, #tpu.memory_space<vmem>>, vector<1x128x64xbf16>
    %15 = vector.shape_cast %14 : vector<1x128x64xbf16> to vector<128x64xbf16>
    %c0_18 = arith.constant 0 : index
    %c0_19 = arith.constant 0 : index
    %c0_20 = arith.constant 0 : index
    %16 = vector.load %arg8[%c0_18, %c0_19, %c0_20] : memref<3x1x64xf32, #tpu.memory_space<vmem>>, vector<1x1x64xf32>
    %17 = vector.shape_cast %16 : vector<1x1x64xf32> to vector<1x64xf32>
    %c0_21 = arith.constant 0 : index
    %c0_22 = arith.constant 0 : index
    %c0_23 = arith.constant 0 : index
    %18 = vector.load %arg9[%c0_21, %c0_22, %c0_23] : memref<3x64x64xbf16, #tpu.memory_space<vmem>>, vector<1x64x64xbf16>
    %19 = vector.shape_cast %18 : vector<1x64x64xbf16> to vector<64x64xbf16>
    %c0_24 = arith.constant 0 : index
    %c0_25 = arith.constant 0 : index
    %c0_26 = arith.constant 0 : index
    %20 = vector.load %arg10[%c0_24, %c0_25, %c0_26] : memref<3x1x64xf32, #tpu.memory_space<vmem>>, vector<1x1x64xf32>
    %21 = vector.shape_cast %20 : vector<1x1x64xf32> to vector<1x64xf32>
    %cst = arith.constant dense<0.000000e+00> : vector<16x128xf32>
    %22 = tpu.matmul %1, %9, %cst {dimension_numbers = #tpu.dot_dimension_numbers<[1], [0], [0], [1], [0, 0, 1, 1], [], []>} : vector<16x64xbf16>, vector<64x128xbf16>, vector<16x128xf32> -> vector<16x128xf32>
    %23 = vector.broadcast %13 : vector<1x128xf32> to vector<16x128xf32>
    %24 = arith.addf %22, %23 : vector<16x128xf32>
    %cst_27 = arith.constant dense<0.000000e+00> : vector<160x128xf32>
    %25 = tpu.matmul %7, %11, %cst_27 {dimension_numbers = #tpu.dot_dimension_numbers<[1], [0], [0], [1], [0, 0, 1, 1], [], []>} : vector<160x64xbf16>, vector<64x128xbf16>, vector<160x128xf32> -> vector<160x128xf32>
    %26 = vector.shape_cast %25 : vector<160x128xf32> to vector<10x16x128xf32>
    %27 = vector.shape_cast %24 : vector<16x128xf32> to vector<1x16x128xf32>
    %28 = vector.broadcast %27 : vector<1x16x128xf32> to vector<10x16x128xf32>
    %29 = arith.addf %26, %28 : vector<10x16x128xf32>
    %cst_28 = arith.constant 0.000000e+00 : f32
    %30 = vector.broadcast %cst_28 : f32 to vector<10x16x128xf32>
    %31 = arith.maximumf %29, %30 : vector<10x16x128xf32>
    %32 = vector.shape_cast %31 : vector<10x16x128xf32> to vector<160x128xf32>
    %33 = arith.truncf %32 : vector<160x128xf32> to vector<160x128xbf16>
    %cst_29 = arith.constant dense<0.000000e+00> : vector<160x64xf32>
    %34 = tpu.matmul %33, %15, %cst_29 {dimension_numbers = #tpu.dot_dimension_numbers<[1], [0], [0], [1], [0, 0, 1, 1], [], []>} : vector<160x128xbf16>, vector<128x64xbf16>, vector<160x64xf32> -> vector<160x64xf32>
    %35 = vector.broadcast %17 : vector<1x64xf32> to vector<160x64xf32>
    %36 = arith.addf %34, %35 : vector<160x64xf32>
    %cst_30 = arith.constant 0.000000e+00 : f32
    %37 = vector.broadcast %cst_30 : f32 to vector<160x64xf32>
    %38 = arith.maximumf %36, %37 : vector<160x64xf32>
    %39 = arith.truncf %38 : vector<160x64xf32> to vector<160x64xbf16>
    %cst_31 = arith.constant dense<0.000000e+00> : vector<160x64xf32>
    %40 = tpu.matmul %39, %19, %cst_31 {dimension_numbers = #tpu.dot_dimension_numbers<[1], [0], [0], [1], [0, 0, 1, 1], [], []>} : vector<160x64xbf16>, vector<64x64xbf16>, vector<160x64xf32> -> vector<160x64xf32>
    %41 = vector.broadcast %21 : vector<1x64xf32> to vector<160x64xf32>
    %42 = arith.addf %40, %41 : vector<160x64xf32>
    %cst_32 = arith.constant 0.000000e+00 : f32
    %43 = vector.broadcast %cst_32 : f32 to vector<160x64xf32>
    %44 = arith.maximumf %42, %43 : vector<160x64xf32>
    %45 = vector.shape_cast %44 : vector<160x64xf32> to vector<10x16x64xf32>
    %cst_33 = arith.constant dense<0xFF800000> : vector<16x64xf32>
    %46 = vector.multi_reduction <maximumf>, %45, %cst_33 [0] : vector<10x16x64xf32> to vector<16x64xf32>
    %c1 = arith.constant 1 : index
    %c0_34 = arith.constant 0 : index
    %c0_35 = arith.constant 0 : index
    %47 = vector.load %arg4[%c1, %c0_34, %c0_35] : memref<3x64x128xbf16, #tpu.memory_space<vmem>>, vector<1x64x128xbf16>
    %48 = vector.shape_cast %47 : vector<1x64x128xbf16> to vector<64x128xbf16>
    %c1_36 = arith.constant 1 : index
    %c0_37 = arith.constant 0 : index
    %c0_38 = arith.constant 0 : index
    %49 = vector.load %arg5[%c1_36, %c0_37, %c0_38] : memref<3x64x128xbf16, #tpu.memory_space<vmem>>, vector<1x64x128xbf16>
    %50 = vector.shape_cast %49 : vector<1x64x128xbf16> to vector<64x128xbf16>
    %c1_39 = arith.constant 1 : index
    %c0_40 = arith.constant 0 : index
    %c0_41 = arith.constant 0 : index
    %51 = vector.load %arg6[%c1_39, %c0_40, %c0_41] : memref<3x1x128xf32, #tpu.memory_space<vmem>>, vector<1x1x128xf32>
    %52 = vector.shape_cast %51 : vector<1x1x128xf32> to vector<1x128xf32>
    %c1_42 = arith.constant 1 : index
    %c0_43 = arith.constant 0 : index
    %c0_44 = arith.constant 0 : index
    %53 = vector.load %arg7[%c1_42, %c0_43, %c0_44] : memref<3x128x64xbf16, #tpu.memory_space<vmem>>, vector<1x128x64xbf16>
    %54 = vector.shape_cast %53 : vector<1x128x64xbf16> to vector<128x64xbf16>
    %c1_45 = arith.constant 1 : index
    %c0_46 = arith.constant 0 : index
    %c0_47 = arith.constant 0 : index
    %55 = vector.load %arg8[%c1_45, %c0_46, %c0_47] : memref<3x1x64xf32, #tpu.memory_space<vmem>>, vector<1x1x64xf32>
    %56 = vector.shape_cast %55 : vector<1x1x64xf32> to vector<1x64xf32>
    %c1_48 = arith.constant 1 : index
    %c0_49 = arith.constant 0 : index
    %c0_50 = arith.constant 0 : index
    %57 = vector.load %arg9[%c1_48, %c0_49, %c0_50] : memref<3x64x64xbf16, #tpu.memory_space<vmem>>, vector<1x64x64xbf16>
    %58 = vector.shape_cast %57 : vector<1x64x64xbf16> to vector<64x64xbf16>
    %c1_51 = arith.constant 1 : index
    %c0_52 = arith.constant 0 : index
    %c0_53 = arith.constant 0 : index
    %59 = vector.load %arg10[%c1_51, %c0_52, %c0_53] : memref<3x1x64xf32, #tpu.memory_space<vmem>>, vector<1x1x64xf32>
    %60 = vector.shape_cast %59 : vector<1x1x64xf32> to vector<1x64xf32>
    %cst_54 = arith.constant dense<0.000000e+00> : vector<16x128xf32>
    %61 = tpu.matmul %1, %48, %cst_54 {dimension_numbers = #tpu.dot_dimension_numbers<[1], [0], [0], [1], [0, 0, 1, 1], [], []>} : vector<16x64xbf16>, vector<64x128xbf16>, vector<16x128xf32> -> vector<16x128xf32>
    %62 = vector.broadcast %52 : vector<1x128xf32> to vector<16x128xf32>
    %63 = arith.addf %61, %62 : vector<16x128xf32>
    %cst_55 = arith.constant dense<0.000000e+00> : vector<160x128xf32>
    %64 = tpu.matmul %7, %50, %cst_55 {dimension_numbers = #tpu.dot_dimension_numbers<[1], [0], [0], [1], [0, 0, 1, 1], [], []>} : vector<160x64xbf16>, vector<64x128xbf16>, vector<160x128xf32> -> vector<160x128xf32>
    %65 = vector.shape_cast %64 : vector<160x128xf32> to vector<10x16x128xf32>
    %66 = vector.shape_cast %63 : vector<16x128xf32> to vector<1x16x128xf32>
    %67 = vector.broadcast %66 : vector<1x16x128xf32> to vector<10x16x128xf32>
    %68 = arith.addf %65, %67 : vector<10x16x128xf32>
    %cst_56 = arith.constant 0.000000e+00 : f32
    %69 = vector.broadcast %cst_56 : f32 to vector<10x16x128xf32>
    %70 = arith.maximumf %68, %69 : vector<10x16x128xf32>
    %71 = vector.shape_cast %70 : vector<10x16x128xf32> to vector<160x128xf32>
    %72 = arith.truncf %71 : vector<160x128xf32> to vector<160x128xbf16>
    %cst_57 = arith.constant dense<0.000000e+00> : vector<160x64xf32>
    %73 = tpu.matmul %72, %54, %cst_57 {dimension_numbers = #tpu.dot_dimension_numbers<[1], [0], [0], [1], [0, 0, 1, 1], [], []>} : vector<160x128xbf16>, vector<128x64xbf16>, vector<160x64xf32> -> vector<160x64xf32>
    %74 = vector.broadcast %56 : vector<1x64xf32> to vector<160x64xf32>
    %75 = arith.addf %73, %74 : vector<160x64xf32>
    %cst_58 = arith.constant 0.000000e+00 : f32
    %76 = vector.broadcast %cst_58 : f32 to vector<160x64xf32>
    %77 = arith.maximumf %75, %76 : vector<160x64xf32>
    %78 = arith.truncf %77 : vector<160x64xf32> to vector<160x64xbf16>
    %cst_59 = arith.constant dense<0.000000e+00> : vector<160x64xf32>
    %79 = tpu.matmul %78, %58, %cst_59 {dimension_numbers = #tpu.dot_dimension_numbers<[1], [0], [0], [1], [0, 0, 1, 1], [], []>} : vector<160x64xbf16>, vector<64x64xbf16>, vector<160x64xf32> -> vector<160x64xf32>
    %80 = vector.broadcast %60 : vector<1x64xf32> to vector<160x64xf32>
    %81 = arith.addf %79, %80 : vector<160x64xf32>
    %cst_60 = arith.constant 0.000000e+00 : f32
    %82 = vector.broadcast %cst_60 : f32 to vector<160x64xf32>
    %83 = arith.maximumf %81, %82 : vector<160x64xf32>
    %84 = vector.shape_cast %83 : vector<160x64xf32> to vector<10x16x64xf32>
    %cst_61 = arith.constant dense<0xFF800000> : vector<16x64xf32>
    %85 = vector.multi_reduction <maximumf>, %84, %cst_61 [0] : vector<10x16x64xf32> to vector<16x64xf32>
    %c2 = arith.constant 2 : index
    %c0_62 = arith.constant 0 : index
    %c0_63 = arith.constant 0 : index
    %86 = vector.load %arg4[%c2, %c0_62, %c0_63] : memref<3x64x128xbf16, #tpu.memory_space<vmem>>, vector<1x64x128xbf16>
    %87 = vector.shape_cast %86 : vector<1x64x128xbf16> to vector<64x128xbf16>
    %c2_64 = arith.constant 2 : index
    %c0_65 = arith.constant 0 : index
    %c0_66 = arith.constant 0 : index
    %88 = vector.load %arg5[%c2_64, %c0_65, %c0_66] : memref<3x64x128xbf16, #tpu.memory_space<vmem>>, vector<1x64x128xbf16>
    %89 = vector.shape_cast %88 : vector<1x64x128xbf16> to vector<64x128xbf16>
    %c2_67 = arith.constant 2 : index
    %c0_68 = arith.constant 0 : index
    %c0_69 = arith.constant 0 : index
    %90 = vector.load %arg6[%c2_67, %c0_68, %c0_69] : memref<3x1x128xf32, #tpu.memory_space<vmem>>, vector<1x1x128xf32>
    %91 = vector.shape_cast %90 : vector<1x1x128xf32> to vector<1x128xf32>
    %c2_70 = arith.constant 2 : index
    %c0_71 = arith.constant 0 : index
    %c0_72 = arith.constant 0 : index
    %92 = vector.load %arg7[%c2_70, %c0_71, %c0_72] : memref<3x128x64xbf16, #tpu.memory_space<vmem>>, vector<1x128x64xbf16>
    %93 = vector.shape_cast %92 : vector<1x128x64xbf16> to vector<128x64xbf16>
    %c2_73 = arith.constant 2 : index
    %c0_74 = arith.constant 0 : index
    %c0_75 = arith.constant 0 : index
    %94 = vector.load %arg8[%c2_73, %c0_74, %c0_75] : memref<3x1x64xf32, #tpu.memory_space<vmem>>, vector<1x1x64xf32>
    %95 = vector.shape_cast %94 : vector<1x1x64xf32> to vector<1x64xf32>
    %c2_76 = arith.constant 2 : index
    %c0_77 = arith.constant 0 : index
    %c0_78 = arith.constant 0 : index
    %96 = vector.load %arg9[%c2_76, %c0_77, %c0_78] : memref<3x64x64xbf16, #tpu.memory_space<vmem>>, vector<1x64x64xbf16>
    %97 = vector.shape_cast %96 : vector<1x64x64xbf16> to vector<64x64xbf16>
    %c2_79 = arith.constant 2 : index
    %c0_80 = arith.constant 0 : index
    %c0_81 = arith.constant 0 : index
    %98 = vector.load %arg10[%c2_79, %c0_80, %c0_81] : memref<3x1x64xf32, #tpu.memory_space<vmem>>, vector<1x1x64xf32>
    %99 = vector.shape_cast %98 : vector<1x1x64xf32> to vector<1x64xf32>
    %cst_82 = arith.constant dense<0.000000e+00> : vector<16x128xf32>
    %100 = tpu.matmul %1, %87, %cst_82 {dimension_numbers = #tpu.dot_dimension_numbers<[1], [0], [0], [1], [0, 0, 1, 1], [], []>} : vector<16x64xbf16>, vector<64x128xbf16>, vector<16x128xf32> -> vector<16x128xf32>
    %101 = vector.broadcast %91 : vector<1x128xf32> to vector<16x128xf32>
    %102 = arith.addf %100, %101 : vector<16x128xf32>
    %cst_83 = arith.constant dense<0.000000e+00> : vector<160x128xf32>
    %103 = tpu.matmul %7, %89, %cst_83 {dimension_numbers = #tpu.dot_dimension_numbers<[1], [0], [0], [1], [0, 0, 1, 1], [], []>} : vector<160x64xbf16>, vector<64x128xbf16>, vector<160x128xf32> -> vector<160x128xf32>
    %104 = vector.shape_cast %103 : vector<160x128xf32> to vector<10x16x128xf32>
    %105 = vector.shape_cast %102 : vector<16x128xf32> to vector<1x16x128xf32>
    %106 = vector.broadcast %105 : vector<1x16x128xf32> to vector<10x16x128xf32>
    %107 = arith.addf %104, %106 : vector<10x16x128xf32>
    %cst_84 = arith.constant 0.000000e+00 : f32
    %108 = vector.broadcast %cst_84 : f32 to vector<10x16x128xf32>
    %109 = arith.maximumf %107, %108 : vector<10x16x128xf32>
    %110 = vector.shape_cast %109 : vector<10x16x128xf32> to vector<160x128xf32>
    %111 = arith.truncf %110 : vector<160x128xf32> to vector<160x128xbf16>
    %cst_85 = arith.constant dense<0.000000e+00> : vector<160x64xf32>
    %112 = tpu.matmul %111, %93, %cst_85 {dimension_numbers = #tpu.dot_dimension_numbers<[1], [0], [0], [1], [0, 0, 1, 1], [], []>} : vector<160x128xbf16>, vector<128x64xbf16>, vector<160x64xf32> -> vector<160x64xf32>
    %113 = vector.broadcast %95 : vector<1x64xf32> to vector<160x64xf32>
    %114 = arith.addf %112, %113 : vector<160x64xf32>
    %cst_86 = arith.constant 0.000000e+00 : f32
    %115 = vector.broadcast %cst_86 : f32 to vector<160x64xf32>
    %116 = arith.maximumf %114, %115 : vector<160x64xf32>
    %117 = arith.truncf %116 : vector<160x64xf32> to vector<160x64xbf16>
    %cst_87 = arith.constant dense<0.000000e+00> : vector<160x64xf32>
    %118 = tpu.matmul %117, %97, %cst_87 {dimension_numbers = #tpu.dot_dimension_numbers<[1], [0], [0], [1], [0, 0, 1, 1], [], []>} : vector<160x64xbf16>, vector<64x64xbf16>, vector<160x64xf32> -> vector<160x64xf32>
    %119 = vector.broadcast %99 : vector<1x64xf32> to vector<160x64xf32>
    %120 = arith.addf %118, %119 : vector<160x64xf32>
    %cst_88 = arith.constant 0.000000e+00 : f32
    %121 = vector.broadcast %cst_88 : f32 to vector<160x64xf32>
    %122 = arith.maximumf %120, %121 : vector<160x64xf32>
    %123 = vector.shape_cast %122 : vector<160x64xf32> to vector<10x16x64xf32>
    %cst_89 = arith.constant dense<0xFF800000> : vector<16x64xf32>
    %124 = vector.multi_reduction <maximumf>, %123, %cst_89 [0] : vector<10x16x64xf32> to vector<16x64xf32>
    %125 = tpu.concatenate %46, %85, %124 in 1 : vector<16x64xf32>, vector<16x64xf32>, vector<16x64xf32> -> vector<16x192xf32>
    %126 = arith.truncf %125 : vector<16x192xf32> to vector<16x192xbf16>
    %c0_90 = arith.constant 0 : index
    %c0_91 = arith.constant 0 : index
    %c0_92 = arith.constant 0 : index
    %127 = vector.load %arg11[%c0_90, %c0_91, %c0_92] : memref<1x16x192xbf16, #tpu.memory_space<vmem>>, vector<1x16x192xbf16>
    %128 = vector.shape_cast %127 : vector<1x16x192xbf16> to vector<16x192xbf16>
    %129 = vector.shape_cast %126 : vector<16x192xbf16> to vector<1x16x192xbf16>
    tpu.vector_store %arg11[%c0_90, %c0_91, %c0_92], %129 {strides = array<i32>} : memref<1x16x192xbf16, #tpu.memory_space<vmem>>, vector<1x16x192xbf16>,
    return
  }
  func.func @transform_0(%arg0: i32, %arg1: i32) -> (i32, i32, i32) {
    %c0_i32 = arith.constant 0 : i32
    %c0_i32_0 = arith.constant 0 : i32
    return %arg0, %arg1, %c0_i32 : i32, i32, i32
  }
  func.func @transform_1(%arg0: i32, %arg1: i32) -> (i32, i32, i32, i32) {
    %c0_i32 = arith.constant 0 : i32
    %c0_i32_0 = arith.constant 0 : i32
    %c0_i32_1 = arith.constant 0 : i32
    return %arg0, %c0_i32, %arg1, %c0_i32_0 : i32, i32, i32, i32
  }
  func.func @transform_2(%arg0: i32, %arg1: i32) -> (i32, i32, i32) {
    %c0_i32 = arith.constant 0 : i32
    %c0_i32_0 = arith.constant 0 : i32
    %c0_i32_1 = arith.constant 0 : i32
    %c0_i32_2 = arith.constant 0 : i32
    return %c0_i32, %c0_i32_0, %c0_i32_1 : i32, i32, i32
  }
  func.func @transform_3(%arg0: i32, %arg1: i32) -> (i32, i32, i32) {
    %c0_i32 = arith.constant 0 : i32
    %c0_i32_0 = arith.constant 0 : i32
    %c0_i32_1 = arith.constant 0 : i32
    %c0_i32_2 = arith.constant 0 : i32
    return %c0_i32, %c0_i32_0, %c0_i32_1 : i32, i32, i32
  }
  func.func @transform_4(%arg0: i32, %arg1: i32) -> (i32, i32, i32) {
    %c0_i32 = arith.constant 0 : i32
    %c0_i32_0 = arith.constant 0 : i32
    %c0_i32_1 = arith.constant 0 : i32
    %c0_i32_2 = arith.constant 0 : i32
    return %c0_i32, %c0_i32_0, %c0_i32_1 : i32, i32, i32
  }
  func.func @transform_5(%arg0: i32, %arg1: i32) -> (i32, i32, i32) {
    %c0_i32 = arith.constant 0 : i32
    %c0_i32_0 = arith.constant 0 : i32
    %c0_i32_1 = arith.constant 0 : i32
    %c0_i32_2 = arith.constant 0 : i32
    return %c0_i32, %c0_i32_0, %c0_i32_1 : i32, i32, i32
  }
  func.func @transform_6(%arg0: i32, %arg1: i32) -> (i32, i32, i32) {
    %c0_i32 = arith.constant 0 : i32
    %c0_i32_0 = arith.constant 0 : i32
    %c0_i32_1 = arith.constant 0 : i32
    %c0_i32_2 = arith.constant 0 : i32
    return %c0_i32, %c0_i32_0, %c0_i32_1 : i32, i32, i32
  }
  func.func @transform_7(%arg0: i32, %arg1: i32) -> (i32, i32, i32) {
    %c0_i32 = arith.constant 0 : i32
    %c0_i32_0 = arith.constant 0 : i32
    %c0_i32_1 = arith.constant 0 : i32
    %c0_i32_2 = arith.constant 0 : i32
    return %c0_i32, %c0_i32_0, %c0_i32_1 : i32, i32, i32
  }
  func.func @transform_8(%arg0: i32, %arg1: i32) -> (i32, i32, i32) {
    %c0_i32 = arith.constant 0 : i32
    %c0_i32_0 = arith.constant 0 : i32
    %c0_i32_1 = arith.constant 0 : i32
    %c0_i32_2 = arith.constant 0 : i32
    return %c0_i32, %c0_i32_0, %c0_i32_1 : i32, i32, i32
  }
  func.func @transform_9(%arg0: i32, %arg1: i32) -> (i32, i32, i32) {
    %c0_i32 = arith.constant 0 : i32
    %c0_i32_0 = arith.constant 0 : i32
    return %arg0, %arg1, %c0_i32 : i32, i32, i32
  }
}

module attributes {stable_mosaic.version = 11 : i64} {
  func.func @mlp2_kernel(%arg0: i32, %arg1: memref<32x192xbf16, #tpu.memory_space<vmem>>, %arg2: memref<192x192xbf16, #tpu.memory_space<vmem>>, %arg3: memref<1x192xf32, #tpu.memory_space<vmem>>, %arg4: memref<192x192xbf16, #tpu.memory_space<vmem>>, %arg5: memref<1x192xf32, #tpu.memory_space<vmem>>, %arg6: memref<32x192xf32, #tpu.memory_space<vmem>>) attributes {dimension_semantics = [#tpu.dimension_semantics<parallel>], iteration_bounds = array<i64: 1>, scalar_prefetch = 0 : i64, scratch_operands = 0 : i64, tpu.core_type = #tpu.core_type<tc>, window_params = [{transform_indices = @transform_0, window_bounds = array<i64: 32, 192>}, {pipeline_mode = #tpu.pipeline_mode<synchronous>, transform_indices = @transform_1, window_bounds = array<i64: 192, 192>}, {pipeline_mode = #tpu.pipeline_mode<synchronous>, transform_indices = @transform_2, window_bounds = array<i64: 1, 192>}, {pipeline_mode = #tpu.pipeline_mode<synchronous>, transform_indices = @transform_3, window_bounds = array<i64: 192, 192>}, {pipeline_mode = #tpu.pipeline_mode<synchronous>, transform_indices = @transform_4, window_bounds = array<i64: 1, 192>}, {transform_indices = @transform_5, window_bounds = array<i64: 32, 192>}]} {
    %c0 = arith.constant 0 : index
    %c0_0 = arith.constant 0 : index
    %0 = vector.load %arg1[%c0, %c0_0] : memref<32x192xbf16, #tpu.memory_space<vmem>>, vector<32x192xbf16>
    %c0_1 = arith.constant 0 : index
    %c0_2 = arith.constant 0 : index
    %1 = vector.load %arg2[%c0_1, %c0_2] : memref<192x192xbf16, #tpu.memory_space<vmem>>, vector<192x192xbf16>
    %cst = arith.constant dense<0.000000e+00> : vector<32x192xf32>
    %2 = tpu.matmul %0, %1, %cst {dimension_numbers = #tpu.dot_dimension_numbers<[1], [0], [0], [1], [0, 0, 1, 1], [], []>} : vector<32x192xbf16>, vector<192x192xbf16>, vector<32x192xf32> -> vector<32x192xf32>
    %c0_3 = arith.constant 0 : index
    %c0_4 = arith.constant 0 : index
    %3 = vector.load %arg3[%c0_3, %c0_4] : memref<1x192xf32, #tpu.memory_space<vmem>>, vector<1x192xf32>
    %4 = vector.broadcast %3 : vector<1x192xf32> to vector<32x192xf32>
    %5 = arith.addf %2, %4 : vector<32x192xf32>
    %cst_5 = arith.constant 0.000000e+00 : f32
    %6 = vector.broadcast %cst_5 : f32 to vector<32x192xf32>
    %7 = arith.maximumf %5, %6 : vector<32x192xf32>
    %8 = arith.truncf %7 : vector<32x192xf32> to vector<32x192xbf16>
    %c0_6 = arith.constant 0 : index
    %c0_7 = arith.constant 0 : index
    %9 = vector.load %arg4[%c0_6, %c0_7] : memref<192x192xbf16, #tpu.memory_space<vmem>>, vector<192x192xbf16>
    %cst_8 = arith.constant dense<0.000000e+00> : vector<32x192xf32>
    %10 = tpu.matmul %8, %9, %cst_8 {dimension_numbers = #tpu.dot_dimension_numbers<[1], [0], [0], [1], [0, 0, 1, 1], [], []>} : vector<32x192xbf16>, vector<192x192xbf16>, vector<32x192xf32> -> vector<32x192xf32>
    %c0_9 = arith.constant 0 : index
    %c0_10 = arith.constant 0 : index
    %11 = vector.load %arg5[%c0_9, %c0_10] : memref<1x192xf32, #tpu.memory_space<vmem>>, vector<1x192xf32>
    %12 = vector.broadcast %11 : vector<1x192xf32> to vector<32x192xf32>
    %13 = arith.addf %10, %12 : vector<32x192xf32>
    %cst_11 = arith.constant 0.000000e+00 : f32
    %14 = vector.broadcast %cst_11 : f32 to vector<32x192xf32>
    %15 = arith.maximumf %13, %14 : vector<32x192xf32>
    %c0_12 = arith.constant 0 : index
    %c0_13 = arith.constant 0 : index
    %16 = vector.load %arg6[%c0_12, %c0_13] : memref<32x192xf32, #tpu.memory_space<vmem>>, vector<32x192xf32>
    tpu.vector_store %arg6[%c0_12, %c0_13], %15 {strides = array<i32>} : memref<32x192xf32, #tpu.memory_space<vmem>>, vector<32x192xf32>,
    return
  }
  func.func @transform_0(%arg0: i32) -> (i32, i32) {
    %c0_i32 = arith.constant 0 : i32
    %c0_i32_0 = arith.constant 0 : i32
    return %arg0, %c0_i32 : i32, i32
  }
  func.func @transform_1(%arg0: i32) -> (i32, i32) {
    %c0_i32 = arith.constant 0 : i32
    %c0_i32_0 = arith.constant 0 : i32
    %c0_i32_1 = arith.constant 0 : i32
    return %c0_i32, %c0_i32_0 : i32, i32
  }
  func.func @transform_2(%arg0: i32) -> (i32, i32) {
    %c0_i32 = arith.constant 0 : i32
    %c0_i32_0 = arith.constant 0 : i32
    %c0_i32_1 = arith.constant 0 : i32
    return %c0_i32, %c0_i32_0 : i32, i32
  }
  func.func @transform_3(%arg0: i32) -> (i32, i32) {
    %c0_i32 = arith.constant 0 : i32
    %c0_i32_0 = arith.constant 0 : i32
    %c0_i32_1 = arith.constant 0 : i32
    return %c0_i32, %c0_i32_0 : i32, i32
  }
  func.func @transform_4(%arg0: i32) -> (i32, i32) {
    %c0_i32 = arith.constant 0 : i32
    %c0_i32_0 = arith.constant 0 : i32
    %c0_i32_1 = arith.constant 0 : i32
    return %c0_i32, %c0_i32_0 : i32, i32
  }
  func.func @transform_5(%arg0: i32) -> (i32, i32) {
    %c0_i32 = arith.constant 0 : i32
    %c0_i32_0 = arith.constant 0 : i32
    return %arg0, %c0_i32 : i32, i32
  }
}

</mosaic_0001>

<llo_original>
// kernel: dgcnn_segment_forward.7
$region0: #{dgcnn_segment_forward.7}
  #allocation0 [shape = 'u32[]', space=smem, size = 0x4, offset = 0x4, fixed_abs, tag = 'smem constant byte address 0x4 - core index']
  #allocation1 [shape = 'u32[144,128]{1,0:T(1,128)}', space=vmem, size = 0x12000, scoped, tag = 'internal scratch']
  %s0 = inlined_call_operand.hbm [shape: f32[32,32], index: 0, kind: input, shape index: {}]
  %s1 = inlined_call_operand.vmem [shape: f32[1,32], index: 1, kind: output, shape index: {0}]
  %s2 = inlined_call_operand.vmem [shape: f32[1,32], index: 2, kind: output, shape index: {1}]
  %3 = xla_tuple %s1, %s2
  %s4 = sld [smem:[#allocation0]]
  $region30: #{dgcnn_segment_forward.7} parent=0
    _
  %s6 = ssub.s32 1, %s4
  %s7 = scalar_select 0, %s6, %s4
  $region1: #{dgcnn_segment_forward.7} parent=0
    #allocation2 [shape = 'u8[16384]{0}', space=vmem, size = 0x4000, scoped, tag = 'input window, operand 0, single buffered']
    #allocation3 [shape = 's32[1]{0}', space=sflag, size = 0x4, scoped, tag = 'scoped memory for dgcnn_segment_forward.7']
    %8 = vsyncpa [#allocation3], 0
    // Predicated region
    $region2: #{dgcnn_segment_forward.7} parent=1 // pred_check
      _
    $region3: #{dgcnn_segment_forward.7} parent=1 // pred_check_branch
      %10 = sbr.rel (0) target = $region5
    $region4: #{dgcnn_segment_forward.7} parent=1 // pred_region
      %s12 = ssub.s32 512, 512
      %13 = vsyncadd [#allocation3], %s12
      %s14 = sshll.u32 [#allocation2], 4
      %s15 = int_to_ptr.vmem [resolvable:$true] %s14
      %20 = dma.hbm_to_vmem [thread:$0]  %s0, 512, %s15, [#allocation3], 128, 128, 8
    $region5: #{dgcnn_segment_forward.7} parent=1 // pred_fallthru
      _
    // Predicated region
    $region6: #{dgcnn_segment_forward.7} parent=1 // pred_check
      _
    $region7: #{dgcnn_segment_forward.7} parent=1 // pred_check_branch
      %22 = sbr.rel (0) target = $region9
    $region8: #{dgcnn_segment_forward.7} parent=1 // pred_region
      %23 = dma.done [#allocation3], 512
    $region9: #{dgcnn_segment_forward.7} parent=1 // pred_fallthru
      _
    %p24 = scmp.eq.s32.totalorder 0, 0
    // Predicated region
    $region10: #{dgcnn_segment_forward.7} parent=1 // pred_check
      %p25 = pneg %p24
    $region11: #{dgcnn_segment_forward.7} parent=1 // pred_check_branch
      %27 = sbr.rel (%p25) target = $region13
    $region12: #{dgcnn_segment_forward.7} parent=1 // pred_region
      %vm28 = vcmask 253952
      %29 = vst.msk [vmem:[%s1] sm:$0x1] %vm28, 0.0
      %30 = vst.msk [vmem:[%s2] sm:$0x1] %vm28, 0.0
    $region13: #{dgcnn_segment_forward.7} parent=1 // pred_fallthru
      _
    %v31 = vld [vmem:[#allocation2] sm:$0xff]
    %v32 = vld [vmem:[#allocation2 + $0x8] sm:$0xff]
    %v33 = vld [vmem:[#allocation2 + $0x10] sm:$0xff]
    %v34 = vld [vmem:[#allocation2 + $0x18] sm:$0xff]
    %v35 = vld [vmem:[%s1] sm:$0x1]
    %vm36 = vcmask 261120
    %v37 = vsel %vm36, %v31, 0.0
    %v38 = vsel %vm36, %v32, 0.0
    %v39 = vadd.f32 %v37, %v38
    %v40 = vsel %vm36, %v33, 0.0
    %v41 = vadd.f32 %v39, %v40
    %v42 = vsel %vm36, %v34, 0.0
    %v43 = vadd.f32 %v41, %v42
    %v44 = vrot.slane %v43, 4
    %v45 = vadd.f32 %v43, %v44
    %v46 = vrot.slane %v45, 2
    %v47 = vadd.f32 %v45, %v46
    %v48 = vrot.slane %v47, 1
    %v49 = vadd.f32 %v47, %v48
    %v50 = vadd.f32 %v35, %v49
    %vm51 = vcmask 253952
    %52 = vst.msk [vmem:[%s1] sm:$0x1] %vm51, %v50
    %v53 = vld [vmem:[%s2] sm:$0x1]
    %v54 = vmul.f32 %v31, %v31
    %v55 = vmul.f32 %v32, %v32
    %v56 = vmul.f32 %v33, %v33
    %v57 = vmul.f32 %v34, %v34
    %v58 = vsel %vm36, %v54, 0.0
    %v59 = vsel %vm36, %v55, 0.0
    %v60 = vadd.f32 %v58, %v59
    %v61 = vsel %vm36, %v56, 0.0
    %v62 = vadd.f32 %v60, %v61
    %v63 = vsel %vm36, %v57, 0.0
    %v64 = vadd.f32 %v62, %v63
    %v65 = vrot.slane %v64, 4
    %v66 = vadd.f32 %v64, %v65
    %v67 = vrot.slane %v66, 2
    %v68 = vadd.f32 %v66, %v67
    %v69 = vrot.slane %v68, 1
    %v70 = vadd.f32 %v68, %v69
    %v71 = vadd.f32 %v53, %v70
    %72 = vst.msk [vmem:[%s2] sm:$0x1] %vm51, %v71
    // Predicated region
    $region14: #{dgcnn_segment_forward.7} parent=1 // pred_check
      _
    $region15: #{dgcnn_segment_forward.7} parent=1 // pred_check_branch
      %74 = sbr.rel (0) target = $region17
    $region16: #{dgcnn_segment_forward.7} parent=1 // pred_region
      _
    $region17: #{dgcnn_segment_forward.7} parent=1 // pred_fallthru
      _
    // Predicated region
    $region18: #{dgcnn_segment_forward.7} parent=1 // pred_check
      _
    $region19: #{dgcnn_segment_forward.7} parent=1 // pred_check_branch
      %76 = sbr.rel (0) target = $region21
    $region20: #{dgcnn_segment_forward.7} parent=1 // pred_region
      _
    $region21: #{dgcnn_segment_forward.7} parent=1 // pred_fallthru
      _
    // Predicated region
    $region22: #{dgcnn_segment_forward.7} parent=1 // pred_check
      _
    $region23: #{dgcnn_segment_forward.7} parent=1 // pred_check_branch
      %78 = sbr.rel (0) target = $region25
    $region24: #{dgcnn_segment_forward.7} parent=1 // pred_region
      _
    $region25: #{dgcnn_segment_forward.7} parent=1 // pred_fallthru
      _
    // Predicated region
    $region26: #{dgcnn_segment_forward.7} parent=1 // pred_check
      _
    $region27: #{dgcnn_segment_forward.7} parent=1 // pred_check_branch
      %80 = sbr.rel (0) target = $region29
    $region28: #{dgcnn_segment_forward.7} parent=1 // pred_region
      _
    $region29: #{dgcnn_segment_forward.7} parent=1 // pred_fallthru
      _
    %81 = vsyncpa [#allocation3], 1

// kernel: dgcnn_segment_forward.8
$region0: #{dgcnn_segment_forward.8}
  #allocation0 [shape = 'u32[]', space=smem, size = 0x4, offset = 0x4, fixed_abs, tag = 'smem constant byte address 0x4 - core index']
  #allocation1 [shape = 'u32[144,128]{1,0:T(1,128)}', space=vmem, size = 0x12000, scoped, tag = 'internal scratch']
  %s0 = inlined_call_operand.vmem [shape: f32[32,32], index: 0, kind: input, shape index: {}]
  %s1 = inlined_call_operand.vmem [shape: f32[1,32], index: 1, kind: input, shape index: {}]
  %s2 = inlined_call_operand.vmem [shape: f32[1,32], index: 2, kind: input, shape index: {}]
  %s3 = inlined_call_operand.vmem [shape: bf16[32,64], index: 3, kind: input, shape index: {}]
  %s4 = inlined_call_operand.vmem [shape: f32[1,64], index: 4, kind: input, shape index: {}]
  %s5 = inlined_call_operand.vmem [shape: bf16[32,64], index: 5, kind: output, shape index: {}]
  %s6 = sld [smem:[#allocation0]]
  $region30: #{dgcnn_segment_forward.8} parent=0
    _
  %s8 = ssub.s32 1, %s6
  %s9 = scalar_select 0, %s8, %s6
  // Predicated region
  $region2: #{dgcnn_segment_forward.8} parent=0 // pred_check
    _
  $region3: #{dgcnn_segment_forward.8} parent=0 // pred_check_branch
    %11 = sbr.rel (0) target = $region5
  $region4: #{dgcnn_segment_forward.8} parent=0 // pred_region
    _
  $region5: #{dgcnn_segment_forward.8} parent=0 // pred_fallthru
    _
  // Predicated region
  $region6: #{dgcnn_segment_forward.8} parent=0 // pred_check
    _
  $region7: #{dgcnn_segment_forward.8} parent=0 // pred_check_branch
    %13 = sbr.rel (0) target = $region9
  $region8: #{dgcnn_segment_forward.8} parent=0 // pred_region
    _
  $region9: #{dgcnn_segment_forward.8} parent=0 // pred_fallthru
    _
  // Predicated region
  $region10: #{dgcnn_segment_forward.8} parent=0 // pred_check
    _
  $region11: #{dgcnn_segment_forward.8} parent=0 // pred_check_branch
    %15 = sbr.rel (0) target = $region13
  $region12: #{dgcnn_segment_forward.8} parent=0 // pred_region
    _
  $region13: #{dgcnn_segment_forward.8} parent=0 // pred_fallthru
    _
  // Predicated region
  $region14: #{dgcnn_segment_forward.8} parent=0 // pred_check
    _
  $region15: #{dgcnn_segment_forward.8} parent=0 // pred_check_branch
    %17 = sbr.rel (0) target = $region17
  $region16: #{dgcnn_segment_forward.8} parent=0 // pred_region
    _
  $region17: #{dgcnn_segment_forward.8} parent=0 // pred_fallthru
    _
  // Predicated region
  $region18: #{dgcnn_segment_forward.8} parent=0 // pred_check
    _
  $region19: #{dgcnn_segment_forward.8} parent=0 // pred_check_branch
    %19 = sbr.rel (0) target = $region21
  $region20: #{dgcnn_segment_forward.8} parent=0 // pred_region
    _
  $region21: #{dgcnn_segment_forward.8} parent=0 // pred_fallthru
    _
  %v21 = vld [vmem:[%s0] sm:$0xff]
  %v22 = vld [vmem:[%s0 + $0x8] sm:$0xff]
  %v23 = vld [vmem:[%s0 + $0x10] sm:$0xff]
  %v24 = vld [vmem:[%s0 + $0x18] sm:$0xff]
  %v25 = vld [vmem:[%s1] sm:$0x1]
  %v27 = vlaneseq
  %v28 = vshrl.u32 %v27, 7
  %v29 = vsub.s32 0, %v28
  %v30 = vrot.slane %v25, %v29
  %v32 = vmul.f32 %v21, %v30
  %v33 = vmul.f32 %v22, %v30
  %v34 = vmul.f32 %v23, %v30
  %v35 = vmul.f32 %v24, %v30
  %v36 = vld [vmem:[%s2] sm:$0x1]
  %v38 = vlaneseq
  %v39 = vshrl.u32 %v38, 7
  %v40 = vsub.s32 0, %v39
  %v41 = vrot.slane %v36, %v40
  %v43 = vadd.f32 %v32, %v41
  %v44 = vadd.f32 %v33, %v41
  %v45 = vadd.f32 %v34, %v41
  %v46 = vadd.f32 %v35, %v41
  %v47 = vpack.c.bf16 %v44, %v43
  %v48 = vpack.c.bf16 %v46, %v45
  %v49 = vld [vmem:[%s3] sm:$0xf]
  %v50 = vld [vmem:[%s3 + $0x4] sm:$0xf]
  %v51 = vld [vmem:[%s3 + $0x8] sm:$0xf]
  %v52 = vld [vmem:[%s3 + $0xc] sm:$0xf]
  %v53 = vld [vmem:[%s4] sm:$0x1]
  %v55 = vlaneseq
  %v56 = vshrl.u32 %v55, 7
  %v57 = vsub.s32 0, %v56
  %v58 = vrot.slane %v53, %v57
  %v64 = vunpack.c.l.b16 %v49
  %v65 = vunpack.c.l.b16 %v50
  %v66 = vunpack.c.l.b16 %v51
  %v67 = vunpack.c.l.b16 %v52
  %v68 = vpack.c.b16 %v65, %v64
  %v69 = vpack.c.b16 %v67, %v66
  %vm72 = vcmask 261120
  %v74 = vsel %vm72, %v47, 0
  %v77 = vsel %vm72, %v48, 0
  %79 = vmatprep.subr.bf16.mxu0 0
  %80 = vmatpush1.bf16.msra.mxu0 %v68
  %81 = vmatprep.subr.bf16.mxu0 0
  %82 = vmatpush1.bf16.msra.mxu0 %v69
  %83 = vmatprep.subr.bf16.mxu0 0
  %84 = vmatpush1.bf16.msra.mxu0 0
  %85 = vmatprep.subr.bf16.mxu0 0
  %86 = vmatpush1.bf16.msra.mxu0 0
  %87 = vmatprep.subr.bf16.mxu0 0
  %88 = vmatpush1.bf16.msra.mxu0 0
  %89 = vmatprep.subr.bf16.mxu0 0
  %90 = vmatpush1.bf16.msra.mxu0 0
  %91 = vmatprep.subr.bf16.mxu0 0
  %92 = vmatpush1.bf16.msra.mxu0 0
  %93 = vmatprep.subr.bf16.mxu0 0
  %94 = vmatpush1.bf16.msra.mxu0 0
  %95 = vmatprep.subr.bf16.mxu0 0
  %96 = vmatpush1.bf16.msra.mxu0 0
  %97 = vmatprep.subr.bf16.mxu0 0
  %98 = vmatpush1.bf16.msra.mxu0 0
  %99 = vmatprep.subr.bf16.mxu0 0
  %100 = vmatpush1.bf16.msra.mxu0 0
  %101 = vmatprep.subr.bf16.mxu0 0
  %102 = vmatpush1.bf16.msra.mxu0 0
  %103 = vmatprep.subr.bf16.mxu0 0
  %104 = vmatpush1.bf16.msra.mxu0 0
  %105 = vmatprep.subr.bf16.mxu0 0
  %106 = vmatpush1.bf16.msra.mxu0 0
  %107 = vmatprep.subr.bf16.mxu0 0
  %108 = vmatpush1.bf16.msra.mxu0 0
  %109 = vmatprep.subr.bf16.mxu0 0
  %110 = vmatpush1.bf16.msra.mxu0 0
  %111 = vmatprep.mubr.bf16.mxu0 0
  %112 = vmatmul.mubr.bf16.gmra.mrb[0].mxu0 %v74
  %v113 = vpop.f32.mrb[0].mxu0
  %v114 = vadd.f32 %v58, %v113
  %v115 = vpop.f32.mrb[0].mxu0
  %v116 = vpop.f32.mrb[0].mxu0
  %v117 = vadd.f32 %v58, %v116
  %v118 = vpop.f32.mrb[0].mxu0
  %119 = vmatprep.mubr.bf16.mxu0 0
  %120 = vmatmul.mubr.bf16.gmra.mrb[0].mxu0 %v77
  %v121 = vpop.f32.mrb[0].mxu0
  %v122 = vadd.f32 %v58, %v121
  %v123 = vpop.f32.mrb[0].mxu0
  %v124 = vpop.f32.mrb[0].mxu0
  %v125 = vadd.f32 %v58, %v124
  %v126 = vpop.f32.mrb[0].mxu0
  %127 = vdwg.mxu0
  %v128 = vmax.f32 %v114, 0.0
  %v129 = vmax.f32 %v117, 0.0
  %v130 = vmax.f32 %v122, 0.0
  %v131 = vmax.f32 %v125, 0.0
  %v132 = vpack.c.bf16 %v129, %v128
  %v133 = vpack.c.bf16 %v131, %v130
  %v136 = vunpack.c.l.b16 %v132
  %v137 = vunpack.c.h.b16 %v132
  %v138 = vunpack.c.l.b16 %v133
  %v139 = vunpack.c.h.b16 %v133
  %v140 = vpack.c.b16 %v136, %v136
  %v141 = vpack.c.b16 %v137, %v137
  %v142 = vpack.c.b16 %v138, %v138
  %v143 = vpack.c.b16 %v139, %v139
  %vm148 = vcmask 519168
  %149 = vst.msk [vmem:[%s5] sm:$0xf] %vm148, %v140
  %150 = vst.msk [vmem:[%s5 + $0x4] sm:$0xf] %vm148, %v141
  %151 = vst.msk [vmem:[%s5 + $0x8] sm:$0xf] %vm148, %v142
  %152 = vst.msk [vmem:[%s5 + $0xc] sm:$0xf] %vm148, %v143
  // Predicated region
  $region22: #{dgcnn_segment_forward.8} parent=0 // pred_check
    _
  $region23: #{dgcnn_segment_forward.8} parent=0 // pred_check_branch
    %154 = sbr.rel (0) target = $region25
  $region24: #{dgcnn_segment_forward.8} parent=0 // pred_region
    _
  $region25: #{dgcnn_segment_forward.8} parent=0 // pred_fallthru
    _
  // Predicated region
  $region26: #{dgcnn_segment_forward.8} parent=0 // pred_check
    _
  $region27: #{dgcnn_segment_forward.8} parent=0 // pred_check_branch
    %156 = sbr.rel (0) target = $region29
  $region28: #{dgcnn_segment_forward.8} parent=0 // pred_region
    _
  $region29: #{dgcnn_segment_forward.8} parent=0 // pred_fallthru
    _

// kernel: dgcnn_segment_forward.9
$region0: #{dgcnn_segment_forward.9}
  #allocation0 [shape = 'u32[]', space=smem, size = 0x4, offset = 0x4, fixed_abs, tag = 'smem constant byte address 0x4 - core index']
  #allocation1 [shape = 'u32[144,128]{1,0:T(1,128)}', space=vmem, size = 0x12000, scoped, tag = 'internal scratch']
  %s0 = inlined_call_operand.vmem [shape: bf16[2,16,64], index: 0, kind: input, shape index: {}, may-alias: {0,1}]
  %s1 = inlined_call_operand.vmem [shape: bf16[2,16,64], index: 1, kind: input, shape index: {}, may-alias: {0,1}]
  %s2 = inlined_call_operand.vmem [shape: f32[2,16,1], index: 2, kind: input, shape index: {}]
  %s3 = inlined_call_operand.vmem [shape: f32[2,1,16], index: 3, kind: input, shape index: {}]
  %s4 = inlined_call_operand.vmem [shape: f32[2,16,16], index: 4, kind: output, shape index: {}]
  %s5 = sld [smem:[#allocation0]]
  $region49: #{dgcnn_segment_forward.9} parent=0
    _
  %s7 = ssub.s32 1, %s5
  %s8 = scalar_select 0, %s7, %s5
  loop: start=0, step=1, limit=4
  $region2: #{dgcnn_segment_forward.9} parent=0 // loop_pre_header
    _
  $region3: #{dgcnn_segment_forward.9} parent=0 // loop_header
    %s10 = sphi 0, %s14
    %p11 = scmp.ge.s32.totalorder %s10, 4
    %s17 = sphi 0, %s29
    %s18 = sphi 0, %s25
    %s19 = sphi 0, %s17
    %s20 = sphi 0, %s18
    %s21 = sphi 0, %s19
    %s22 = sphi 0, %s20
    %s32 = sphi 0, %s34
    %s35 = sphi 0, %s32
    %s36 = sphi 0, %s35
    %s52 = sphi 0, %s36
    %s60 = sphi 0, %s62
    %s63 = sphi 0, %s60
    %s64 = sphi 0, %s63
    %s80 = sphi 0, %s64
    %s86 = sphi 0, %s88
    %s89 = sphi 0, %s86
    %s90 = sphi 0, %s89
    %s106 = sphi 0, %s90
    %s114 = sphi 0, %s116
    %s117 = sphi 0, %s114
    %s118 = sphi 0, %s117
    %s134 = sphi 0, %s118
    %s142 = sphi 0, %s144
    %s145 = sphi 0, %s142
    %s146 = sphi 0, %s145
    %s162 = sphi 0, %s146
  $region4: #{dgcnn_segment_forward.9} parent=0 // loop_header_branch
    %13 = sbr.rel (%p11) target = $region8
  $region5: #{dgcnn_segment_forward.9} parent=0 // loop_body
    %s15 = ssub.s32 %s10, 1
    %s16 = ssub.s32 %s10, 2
    %s23 = sadd.s32 1, %s18
    %p24 = scmp.ge.s32.totalorder %s23, 1
    %s25 = scalar_select %p24, 0, %s23
    %s26 = sadd.s32 1, %s17
    %s27 = scalar_select %p24, %s26, %s17
    %p28 = scmp.ge.s32.totalorder %s27, 2
    %s29 = scalar_select %p28, 0, %s27
    %s30 = ssub.s32 %s17, %s29
    %p31 = scmp.eq.s32.totalorder %s30, 0
    %s33 = sadd.s32 %s32, 1
    %s34 = scalar_select %p31, %s32, %s33
    %p37 = pneg %p31
    %p38 = scmp.eq.s32.totalorder %s10, 1
    %p39 = por %p37, %p38
    %p40 = scmp.ne.s32.totalorder %s32, %s35
    %p41 = scmp.eq.s32.totalorder %s10, 0
    %p42 = por %p40, %p41
    %p43 = scmp.ne.s32.totalorder %s32, %s35
    %p44 = scmp.eq.s32.totalorder %s15, 1
    %p45 = por %p43, %p44
    %p46 = scmp.ne.s32.totalorder %s35, %s36
    %p47 = scmp.eq.s32.totalorder %s15, 0
    %p48 = por %p46, %p47
    %p49 = scmp.ne.s32.totalorder %s35, %s36
    %p50 = scmp.eq.s32.totalorder %s16, 1
    %p51 = por %p49, %p50
    %p53 = scmp.ne.s32.totalorder %s36, %s52
    %p54 = scmp.eq.s32.totalorder %s16, 0
    %p55 = por %p53, %p54
    %s56 = ssub.s32 %s17, %s29
    %s57 = ssub.s32 %s18, %s25
    %s58 = sor.u32 %s56, %s57
    %p59 = scmp.eq.s32.totalorder %s58, 0
    %s61 = sadd.s32 %s60, 1
    %s62 = scalar_select %p59, %s60, %s61
    %p65 = pneg %p59
    %p66 = scmp.eq.s32.totalorder %s10, 1
    %p67 = por %p65, %p66
    %p68 = scmp.ne.s32.totalorder %s60, %s63
    %p69 = scmp.eq.s32.totalorder %s10, 0
    %p70 = por %p68, %p69
    %p71 = scmp.ne.s32.totalorder %s60, %s63
    %p72 = scmp.eq.s32.totalorder %s15, 1
    %p73 = por %p71, %p72
    %p74 = scmp.ne.s32.totalorder %s63, %s64
    %p75 = scmp.eq.s32.totalorder %s15, 0
    %p76 = por %p74, %p75
    %p77 = scmp.ne.s32.totalorder %s63, %s64
    %p78 = scmp.eq.s32.totalorder %s16, 1
    %p79 = por %p77, %p78
    %p81 = scmp.ne.s32.totalorder %s64, %s80
    %p82 = scmp.eq.s32.totalorder %s16, 0
    %p83 = por %p81, %p82
    %s84 = ssub.s32 %s17, %s29
    %p85 = scmp.eq.s32.totalorder %s84, 0
    %s87 = sadd.s32 %s86, 1
    %s88 = scalar_select %p85, %s86, %s87
    %p91 = pneg %p85
    %p92 = scmp.eq.s32.totalorder %s10, 1
    %p93 = por %p91, %p92
    %p94 = scmp.ne.s32.totalorder %s86, %s89
    %p95 = scmp.eq.s32.totalorder %s10, 0
    %p96 = por %p94, %p95
    %p97 = scmp.ne.s32.totalorder %s86, %s89
    %p98 = scmp.eq.s32.totalorder %s15, 1
    %p99 = por %p97, %p98
    %p100 = scmp.ne.s32.totalorder %s89, %s90
    %p101 = scmp.eq.s32.totalorder %s15, 0
    %p102 = por %p100, %p101
    %p103 = scmp.ne.s32.totalorder %s89, %s90
    %p104 = scmp.eq.s32.totalorder %s16, 1
    %p105 = por %p103, %p104
    %p107 = scmp.ne.s32.totalorder %s90, %s106
    %p108 = scmp.eq.s32.totalorder %s16, 0
    %p109 = por %p107, %p108
    %s110 = ssub.s32 %s17, %s29
    %s111 = ssub.s32 %s18, %s25
    %s112 = sor.u32 %s110, %s111
    %p113 = scmp.eq.s32.totalorder %s112, 0
    %s115 = sadd.s32 %s114, 1
    %s116 = scalar_select %p113, %s114, %s115
    %p119 = pneg %p113
    %p120 = scmp.eq.s32.totalorder %s10, 1
    %p121 = por %p119, %p120
    %p122 = scmp.ne.s32.totalorder %s114, %s117
    %p123 = scmp.eq.s32.totalorder %s10, 0
    %p124 = por %p122, %p123
    %p125 = scmp.ne.s32.totalorder %s114, %s117
    %p126 = scmp.eq.s32.totalorder %s15, 1
    %p127 = por %p125, %p126
    %p128 = scmp.ne.s32.totalorder %s117, %s118
    %p129 = scmp.eq.s32.totalorder %s15, 0
    %p130 = por %p128, %p129
    %p131 = scmp.ne.s32.totalorder %s117, %s118
    %p132 = scmp.eq.s32.totalorder %s16, 1
    %p133 = por %p131, %p132
    %p135 = scmp.ne.s32.totalorder %s118, %s134
    %p136 = scmp.eq.s32.totalorder %s16, 0
    %p137 = por %p135, %p136
    %s138 = ssub.s32 %s17, %s29
    %s139 = ssub.s32 %s18, %s25
    %s140 = sor.u32 %s138, %s139
    %p141 = scmp.eq.s32.totalorder %s140, 0
    %s143 = sadd.s32 %s142, 1
    %s144 = scalar_select %p141, %s142, %s143
    %p147 = pneg %p141
    %p148 = scmp.eq.s32.totalorder %s10, 1
    %p149 = por %p147, %p148
    %p150 = scmp.ne.s32.totalorder %s142, %s145
    %p151 = scmp.eq.s32.totalorder %s10, 0
    %p152 = por %p150, %p151
    %p153 = scmp.ne.s32.totalorder %s142, %s145
    %p154 = scmp.eq.s32.totalorder %s15, 1
    %p155 = por %p153, %p154
    %p156 = scmp.ne.s32.totalorder %s145, %s146
    %p157 = scmp.eq.s32.totalorder %s15, 0
    %p158 = por %p156, %p157
    %p159 = scmp.ne.s32.totalorder %s145, %s146
    %p160 = scmp.eq.s32.totalorder %s16, 1
    %p161 = por %p159, %p160
    %p163 = scmp.ne.s32.totalorder %s146, %s162
    %p164 = scmp.eq.s32.totalorder %s16, 0
    %p165 = por %p163, %p164
    %p166 = scmp.le.s32.totalorder 1, %s10
    %p167 = scmp.lt.s32.totalorder %s10, 3
    %p168 = pnand %p166, %p167
    %p169 = pneg %p168
    // Predicated region
    $region9: #{dgcnn_segment_forward.9} parent=5 // pred_check
      _
    $region10: #{dgcnn_segment_forward.9} parent=5 // pred_check_branch
      %171 = sbr.rel (%p168) target = $region12
    $region11: #{dgcnn_segment_forward.9} parent=5 // pred_region
      %s172 = ssub.s32 %s10, 1
    $region12: #{dgcnn_segment_forward.9} parent=5 // pred_fallthru
      _
    %p173 = scmp.lt.s32.totalorder %s10, 2
    // Predicated region
    $region13: #{dgcnn_segment_forward.9} parent=5 // pred_check
      %p174 = pneg %p173
    $region14: #{dgcnn_segment_forward.9} parent=5 // pred_check_branch
      %176 = sbr.rel (%p174) target = $region16
    $region15: #{dgcnn_segment_forward.9} parent=5 // pred_region
      // Predicated region
      $region17: #{dgcnn_segment_forward.9} parent=15 // pred_check
        %p177 = pneg %p42
      $region18: #{dgcnn_segment_forward.9} parent=15 // pred_check_branch
        %179 = sbr.rel (%p177) target = $region20
      $region19: #{dgcnn_segment_forward.9} parent=15 // pred_region
        %p180 = scmp.lt.s32.totalorder %s17, 1
        %s181 = scalar_select %p180, %s17, 1
        %s182 = smul.addr %s181, 2
        %s183 = smul.addr %s182, 4
        %s184 = scalar_lea.vmem %s0, %s183
      $region20: #{dgcnn_segment_forward.9} parent=15 // pred_fallthru
        _
      // Predicated region
      $region21: #{dgcnn_segment_forward.9} parent=15 // pred_check
        %p185 = pneg %p70
      $region22: #{dgcnn_segment_forward.9} parent=15 // pred_check_branch
        %187 = sbr.rel (%p185) target = $region24
      $region23: #{dgcnn_segment_forward.9} parent=15 // pred_region
        %s188 = smul.u32 2, %s18
        %p189 = scmp.lt.s32.totalorder %s17, 1
        %s190 = scalar_select %p189, %s17, 1
        %p191 = scmp.lt.s32.totalorder %s188, 1
        %s192 = scalar_select %p191, %s188, 1
        %s193 = smul.addr %s190, 2
        %s194 = sadd.s32 %s192, %s193
        %s195 = smul.addr %s194, 4
        %s196 = scalar_lea.vmem %s1, %s195
        %s197 = smul.u32 2, %s18
      $region24: #{dgcnn_segment_forward.9} parent=15 // pred_fallthru
        _
      // Predicated region
      $region25: #{dgcnn_segment_forward.9} parent=15 // pred_check
        %p198 = pneg %p96
      $region26: #{dgcnn_segment_forward.9} parent=15 // pred_check_branch
        %200 = sbr.rel (%p198) target = $region28
      $region27: #{dgcnn_segment_forward.9} parent=15 // pred_region
        %p201 = scmp.lt.s32.totalorder %s17, 1
        %s202 = scalar_select %p201, %s17, 1
        %s203 = smul.addr %s202, 2
        %s204 = smul.addr %s203, 8
        %s205 = scalar_lea.vmem %s2, %s204
      $region28: #{dgcnn_segment_forward.9} parent=15 // pred_fallthru
        _
      // Predicated region
      $region29: #{dgcnn_segment_forward.9} parent=15 // pred_check
        %p206 = pneg %p124
      $region30: #{dgcnn_segment_forward.9} parent=15 // pred_check_branch
        %208 = sbr.rel (%p206) target = $region32
      $region31: #{dgcnn_segment_forward.9} parent=15 // pred_region
        %p209 = scmp.lt.s32.totalorder %s17, 1
        %s210 = scalar_select %p209, %s17, 1
        %p211 = scmp.lt.s32.totalorder %s18, 0
        %s212 = scalar_select %p211, %s18, 0
        %s213 = sadd.s32 %s212, %s210
        %s214 = scalar_lea.vmem %s3, %s213
      $region32: #{dgcnn_segment_forward.9} parent=15 // pred_fallthru
        _
    $region16: #{dgcnn_segment_forward.9} parent=5 // pred_fallthru
      _
    %p215 = scmp.le.s32.totalorder 1, %s10
    %p216 = scmp.lt.s32.totalorder %s10, 3
    %p217 = pnand %p215, %p216
    %p218 = pneg %p217
    // Predicated region
    $region33: #{dgcnn_segment_forward.9} parent=5 // pred_check
      _
    $region34: #{dgcnn_segment_forward.9} parent=5 // pred_check_branch
      %220 = sbr.rel (%p217) target = $region36
    $region35: #{dgcnn_segment_forward.9} parent=5 // pred_region
      %s221 = ssub.s32 %s10, 1
      %p222 = scmp.lt.s32.totalorder %s19, 1
      %s223 = scalar_select %p222, %s19, 1
      %s224 = smul.addr %s223, 2
      %s225 = smul.addr %s224, 4
      %s226 = scalar_lea.vmem %s0, %s225
      %p227 = pneg %p48
      %p228 = pneg %p45
      %s229 = smul.u32 2, %s20
      %p230 = scmp.lt.s32.totalorder %s19, 1
      %s231 = scalar_select %p230, %s19, 1
      %p232 = scmp.lt.s32.totalorder %s229, 1
      %s233 = scalar_select %p232, %s229, 1
      %s234 = smul.addr %s231, 2
      %s235 = sadd.s32 %s233, %s234
      %s236 = smul.addr %s235, 4
      %s237 = scalar_lea.vmem %s1, %s236
      %p238 = pneg %p76
      %p239 = pneg %p73
      %p240 = scmp.lt.s32.totalorder %s19, 1
      %s241 = scalar_select %p240, %s19, 1
      %s242 = smul.addr %s241, 2
      %s243 = smul.addr %s242, 8
      %s244 = scalar_lea.vmem %s2, %s243
      %p245 = pneg %p102
      %p246 = pneg %p99
      %p247 = scmp.lt.s32.totalorder %s19, 1
      %s248 = scalar_select %p247, %s19, 1
      %p249 = scmp.lt.s32.totalorder %s20, 0
      %s250 = scalar_select %p249, %s20, 0
      %s251 = sadd.s32 %s250, %s248
      %s252 = scalar_lea.vmem %s3, %s251
      %p253 = pneg %p130
      %p254 = pneg %p127
      %p255 = pneg %p158
      %p256 = pneg %p155
      %p257 = scmp.lt.s32.totalorder %s19, 1
      %s258 = scalar_select %p257, %s19, 1
      %p259 = scmp.lt.s32.totalorder %s20, 0
      %s260 = scalar_select %p259, %s20, 0
      %s261 = smul.addr %s258, 2
      %s262 = sadd.s32 %s260, %s261
      %s263 = smul.addr %s262, 8
      %s264 = scalar_lea.vmem %s4, %s263
      %p265 = scmp.lt.s32.totalorder %s19, 1
      %s266 = scalar_select %p265, %s19, 1
      %s267 = smul.addr %s266, 2
      %s268 = smul.addr %s267, 4
      %s269 = scalar_lea.vmem %s0, %s268
      %s270 = smul.u32 2, %s20
      %p271 = scmp.lt.s32.totalorder %s19, 1
      %s272 = scalar_select %p271, %s19, 1
      %p273 = scmp.lt.s32.totalorder %s270, 1
      %s274 = scalar_select %p273, %s270, 1
      %s275 = smul.addr %s272, 2
      %s276 = sadd.s32 %s274, %s275
      %s277 = smul.addr %s276, 4
      %s278 = scalar_lea.vmem %s1, %s277
      %s279 = smul.u32 2, %s20
      %p280 = scmp.lt.s32.totalorder %s19, 1
      %s281 = scalar_select %p280, %s19, 1
      %s282 = smul.addr %s281, 2
      %s283 = smul.addr %s282, 8
      %s284 = scalar_lea.vmem %s2, %s283
      %p285 = scmp.lt.s32.totalorder %s19, 1
      %s286 = scalar_select %p285, %s19, 1
      %p287 = scmp.lt.s32.totalorder %s20, 0
      %s288 = scalar_select %p287, %s20, 0
      %s289 = sadd.s32 %s288, %s286
      %s290 = scalar_lea.vmem %s3, %s289
      %p291 = scmp.lt.s32.totalorder %s19, 1
      %s292 = scalar_select %p291, %s19, 1
      %p293 = scmp.lt.s32.totalorder %s20, 0
      %s294 = scalar_select %p293, %s20, 0
      %s295 = smul.addr %s292, 2
      %s296 = sadd.s32 %s294, %s295
      %s297 = smul.addr %s296, 8
      %s298 = scalar_lea.vmem %s4, %s297
      %v300 = vld [vmem:[%s269] sm:$0xf]
      %v301 = vld [vmem:[%s269 + $0x4] sm:$0xf]
      %v302 = vld [vmem:[%s278] sm:$0xf]
      %v303 = vld [vmem:[%s278 + $0x4] sm:$0xf]
      %v306 = vunpack.c.l.b16 %v300
      %v307 = vunpack.c.l.b16 %v301
      %v308 = vpack.c.b16 %v307, %v306
      %v311 = vunpack.c.l.b16 %v302
      %v312 = vunpack.c.l.b16 %v303
      %v313 = vpack.c.b16 %v312, %v311
      %vm314 = vcmask 523264
      %v316 = vsel %vm314, %v308, 0
      %v319 = vsel %vm314, %v313, 0
      %321 = vmatprep.subr.bf16.mxu0 0
      %322 = vmatpush1.bf16.xpose.msra.mxu0 %v319
      %323 = vmatprep.subr.bf16.mxu0 0
      %324 = vmatpush1.bf16.xpose.msra.mxu0 0
      %325 = vmatprep.subr.bf16.mxu0 0
      %326 = vmatpush1.bf16.xpose.msra.mxu0 0
      %327 = vmatprep.subr.bf16.mxu0 0
      %328 = vmatpush1.bf16.xpose.msra.mxu0 0
      %329 = vmatprep.subr.bf16.mxu0 0
      %330 = vmatpush1.bf16.xpose.msra.mxu0 0
      %331 = vmatprep.subr.bf16.mxu0 0
      %332 = vmatpush1.bf16.xpose.msra.mxu0 0
      %333 = vmatprep.subr.bf16.mxu0 0
      %334 = vmatpush1.bf16.xpose.msra.mxu0 0
      %335 = vmatprep.subr.bf16.mxu0 0
      %336 = vmatpush1.bf16.xpose.msra.mxu0 0
      %337 = vmatprep.subr.bf16.mxu0 0
      %338 = vmatpush1.bf16.xpose.msra.mxu0 0
      %339 = vmatprep.subr.bf16.mxu0 0
      %340 = vmatpush1.bf16.xpose.msra.mxu0 0
      %341 = vmatprep.subr.bf16.mxu0 0
      %342 = vmatpush1.bf16.xpose.msra.mxu0 0
      %343 = vmatprep.subr.bf16.mxu0 0
      %344 = vmatpush1.bf16.xpose.msra.mxu0 0
      %345 = vmatprep.subr.bf16.mxu0 0
      %346 = vmatpush1.bf16.xpose.msra.mxu0 0
      %347 = vmatprep.subr.bf16.mxu0 0
      %348 = vmatpush1.bf16.xpose.msra.mxu0 0
      %349 = vmatprep.subr.bf16.mxu0 0
      %350 = vmatpush1.bf16.xpose.msra.mxu0 0
      %351 = vmatprep.subr.bf16.mxu0 0
      %352 = vmatpush1.bf16.xpose.msra.mxu0 0
      %353 = vmatprep.mubr.bf16.mxu0 0
      %354 = vmatmul.mubr.bf16.gmra.mrb[0].mxu0 %v316
      %v355 = vpop.f32.mrb[0].mxu0
      %v356 = vadd.f32 0.0, %v355
      %v357 = vpop.f32.mrb[0].mxu0
      %v358 = vpop.f32.mrb[0].mxu0
      %v359 = vadd.f32 0.0, %v358
      %v360 = vpop.f32.mrb[0].mxu0
      %361 = vdwg.mxu0
      %v362 = vmul.f32 %v356, 2.0
      %v363 = vmul.f32 %v359, 2.0
      %v364 = vld [vmem:[%s284] sm:$0xff]
      %v365 = vld [vmem:[%s284 + $0x8] sm:$0xff]
      %367 = vset.pattern.permute.xlu0 0
      %368 = vperm.xlu0 %367, %v364
      %v369 = vpop.permute.xlu0 %368
      %372 = vset.pattern.permute.xlu0 0
      %373 = vperm.xlu0 %372, %v365
      %v374 = vpop.permute.xlu0 %373
      %v376 = vsub.f32 %v362, %v369
      %v377 = vsub.f32 %v363, %v374
      %v378 = vld [vmem:[%s290] sm:$0x1]
      %v380 = vlaneseq
      %v381 = vshrl.u32 %v380, 7
      %v382 = vsub.s32 0, %v381
      %v383 = vrot.slane %v378, %v382
      %v385 = vsub.f32 %v376, %v383
      %v386 = vsub.f32 %v377, %v383
      %vm387 = vcmask 130048
      %388 = vst.msk [vmem:[%s298] sm:$0xff] %vm387, %v385
      %389 = vst.msk [vmem:[%s298 + $0x8] sm:$0xff] %vm387, %v386
      %p390 = scmp.lt.s32.totalorder %s19, 1
      %s391 = scalar_select %p390, %s19, 1
      %p392 = scmp.lt.s32.totalorder %s20, 0
      %s393 = scalar_select %p392, %s20, 0
      %s394 = smul.addr %s391, 2
      %s395 = sadd.s32 %s393, %s394
      %s396 = smul.addr %s395, 8
      %s397 = scalar_lea.vmem %s4, %s396
      // Predicated region
      $region37: #{dgcnn_segment_forward.9} parent=35 // pred_check
        %p398 = pneg %p155
      $region38: #{dgcnn_segment_forward.9} parent=35 // pred_check_branch
        %400 = sbr.rel (%p398) target = $region40
      $region39: #{dgcnn_segment_forward.9} parent=35 // pred_region
        _
      $region40: #{dgcnn_segment_forward.9} parent=35 // pred_fallthru
        _
    $region36: #{dgcnn_segment_forward.9} parent=5 // pred_fallthru
      _
    %p401 = scmp.le.s32.totalorder 2, %s10
    // Predicated region
    $region41: #{dgcnn_segment_forward.9} parent=5 // pred_check
      %p402 = pneg %p401
    $region42: #{dgcnn_segment_forward.9} parent=5 // pred_check_branch
      %404 = sbr.rel (%p402) target = $region44
    $region43: #{dgcnn_segment_forward.9} parent=5 // pred_region
      %s405 = ssub.s32 %s10, 2
      // Predicated region
      $region45: #{dgcnn_segment_forward.9} parent=43 // pred_check
        %p406 = pneg %p161
      $region46: #{dgcnn_segment_forward.9} parent=43 // pred_check_branch
        %408 = sbr.rel (%p406) target = $region48
      $region47: #{dgcnn_segment_forward.9} parent=43 // pred_region
        %p409 = scmp.lt.s32.totalorder %s21, 1
        %s410 = scalar_select %p409, %s21, 1
        %p411 = scmp.lt.s32.totalorder %s22, 0
        %s412 = scalar_select %p411, %s22, 0
        %s413 = smul.addr %s410, 2
        %s414 = sadd.s32 %s412, %s413
        %s415 = smul.addr %s414, 8
        %s416 = scalar_lea.vmem %s4, %s415
      $region48: #{dgcnn_segment_forward.9} parent=43 // pred_fallthru
        _
    $region44: #{dgcnn_segment_forward.9} parent=5 // pred_fallthru
      _
  $region6: #{dgcnn_segment_forward.9} parent=0 // loop_footer
    %s14 = sadd.s32 1, %s10
  $region7: #{dgcnn_segment_forward.9} parent=0 // loop_footer_branch
    %9 = sbr.rel target = $region3
  $region8: #{dgcnn_segment_forward.9} parent=0 // loop_exit
    _

// kernel: dgcnn_segment_forward.10
$region0: #{dgcnn_segment_forward.10}
  #allocation0 [shape = 'u32[]', space=smem, size = 0x4, offset = 0x4, fixed_abs, tag = 'smem constant byte address 0x4 - core index']
  #allocation1 [shape = 'u32[144,128]{1,0:T(1,128)}', space=vmem, size = 0x12000, scoped, tag = 'internal scratch']
  %s0 = inlined_call_operand.vmem [shape: bf16[2,16,64], index: 0, kind: input, shape index: {}]
  %s1 = inlined_call_operand.vmem [shape: bf16[2,10,16,64], index: 1, kind: input, shape index: {}]
  %s2 = inlined_call_operand.vmem [shape: bf16[1,64,128], index: 2, kind: input, shape index: {}]
  %s3 = inlined_call_operand.vmem [shape: bf16[1,64,128], index: 3, kind: input, shape index: {}]
  %s4 = inlined_call_operand.vmem [shape: f32[1,1,128], index: 4, kind: input, shape index: {}]
  %s5 = inlined_call_operand.vmem [shape: bf16[1,128,64], index: 5, kind: input, shape index: {}]
  %s6 = inlined_call_operand.vmem [shape: f32[1,1,64], index: 6, kind: input, shape index: {}]
  %s7 = inlined_call_operand.vmem [shape: bf16[1,64,64], index: 7, kind: input, shape index: {}]
  %s8 = inlined_call_operand.vmem [shape: f32[1,1,64], index: 8, kind: input, shape index: {}]
  %s9 = inlined_call_operand.vmem [shape: bf16[2,16,64], index: 9, kind: output, shape index: {}]
  %s10 = sld [smem:[#allocation0]]
  $region69: #{dgcnn_segment_forward.10} parent=0
    _
  %s12 = ssub.s32 1, %s10
  %s13 = scalar_select 0, %s12, %s10
  loop: start=0, step=1, limit=4
  $region2: #{dgcnn_segment_forward.10} parent=0 // loop_pre_header
    _
  $region3: #{dgcnn_segment_forward.10} parent=0 // loop_header
    %s15 = sphi 0, %s19
    %p16 = scmp.ge.s32.totalorder %s15, 4
    %s22 = sphi 0, %s34
    %s23 = sphi 0, %s30
    %s24 = sphi 0, %s22
    %s25 = sphi 0, %s23
    %s26 = sphi 0, %s24
    %s27 = sphi 0, %s25
    %s39 = sphi 0, %s41
    %s42 = sphi 0, %s39
    %s43 = sphi 0, %s42
    %s59 = sphi 0, %s43
    %s67 = sphi 0, %s69
    %s70 = sphi 0, %s67
    %s71 = sphi 0, %s70
    %s87 = sphi 0, %s71
    %s91 = sphi 0, %s91
    %s93 = sphi 0, %s91
    %s94 = sphi 0, %s93
    %s108 = sphi 0, %s94
    %s112 = sphi 0, %s112
    %s114 = sphi 0, %s112
    %s115 = sphi 0, %s114
    %s129 = sphi 0, %s115
    %s133 = sphi 0, %s133
    %s135 = sphi 0, %s133
    %s136 = sphi 0, %s135
    %s150 = sphi 0, %s136
    %s154 = sphi 0, %s154
    %s156 = sphi 0, %s154
    %s157 = sphi 0, %s156
    %s171 = sphi 0, %s157
    %s175 = sphi 0, %s175
    %s177 = sphi 0, %s175
    %s178 = sphi 0, %s177
    %s192 = sphi 0, %s178
    %s196 = sphi 0, %s196
    %s198 = sphi 0, %s196
    %s199 = sphi 0, %s198
    %s213 = sphi 0, %s199
    %s217 = sphi 0, %s217
    %s219 = sphi 0, %s217
    %s220 = sphi 0, %s219
    %s234 = sphi 0, %s220
    %s242 = sphi 0, %s244
    %s245 = sphi 0, %s242
    %s246 = sphi 0, %s245
    %s262 = sphi 0, %s246
  $region4: #{dgcnn_segment_forward.10} parent=0 // loop_header_branch
    %18 = sbr.rel (%p16) target = $region8
  $region5: #{dgcnn_segment_forward.10} parent=0 // loop_body
    %s20 = ssub.s32 %s15, 1
    %s21 = ssub.s32 %s15, 2
    %s28 = sadd.s32 1, %s23
    %p29 = scmp.ge.s32.totalorder %s28, 1
    %s30 = scalar_select %p29, 0, %s28
    %s31 = sadd.s32 1, %s22
    %s32 = scalar_select %p29, %s31, %s22
    %p33 = scmp.ge.s32.totalorder %s32, 2
    %s34 = scalar_select %p33, 0, %s32
    %s35 = ssub.s32 %s22, %s34
    %s36 = ssub.s32 %s23, %s30
    %s37 = sor.u32 %s35, %s36
    %p38 = scmp.eq.s32.totalorder %s37, 0
    %s40 = sadd.s32 %s39, 1
    %s41 = scalar_select %p38, %s39, %s40
    %p44 = pneg %p38
    %p45 = scmp.eq.s32.totalorder %s15, 1
    %p46 = por %p44, %p45
    %p47 = scmp.ne.s32.totalorder %s39, %s42
    %p48 = scmp.eq.s32.totalorder %s15, 0
    %p49 = por %p47, %p48
    %p50 = scmp.ne.s32.totalorder %s39, %s42
    %p51 = scmp.eq.s32.totalorder %s20, 1
    %p52 = por %p50, %p51
    %p53 = scmp.ne.s32.totalorder %s42, %s43
    %p54 = scmp.eq.s32.totalorder %s20, 0
    %p55 = por %p53, %p54
    %p56 = scmp.ne.s32.totalorder %s42, %s43
    %p57 = scmp.eq.s32.totalorder %s21, 1
    %p58 = por %p56, %p57
    %p60 = scmp.ne.s32.totalorder %s43, %s59
    %p61 = scmp.eq.s32.totalorder %s21, 0
    %p62 = por %p60, %p61
    %s63 = ssub.s32 %s22, %s34
    %s64 = ssub.s32 %s23, %s30
    %s65 = sor.u32 %s63, %s64
    %p66 = scmp.eq.s32.totalorder %s65, 0
    %s68 = sadd.s32 %s67, 1
    %s69 = scalar_select %p66, %s67, %s68
    %p72 = pneg %p66
    %p73 = scmp.eq.s32.totalorder %s15, 1
    %p74 = por %p72, %p73
    %p75 = scmp.ne.s32.totalorder %s67, %s70
    %p76 = scmp.eq.s32.totalorder %s15, 0
    %p77 = por %p75, %p76
    %p78 = scmp.ne.s32.totalorder %s67, %s70
    %p79 = scmp.eq.s32.totalorder %s20, 1
    %p80 = por %p78, %p79
    %p81 = scmp.ne.s32.totalorder %s70, %s71
    %p82 = scmp.eq.s32.totalorder %s20, 0
    %p83 = por %p81, %p82
    %p84 = scmp.ne.s32.totalorder %s70, %s71
    %p85 = scmp.eq.s32.totalorder %s21, 1
    %p86 = por %p84, %p85
    %p88 = scmp.ne.s32.totalorder %s71, %s87
    %p89 = scmp.eq.s32.totalorder %s21, 0
    %p90 = por %p88, %p89
    %s92 = sadd.s32 %s91, 1
    %p95 = scmp.eq.s32.totalorder %s15, 1
    %p96 = scmp.ne.s32.totalorder %s91, %s93
    %p97 = scmp.eq.s32.totalorder %s15, 0
    %p98 = por %p96, %p97
    %p99 = scmp.ne.s32.totalorder %s91, %s93
    %p100 = scmp.eq.s32.totalorder %s20, 1
    %p101 = por %p99, %p100
    %p102 = scmp.ne.s32.totalorder %s93, %s94
    %p103 = scmp.eq.s32.totalorder %s20, 0
    %p104 = por %p102, %p103
    %p105 = scmp.ne.s32.totalorder %s93, %s94
    %p106 = scmp.eq.s32.totalorder %s21, 1
    %p107 = por %p105, %p106
    %p109 = scmp.ne.s32.totalorder %s94, %s108
    %p110 = scmp.eq.s32.totalorder %s21, 0
    %p111 = por %p109, %p110
    %s113 = sadd.s32 %s112, 1
    %p116 = scmp.eq.s32.totalorder %s15, 1
    %p117 = scmp.ne.s32.totalorder %s112, %s114
    %p118 = scmp.eq.s32.totalorder %s15, 0
    %p119 = por %p117, %p118
    %p120 = scmp.ne.s32.totalorder %s112, %s114
    %p121 = scmp.eq.s32.totalorder %s20, 1
    %p122 = por %p120, %p121
    %p123 = scmp.ne.s32.totalorder %s114, %s115
    %p124 = scmp.eq.s32.totalorder %s20, 0
    %p125 = por %p123, %p124
    %p126 = scmp.ne.s32.totalorder %s114, %s115
    %p127 = scmp.eq.s32.totalorder %s21, 1
    %p128 = por %p126, %p127
    %p130 = scmp.ne.s32.totalorder %s115, %s129
    %p131 = scmp.eq.s32.totalorder %s21, 0
    %p132 = por %p130, %p131
    %s134 = sadd.s32 %s133, 1
    %p137 = scmp.eq.s32.totalorder %s15, 1
    %p138 = scmp.ne.s32.totalorder %s133, %s135
    %p139 = scmp.eq.s32.totalorder %s15, 0
    %p140 = por %p138, %p139
    %p141 = scmp.ne.s32.totalorder %s133, %s135
    %p142 = scmp.eq.s32.totalorder %s20, 1
    %p143 = por %p141, %p142
    %p144 = scmp.ne.s32.totalorder %s135, %s136
    %p145 = scmp.eq.s32.totalorder %s20, 0
    %p146 = por %p144, %p145
    %p147 = scmp.ne.s32.totalorder %s135, %s136
    %p148 = scmp.eq.s32.totalorder %s21, 1
    %p149 = por %p147, %p148
    %p151 = scmp.ne.s32.totalorder %s136, %s150
    %p152 = scmp.eq.s32.totalorder %s21, 0
    %p153 = por %p151, %p152
    %s155 = sadd.s32 %s154, 1
    %p158 = scmp.eq.s32.totalorder %s15, 1
    %p159 = scmp.ne.s32.totalorder %s154, %s156
    %p160 = scmp.eq.s32.totalorder %s15, 0
    %p161 = por %p159, %p160
    %p162 = scmp.ne.s32.totalorder %s154, %s156
    %p163 = scmp.eq.s32.totalorder %s20, 1
    %p164 = por %p162, %p163
    %p165 = scmp.ne.s32.totalorder %s156, %s157
    %p166 = scmp.eq.s32.totalorder %s20, 0
    %p167 = por %p165, %p166
    %p168 = scmp.ne.s32.totalorder %s156, %s157
    %p169 = scmp.eq.s32.totalorder %s21, 1
    %p170 = por %p168, %p169
    %p172 = scmp.ne.s32.totalorder %s157, %s171
    %p173 = scmp.eq.s32.totalorder %s21, 0
    %p174 = por %p172, %p173
    %s176 = sadd.s32 %s175, 1
    %p179 = scmp.eq.s32.totalorder %s15, 1
    %p180 = scmp.ne.s32.totalorder %s175, %s177
    %p181 = scmp.eq.s32.totalorder %s15, 0
    %p182 = por %p180, %p181
    %p183 = scmp.ne.s32.totalorder %s175, %s177
    %p184 = scmp.eq.s32.totalorder %s20, 1
    %p185 = por %p183, %p184
    %p186 = scmp.ne.s32.totalorder %s177, %s178
    %p187 = scmp.eq.s32.totalorder %s20, 0
    %p188 = por %p186, %p187
    %p189 = scmp.ne.s32.totalorder %s177, %s178
    %p190 = scmp.eq.s32.totalorder %s21, 1
    %p191 = por %p189, %p190
    %p193 = scmp.ne.s32.totalorder %s178, %s192
    %p194 = scmp.eq.s32.totalorder %s21, 0
    %p195 = por %p193, %p194
    %s197 = sadd.s32 %s196, 1
    %p200 = scmp.eq.s32.totalorder %s15, 1
    %p201 = scmp.ne.s32.totalorder %s196, %s198
    %p202 = scmp.eq.s32.totalorder %s15, 0
    %p203 = por %p201, %p202
    %p204 = scmp.ne.s32.totalorder %s196, %s198
    %p205 = scmp.eq.s32.totalorder %s20, 1
    %p206 = por %p204, %p205
    %p207 = scmp.ne.s32.totalorder %s198, %s199
    %p208 = scmp.eq.s32.totalorder %s20, 0
    %p209 = por %p207, %p208
    %p210 = scmp.ne.s32.totalorder %s198, %s199
    %p211 = scmp.eq.s32.totalorder %s21, 1
    %p212 = por %p210, %p211
    %p214 = scmp.ne.s32.totalorder %s199, %s213
    %p215 = scmp.eq.s32.totalorder %s21, 0
    %p216 = por %p214, %p215
    %s218 = sadd.s32 %s217, 1
    %p221 = scmp.eq.s32.totalorder %s15, 1
    %p222 = scmp.ne.s32.totalorder %s217, %s219
    %p223 = scmp.eq.s32.totalorder %s15, 0
    %p224 = por %p222, %p223
    %p225 = scmp.ne.s32.totalorder %s217, %s219
    %p226 = scmp.eq.s32.totalorder %s20, 1
    %p227 = por %p225, %p226
    %p228 = scmp.ne.s32.totalorder %s219, %s220
    %p229 = scmp.eq.s32.totalorder %s20, 0
    %p230 = por %p228, %p229
    %p231 = scmp.ne.s32.totalorder %s219, %s220
    %p232 = scmp.eq.s32.totalorder %s21, 1
    %p233 = por %p231, %p232
    %p235 = scmp.ne.s32.totalorder %s220, %s234
    %p236 = scmp.eq.s32.totalorder %s21, 0
    %p237 = por %p235, %p236
    %s238 = ssub.s32 %s22, %s34
    %s239 = ssub.s32 %s23, %s30
    %s240 = sor.u32 %s238, %s239
    %p241 = scmp.eq.s32.totalorder %s240, 0
    %s243 = sadd.s32 %s242, 1
    %s244 = scalar_select %p241, %s242, %s243
    %p247 = pneg %p241
    %p248 = scmp.eq.s32.totalorder %s15, 1
    %p249 = por %p247, %p248
    %p250 = scmp.ne.s32.totalorder %s242, %s245
    %p251 = scmp.eq.s32.totalorder %s15, 0
    %p252 = por %p250, %p251
    %p253 = scmp.ne.s32.totalorder %s242, %s245
    %p254 = scmp.eq.s32.totalorder %s20, 1
    %p255 = por %p253, %p254
    %p256 = scmp.ne.s32.totalorder %s245, %s246
    %p257 = scmp.eq.s32.totalorder %s20, 0
    %p258 = por %p256, %p257
    %p259 = scmp.ne.s32.totalorder %s245, %s246
    %p260 = scmp.eq.s32.totalorder %s21, 1
    %p261 = por %p259, %p260
    %p263 = scmp.ne.s32.totalorder %s246, %s262
    %p264 = scmp.eq.s32.totalorder %s21, 0
    %p265 = por %p263, %p264
    %p266 = scmp.le.s32.totalorder 1, %s15
    %p267 = scmp.lt.s32.totalorder %s15, 3
    %p268 = pnand %p266, %p267
    %p269 = pneg %p268
    // Predicated region
    $region9: #{dgcnn_segment_forward.10} parent=5 // pred_check
      _
    $region10: #{dgcnn_segment_forward.10} parent=5 // pred_check_branch
      %271 = sbr.rel (%p268) target = $region12
    $region11: #{dgcnn_segment_forward.10} parent=5 // pred_region
      %s272 = ssub.s32 %s15, 1
      // Predicated region
      $region13: #{dgcnn_segment_forward.10} parent=11 // pred_check
        %p273 = pneg %p104
      $region14: #{dgcnn_segment_forward.10} parent=11 // pred_check_branch
        %275 = sbr.rel (%p273) target = $region16
      $region15: #{dgcnn_segment_forward.10} parent=11 // pred_region
        _
      $region16: #{dgcnn_segment_forward.10} parent=11 // pred_fallthru
        _
      // Predicated region
      $region17: #{dgcnn_segment_forward.10} parent=11 // pred_check
        %p276 = pneg %p125
      $region18: #{dgcnn_segment_forward.10} parent=11 // pred_check_branch
        %278 = sbr.rel (%p276) target = $region20
      $region19: #{dgcnn_segment_forward.10} parent=11 // pred_region
        _
      $region20: #{dgcnn_segment_forward.10} parent=11 // pred_fallthru
        _
      // Predicated region
      $region21: #{dgcnn_segment_forward.10} parent=11 // pred_check
        %p279 = pneg %p146
      $region22: #{dgcnn_segment_forward.10} parent=11 // pred_check_branch
        %281 = sbr.rel (%p279) target = $region24
      $region23: #{dgcnn_segment_forward.10} parent=11 // pred_region
        _
      $region24: #{dgcnn_segment_forward.10} parent=11 // pred_fallthru
        _
      // Predicated region
      $region25: #{dgcnn_segment_forward.10} parent=11 // pred_check
        %p282 = pneg %p167
      $region26: #{dgcnn_segment_forward.10} parent=11 // pred_check_branch
        %284 = sbr.rel (%p282) target = $region28
      $region27: #{dgcnn_segment_forward.10} parent=11 // pred_region
        _
      $region28: #{dgcnn_segment_forward.10} parent=11 // pred_fallthru
        _
      // Predicated region
      $region29: #{dgcnn_segment_forward.10} parent=11 // pred_check
        %p285 = pneg %p188
      $region30: #{dgcnn_segment_forward.10} parent=11 // pred_check_branch
        %287 = sbr.rel (%p285) target = $region32
      $region31: #{dgcnn_segment_forward.10} parent=11 // pred_region
        _
      $region32: #{dgcnn_segment_forward.10} parent=11 // pred_fallthru
        _
      // Predicated region
      $region33: #{dgcnn_segment_forward.10} parent=11 // pred_check
        %p288 = pneg %p209
      $region34: #{dgcnn_segment_forward.10} parent=11 // pred_check_branch
        %290 = sbr.rel (%p288) target = $region36
      $region35: #{dgcnn_segment_forward.10} parent=11 // pred_region
        _
      $region36: #{dgcnn_segment_forward.10} parent=11 // pred_fallthru
        _
      // Predicated region
      $region37: #{dgcnn_segment_forward.10} parent=11 // pred_check
        %p291 = pneg %p230
      $region38: #{dgcnn_segment_forward.10} parent=11 // pred_check_branch
        %293 = sbr.rel (%p291) target = $region40
      $region39: #{dgcnn_segment_forward.10} parent=11 // pred_region
        _
      $region40: #{dgcnn_segment_forward.10} parent=11 // pred_fallthru
        _
    $region12: #{dgcnn_segment_forward.10} parent=5 // pred_fallthru
      _
    %p294 = scmp.lt.s32.totalorder %s15, 2
    // Predicated region
    $region41: #{dgcnn_segment_forward.10} parent=5 // pred_check
      %p295 = pneg %p294
    $region42: #{dgcnn_segment_forward.10} parent=5 // pred_check_branch
      %297 = sbr.rel (%p295) target = $region44
    $region43: #{dgcnn_segment_forward.10} parent=5 // pred_region
      // Predicated region
      $region45: #{dgcnn_segment_forward.10} parent=43 // pred_check
        %p298 = pneg %p49
      $region46: #{dgcnn_segment_forward.10} parent=43 // pred_check_branch
        %300 = sbr.rel (%p298) target = $region48
      $region47: #{dgcnn_segment_forward.10} parent=43 // pred_region
        %s301 = smul.u32 2, %s23
        %p302 = scmp.lt.s32.totalorder %s22, 1
        %s303 = scalar_select %p302, %s22, 1
        %p304 = scmp.lt.s32.totalorder %s301, 1
        %s305 = scalar_select %p304, %s301, 1
        %s306 = smul.addr %s303, 2
        %s307 = sadd.s32 %s305, %s306
        %s308 = smul.addr %s307, 4
        %s309 = scalar_lea.vmem %s0, %s308
        %s310 = smul.u32 2, %s23
      $region48: #{dgcnn_segment_forward.10} parent=43 // pred_fallthru
        _
      // Predicated region
      $region49: #{dgcnn_segment_forward.10} parent=43 // pred_check
        %p311 = pneg %p77
      $region50: #{dgcnn_segment_forward.10} parent=43 // pred_check_branch
        %313 = sbr.rel (%p311) target = $region52
      $region51: #{dgcnn_segment_forward.10} parent=43 // pred_region
        %s314 = smul.u32 2, %s23
        %p315 = scmp.lt.s32.totalorder %s22, 1
        %s316 = scalar_select %p315, %s22, 1
        %p317 = scmp.lt.s32.totalorder %s314, 1
        %s318 = scalar_select %p317, %s314, 1
        %s319 = smul.addr %s316, 20
        %s320 = sadd.s32 %s318, %s319
        %s321 = smul.addr %s320, 4
        %s322 = scalar_lea.vmem %s1, %s321
        %s323 = smul.u32 2, %s23
      $region52: #{dgcnn_segment_forward.10} parent=43 // pred_fallthru
        _
    $region44: #{dgcnn_segment_forward.10} parent=5 // pred_fallthru
      _
    %p324 = scmp.le.s32.totalorder 1, %s15
    %p325 = scmp.lt.s32.totalorder %s15, 3
    %p326 = pnand %p324, %p325
    %p327 = pneg %p326
    // Predicated region
    $region53: #{dgcnn_segment_forward.10} parent=5 // pred_check
      _
    $region54: #{dgcnn_segment_forward.10} parent=5 // pred_check_branch
      %329 = sbr.rel (%p326) target = $region56
    $region55: #{dgcnn_segment_forward.10} parent=5 // pred_region
      %s330 = ssub.s32 %s15, 1
      %s331 = smul.u32 2, %s25
      %p332 = scmp.lt.s32.totalorder %s24, 1
      %s333 = scalar_select %p332, %s24, 1
      %p334 = scmp.lt.s32.totalorder %s331, 1
      %s335 = scalar_select %p334, %s331, 1
      %s336 = smul.addr %s333, 2
      %s337 = sadd.s32 %s335, %s336
      %s338 = smul.addr %s337, 4
      %s339 = scalar_lea.vmem %s0, %s338
      %p340 = pneg %p55
      %p341 = pneg %p52
      %s342 = smul.u32 2, %s25
      %p343 = scmp.lt.s32.totalorder %s24, 1
      %s344 = scalar_select %p343, %s24, 1
      %p345 = scmp.lt.s32.totalorder %s342, 1
      %s346 = scalar_select %p345, %s342, 1
      %s347 = smul.addr %s344, 20
      %s348 = sadd.s32 %s346, %s347
      %s349 = smul.addr %s348, 4
      %s350 = scalar_lea.vmem %s1, %s349
      %p351 = pneg %p83
      %p352 = pneg %p80
      %p353 = pneg %p104
      %p354 = pneg %p101
      %p355 = pneg %p125
      %p356 = pneg %p122
      %p357 = pneg %p146
      %p358 = pneg %p143
      %p359 = pneg %p167
      %p360 = pneg %p164
      %p361 = pneg %p188
      %p362 = pneg %p185
      %p363 = pneg %p209
      %p364 = pneg %p206
      %p365 = pneg %p230
      %p366 = pneg %p227
      %p367 = pneg %p258
      %p368 = pneg %p255
      %s369 = smul.u32 2, %s25
      %p370 = scmp.lt.s32.totalorder %s24, 1
      %s371 = scalar_select %p370, %s24, 1
      %p372 = scmp.lt.s32.totalorder %s369, 1
      %s373 = scalar_select %p372, %s369, 1
      %s374 = smul.addr %s371, 2
      %s375 = sadd.s32 %s373, %s374
      %s376 = smul.addr %s375, 4
      %s377 = scalar_lea.vmem %s9, %s376
      %s378 = smul.u32 2, %s25
      %p379 = scmp.lt.s32.totalorder %s24, 1
      %s380 = scalar_select %p379, %s24, 1
      %p381 = scmp.lt.s32.totalorder %s378, 1
      %s382 = scalar_select %p381, %s378, 1
      %s383 = smul.addr %s380, 2
      %s384 = sadd.s32 %s382, %s383
      %s385 = smul.addr %s384, 4
      %s386 = scalar_lea.vmem %s0, %s385
      %s387 = smul.u32 2, %s25
      %s388 = smul.u32 2, %s25
      %p389 = scmp.lt.s32.totalorder %s24, 1
      %s390 = scalar_select %p389, %s24, 1
      %p391 = scmp.lt.s32.totalorder %s388, 1
      %s392 = scalar_select %p391, %s388, 1
      %s393 = smul.addr %s390, 20
      %s394 = sadd.s32 %s392, %s393
      %s395 = smul.addr %s394, 4
      %s396 = scalar_lea.vmem %s1, %s395
      %s397 = smul.u32 2, %s25
      %s398 = smul.u32 2, %s25
      %p399 = scmp.lt.s32.totalorder %s24, 1
      %s400 = scalar_select %p399, %s24, 1
      %p401 = scmp.lt.s32.totalorder %s398, 1
      %s402 = scalar_select %p401, %s398, 1
      %s403 = smul.addr %s400, 2
      %s404 = sadd.s32 %s402, %s403
      %s405 = smul.addr %s404, 4
      %s406 = scalar_lea.vmem %s9, %s405
      %s407 = smul.u32 2, %s25
      %v409 = vld [vmem:[%s386] sm:$0xf]
      %v410 = vld [vmem:[%s386 + $0x4] sm:$0xf]
      %v411 = vld [vmem:[%s396] sm:$0xf]
      %v412 = vld [vmem:[%s396 + $0x4] sm:$0xf]
      %v413 = vld [vmem:[%s396 + $0x8] sm:$0xf]
      %v414 = vld [vmem:[%s396 + $0xc] sm:$0xf]
      %v415 = vld [vmem:[%s396 + $0x10] sm:$0xf]
      %v416 = vld [vmem:[%s396 + $0x14] sm:$0xf]
      %v417 = vld [vmem:[%s396 + $0x18] sm:$0xf]
      %v418 = vld [vmem:[%s396 + $0x1c] sm:$0xf]
      %v419 = vld [vmem:[%s396 + $0x20] sm:$0xf]
      %v420 = vld [vmem:[%s396 + $0x24] sm:$0xf]
      %v421 = vld [vmem:[%s396 + $0x28] sm:$0xf]
      %v422 = vld [vmem:[%s396 + $0x2c] sm:$0xf]
      %v423 = vld [vmem:[%s396 + $0x30] sm:$0xf]
      %v424 = vld [vmem:[%s396 + $0x34] sm:$0xf]
      %v425 = vld [vmem:[%s396 + $0x38] sm:$0xf]
      %v426 = vld [vmem:[%s396 + $0x3c] sm:$0xf]
      %v427 = vld [vmem:[%s396 + $0x40] sm:$0xf]
      %v428 = vld [vmem:[%s396 + $0x44] sm:$0xf]
      %v429 = vld [vmem:[%s396 + $0x48] sm:$0xf]
      %v430 = vld [vmem:[%s396 + $0x4c] sm:$0xf]
      %v431 = vsub.bf16 %v411, %v409
      %v432 = vsub.bf16 %v412, %v410
      %v433 = vsub.bf16 %v413, %v409
      %v434 = vsub.bf16 %v414, %v410
      %v435 = vsub.bf16 %v415, %v409
      %v436 = vsub.bf16 %v416, %v410
      %v437 = vsub.bf16 %v417, %v409
      %v438 = vsub.bf16 %v418, %v410
      %v439 = vsub.bf16 %v419, %v409
      %v440 = vsub.bf16 %v420, %v410
      %v441 = vsub.bf16 %v421, %v409
      %v442 = vsub.bf16 %v422, %v410
      %v443 = vsub.bf16 %v423, %v409
      %v444 = vsub.bf16 %v424, %v410
      %v445 = vsub.bf16 %v425, %v409
      %v446 = vsub.bf16 %v426, %v410
      %v447 = vsub.bf16 %v427, %v409
      %v448 = vsub.bf16 %v428, %v410
      %v449 = vsub.bf16 %v429, %v409
      %v450 = vsub.bf16 %v430, %v410
      %v451 = vld [vmem:[%s2] sm:$0xf]
      %v452 = vld [vmem:[%s2 + $0x4] sm:$0xf]
      %v453 = vld [vmem:[%s2 + $0x8] sm:$0xf]
      %v454 = vld [vmem:[%s2 + $0xc] sm:$0xf]
      %v455 = vld [vmem:[%s2 + $0x10] sm:$0xf]
      %v456 = vld [vmem:[%s2 + $0x14] sm:$0xf]
      %v457 = vld [vmem:[%s2 + $0x18] sm:$0xf]
      %v458 = vld [vmem:[%s2 + $0x1c] sm:$0xf]
      %v459 = vld [vmem:[%s3] sm:$0xf]
      %v460 = vld [vmem:[%s3 + $0x4] sm:$0xf]
      %v461 = vld [vmem:[%s3 + $0x8] sm:$0xf]
      %v462 = vld [vmem:[%s3 + $0xc] sm:$0xf]
      %v463 = vld [vmem:[%s3 + $0x10] sm:$0xf]
      %v464 = vld [vmem:[%s3 + $0x14] sm:$0xf]
      %v465 = vld [vmem:[%s3 + $0x18] sm:$0xf]
      %v466 = vld [vmem:[%s3 + $0x1c] sm:$0xf]
      %v467 = vld [vmem:[%s4] sm:$0x1]
      %v468 = vld [vmem:[%s5] sm:$0xf]
      %v469 = vld [vmem:[%s5 + $0x4] sm:$0xf]
      %v470 = vld [vmem:[%s5 + $0x8] sm:$0xf]
      %v471 = vld [vmem:[%s5 + $0xc] sm:$0xf]
      %v472 = vld [vmem:[%s5 + $0x10] sm:$0xf]
      %v473 = vld [vmem:[%s5 + $0x14] sm:$0xf]
      %v474 = vld [vmem:[%s5 + $0x18] sm:$0xf]
      %v475 = vld [vmem:[%s5 + $0x1c] sm:$0xf]
      %v476 = vld [vmem:[%s5 + $0x20] sm:$0xf]
      %v477 = vld [vmem:[%s5 + $0x24] sm:$0xf]
      %v478 = vld [vmem:[%s5 + $0x28] sm:$0xf]
      %v479 = vld [vmem:[%s5 + $0x2c] sm:$0xf]
      %v480 = vld [vmem:[%s5 + $0x30] sm:$0xf]
      %v481 = vld [vmem:[%s5 + $0x34] sm:$0xf]
      %v482 = vld [vmem:[%s5 + $0x38] sm:$0xf]
      %v483 = vld [vmem:[%s5 + $0x3c] sm:$0xf]
      %v484 = vld [vmem:[%s6] sm:$0x1]
      %v485 = vld [vmem:[%s7] sm:$0xf]
      %v486 = vld [vmem:[%s7 + $0x4] sm:$0xf]
      %v487 = vld [vmem:[%s7 + $0x8] sm:$0xf]
      %v488 = vld [vmem:[%s7 + $0xc] sm:$0xf]
      %v489 = vld [vmem:[%s7 + $0x10] sm:$0xf]
      %v490 = vld [vmem:[%s7 + $0x14] sm:$0xf]
      %v491 = vld [vmem:[%s7 + $0x18] sm:$0xf]
      %v492 = vld [vmem:[%s7 + $0x1c] sm:$0xf]
      %v493 = vld [vmem:[%s8] sm:$0x1]
      %v495 = vlaneseq
      %v496 = vshrl.u32 %v495, 7
      %v497 = vsub.s32 0, %v496
      %v498 = vrot.slane %v467, %v497
      %v502 = vunpack.c.l.b16 %v409
      %v503 = vunpack.c.l.b16 %v410
      %v504 = vpack.c.b16 %v503, %v502
      %v513 = vunpack.c.l.b16 %v451
      %v514 = vunpack.c.l.b16 %v452
      %v515 = vunpack.c.l.b16 %v453
      %v516 = vunpack.c.l.b16 %v454
      %v517 = vunpack.c.l.b16 %v455
      %v518 = vunpack.c.l.b16 %v456
      %v519 = vunpack.c.l.b16 %v457
      %v520 = vunpack.c.l.b16 %v458
      %v521 = vpack.c.b16 %v514, %v513
      %v522 = vpack.c.b16 %v516, %v515
      %v523 = vpack.c.b16 %v518, %v517
      %v524 = vpack.c.b16 %v520, %v519
      %vm529 = vcmask 523264
      %v531 = vsel %vm529, %v504, 0
      %533 = vmatprep.subr.bf16.mxu0 0
      %534 = vmatpush1.bf16.msra.mxu0 %v521
      %535 = vmatprep.subr.bf16.mxu0 0
      %536 = vmatpush1.bf16.msra.mxu0 %v522
      %537 = vmatprep.subr.bf16.mxu0 0
      %538 = vmatpush1.bf16.msra.mxu0 %v523
      %539 = vmatprep.subr.bf16.mxu0 0
      %540 = vmatpush1.bf16.msra.mxu0 %v524
      %541 = vmatprep.subr.bf16.mxu0 0
      %542 = vmatpush1.bf16.msra.mxu0 0
      %543 = vmatprep.subr.bf16.mxu0 0
      %544 = vmatpush1.bf16.msra.mxu0 0
      %545 = vmatprep.subr.bf16.mxu0 0
      %546 = vmatpush1.bf16.msra.mxu0 0
      %547 = vmatprep.subr.bf16.mxu0 0
      %548 = vmatpush1.bf16.msra.mxu0 0
      %549 = vmatprep.subr.bf16.mxu0 0
      %550 = vmatpush1.bf16.msra.mxu0 0
      %551 = vmatprep.subr.bf16.mxu0 0
      %552 = vmatpush1.bf16.msra.mxu0 0
      %553 = vmatprep.subr.bf16.mxu0 0
      %554 = vmatpush1.bf16.msra.mxu0 0
      %555 = vmatprep.subr.bf16.mxu0 0
      %556 = vmatpush1.bf16.msra.mxu0 0
      %557 = vmatprep.subr.bf16.mxu0 0
      %558 = vmatpush1.bf16.msra.mxu0 0
      %559 = vmatprep.subr.bf16.mxu0 0
      %560 = vmatpush1.bf16.msra.mxu0 0
      %561 = vmatprep.subr.bf16.mxu0 0
      %562 = vmatpush1.bf16.msra.mxu0 0
      %563 = vmatprep.subr.bf16.mxu0 0
      %564 = vmatpush1.bf16.msra.mxu0 0
      %565 = vmatprep.mubr.bf16.mxu0 0
      %566 = vmatmul.mubr.bf16.gmra.mrb[0].mxu0 %v531
      %v567 = vpop.f32.mrb[0].mxu0
      %v568 = vadd.f32 %v498, %v567
      %v569 = vpop.f32.mrb[0].mxu0
      %v570 = vpop.f32.mrb[0].mxu0
      %v571 = vadd.f32 %v498, %v570
      %v572 = vpop.f32.mrb[0].mxu0
      %573 = vdwg.mxu0
      %v594 = vunpack.c.l.b16 %v431
      %v595 = vunpack.c.l.b16 %v432
      %v596 = vunpack.c.l.b16 %v433
      %v597 = vunpack.c.l.b16 %v434
      %v598 = vunpack.c.l.b16 %v435
      %v599 = vunpack.c.l.b16 %v436
      %v600 = vunpack.c.l.b16 %v437
      %v601 = vunpack.c.l.b16 %v438
      %v602 = vunpack.c.l.b16 %v439
      %v603 = vunpack.c.l.b16 %v440
      %v604 = vunpack.c.l.b16 %v441
      %v605 = vunpack.c.l.b16 %v442
      %v606 = vunpack.c.l.b16 %v443
      %v607 = vunpack.c.l.b16 %v444
      %v608 = vunpack.c.l.b16 %v445
      %v609 = vunpack.c.l.b16 %v446
      %v610 = vunpack.c.l.b16 %v447
      %v611 = vunpack.c.l.b16 %v448
      %v612 = vunpack.c.l.b16 %v449
      %v613 = vunpack.c.l.b16 %v450
      %v614 = vpack.c.b16 %v595, %v594
      %v615 = vpack.c.b16 %v597, %v596
      %v616 = vpack.c.b16 %v599, %v598
      %v617 = vpack.c.b16 %v601, %v600
      %v618 = vpack.c.b16 %v603, %v602
      %v619 = vpack.c.b16 %v605, %v604
      %v620 = vpack.c.b16 %v607, %v606
      %v621 = vpack.c.b16 %v609, %v608
      %v622 = vpack.c.b16 %v611, %v610
      %v623 = vpack.c.b16 %v613, %v612
      %v632 = vunpack.c.l.b16 %v459
      %v633 = vunpack.c.l.b16 %v460
      %v634 = vunpack.c.l.b16 %v461
      %v635 = vunpack.c.l.b16 %v462
      %v636 = vunpack.c.l.b16 %v463
      %v637 = vunpack.c.l.b16 %v464
      %v638 = vunpack.c.l.b16 %v465
      %v639 = vunpack.c.l.b16 %v466
      %v640 = vpack.c.b16 %v633, %v632
      %v641 = vpack.c.b16 %v635, %v634
      %v642 = vpack.c.b16 %v637, %v636
      %v643 = vpack.c.b16 %v639, %v638
      %v649 = vsel %vm529, %v614, 0
      %v652 = vsel %vm529, %v615, 0
      %v655 = vsel %vm529, %v616, 0
      %v658 = vsel %vm529, %v617, 0
      %v661 = vsel %vm529, %v618, 0
      %v664 = vsel %vm529, %v619, 0
      %v667 = vsel %vm529, %v620, 0
      %v670 = vsel %vm529, %v621, 0
      %v673 = vsel %vm529, %v622, 0
      %v676 = vsel %vm529, %v623, 0
      %678 = vmatprep.subr.bf16.mxu0 0
      %679 = vmatpush1.bf16.msra.mxu0 %v640
      %680 = vmatprep.subr.bf16.mxu0 0
      %681 = vmatpush1.bf16.msra.mxu0 %v641
      %682 = vmatprep.subr.bf16.mxu0 0
      %683 = vmatpush1.bf16.msra.mxu0 %v642
      %684 = vmatprep.subr.bf16.mxu0 0
      %685 = vmatpush1.bf16.msra.mxu0 %v643
      %686 = vmatprep.subr.bf16.mxu0 0
      %687 = vmatpush1.bf16.msra.mxu0 0
      %688 = vmatprep.subr.bf16.mxu0 0
      %689 = vmatpush1.bf16.msra.mxu0 0
      %690 = vmatprep.subr.bf16.mxu0 0
      %691 = vmatpush1.bf16.msra.mxu0 0
      %692 = vmatprep.subr.bf16.mxu0 0
      %693 = vmatpush1.bf16.msra.mxu0 0
      %694 = vmatprep.subr.bf16.mxu0 0
      %695 = vmatpush1.bf16.msra.mxu0 0
      %696 = vmatprep.subr.bf16.mxu0 0
      %697 = vmatpush1.bf16.msra.mxu0 0
      %698 = vmatprep.subr.bf16.mxu0 0
      %699 = vmatpush1.bf16.msra.mxu0 0
      %700 = vmatprep.subr.bf16.mxu0 0
      %701 = vmatpush1.bf16.msra.mxu0 0
      %702 = vmatprep.subr.bf16.mxu0 0
      %703 = vmatpush1.bf16.msra.mxu0 0
      %704 = vmatprep.subr.bf16.mxu0 0
      %705 = vmatpush1.bf16.msra.mxu0 0
      %706 = vmatprep.subr.bf16.mxu0 0
      %707 = vmatpush1.bf16.msra.mxu0 0
      %708 = vmatprep.subr.bf16.mxu0 0
      %709 = vmatpush1.bf16.msra.mxu0 0
      %710 = vmatprep.mubr.bf16.mxu0 0
      %711 = vmatmul.mubr.bf16.gmra.mrb[0].mxu0 %v649
      %v712 = vpop.f32.mrb[0].mxu0
      %v713 = vadd.f32 0.0, %v712
      %v714 = vpop.f32.mrb[0].mxu0
      %v715 = vpop.f32.mrb[0].mxu0
      %v716 = vadd.f32 0.0, %v715
      %v717 = vpop.f32.mrb[0].mxu0
      %718 = vmatprep.mubr.bf16.mxu0 0
      %719 = vmatmul.mubr.bf16.gmra.mrb[0].mxu0 %v652
      %v720 = vpop.f32.mrb[0].mxu0
      %v721 = vadd.f32 0.0, %v720
      %v722 = vpop.f32.mrb[0].mxu0
      %v723 = vpop.f32.mrb[0].mxu0
      %v724 = vadd.f32 0.0, %v723
      %v725 = vpop.f32.mrb[0].mxu0
      %726 = vmatprep.mubr.bf16.mxu0 0
      %727 = vmatmul.mubr.bf16.gmra.mrb[0].mxu0 %v655
      %v728 = vpop.f32.mrb[0].mxu0
      %v729 = vadd.f32 0.0, %v728
      %v730 = vpop.f32.mrb[0].mxu0
      %v731 = vpop.f32.mrb[0].mxu0
      %v732 = vadd.f32 0.0, %v731
      %v733 = vpop.f32.mrb[0].mxu0
      %734 = vmatprep.mubr.bf16.mxu0 0
      %735 = vmatmul.mubr.bf16.gmra.mrb[0].mxu0 %v658
      %v736 = vpop.f32.mrb[0].mxu0
      %v737 = vadd.f32 0.0, %v736
      %v738 = vpop.f32.mrb[0].mxu0
      %v739 = vpop.f32.mrb[0].mxu0
      %v740 = vadd.f32 0.0, %v739
      %v741 = vpop.f32.mrb[0].mxu0
      %742 = vmatprep.mubr.bf16.mxu0 0
      %743 = vmatmul.mubr.bf16.gmra.mrb[0].mxu0 %v661
      %v744 = vpop.f32.mrb[0].mxu0
      %v745 = vadd.f32 0.0, %v744
      %v746 = vpop.f32.mrb[0].mxu0
      %v747 = vpop.f32.mrb[0].mxu0
      %v748 = vadd.f32 0.0, %v747
      %v749 = vpop.f32.mrb[0].mxu0
      %750 = vmatprep.mubr.bf16.mxu0 0
      %751 = vmatmul.mubr.bf16.gmra.mrb[0].mxu0 %v664
      %v752 = vpop.f32.mrb[0].mxu0
      %v753 = vadd.f32 0.0, %v752
      %v754 = vpop.f32.mrb[0].mxu0
      %v755 = vpop.f32.mrb[0].mxu0
      %v756 = vadd.f32 0.0, %v755
      %v757 = vpop.f32.mrb[0].mxu0
      %758 = vmatprep.mubr.bf16.mxu0 0
      %759 = vmatmul.mubr.bf16.gmra.mrb[0].mxu0 %v667
      %v760 = vpop.f32.mrb[0].mxu0
      %v761 = vadd.f32 0.0, %v760
      %v762 = vpop.f32.mrb[0].mxu0
      %v763 = vpop.f32.mrb[0].mxu0
      %v764 = vadd.f32 0.0, %v763
      %v765 = vpop.f32.mrb[0].mxu0
      %766 = vmatprep.mubr.bf16.mxu0 0
      %767 = vmatmul.mubr.bf16.gmra.mrb[0].mxu0 %v670
      %v768 = vpop.f32.mrb[0].mxu0
      %v769 = vadd.f32 0.0, %v768
      %v770 = vpop.f32.mrb[0].mxu0
      %v771 = vpop.f32.mrb[0].mxu0
      %v772 = vadd.f32 0.0, %v771
      %v773 = vpop.f32.mrb[0].mxu0
      %774 = vmatprep.mubr.bf16.mxu0 0
      %775 = vmatmul.mubr.bf16.gmra.mrb[0].mxu0 %v673
      %v776 = vpop.f32.mrb[0].mxu0
      %v777 = vadd.f32 0.0, %v776
      %v778 = vpop.f32.mrb[0].mxu0
      %v779 = vpop.f32.mrb[0].mxu0
      %v780 = vadd.f32 0.0, %v779
      %v781 = vpop.f32.mrb[0].mxu0
      %782 = vmatprep.mubr.bf16.mxu0 0
      %783 = vmatmul.mubr.bf16.gmra.mrb[0].mxu0 %v676
      %v784 = vpop.f32.mrb[0].mxu0
      %v785 = vadd.f32 0.0, %v784
      %v786 = vpop.f32.mrb[0].mxu0
      %v787 = vpop.f32.mrb[0].mxu0
      %v788 = vadd.f32 0.0, %v787
      %v789 = vpop.f32.mrb[0].mxu0
      %790 = vdwg.mxu0
      %v791 = vadd.f32 %v713, %v568
      %v792 = vadd.f32 %v716, %v571
      %v793 = vadd.f32 %v721, %v568
      %v794 = vadd.f32 %v724, %v571
      %v795 = vadd.f32 %v729, %v568
      %v796 = vadd.f32 %v732, %v571
      %v797 = vadd.f32 %v737, %v568
      %v798 = vadd.f32 %v740, %v571
      %v799 = vadd.f32 %v745, %v568
      %v800 = vadd.f32 %v748, %v571
      %v801 = vadd.f32 %v753, %v568
      %v802 = vadd.f32 %v756, %v571
      %v803 = vadd.f32 %v761, %v568
      %v804 = vadd.f32 %v764, %v571
      %v805 = vadd.f32 %v769, %v568
      %v806 = vadd.f32 %v772, %v571
      %v807 = vadd.f32 %v777, %v568
      %v808 = vadd.f32 %v780, %v571
      %v809 = vadd.f32 %v785, %v568
      %v810 = vadd.f32 %v788, %v571
      %v811 = vmax.f32 %v791, 0.0
      %v812 = vmax.f32 %v792, 0.0
      %v813 = vmax.f32 %v793, 0.0
      %v814 = vmax.f32 %v794, 0.0
      %v815 = vmax.f32 %v795, 0.0
      %v816 = vmax.f32 %v796, 0.0
      %v817 = vmax.f32 %v797, 0.0
      %v818 = vmax.f32 %v798, 0.0
      %v819 = vmax.f32 %v799, 0.0
      %v820 = vmax.f32 %v800, 0.0
      %v821 = vmax.f32 %v801, 0.0
      %v822 = vmax.f32 %v802, 0.0
      %v823 = vmax.f32 %v803, 0.0
      %v824 = vmax.f32 %v804, 0.0
      %v825 = vmax.f32 %v805, 0.0
      %v826 = vmax.f32 %v806, 0.0
      %v827 = vmax.f32 %v807, 0.0
      %v828 = vmax.f32 %v808, 0.0
      %v829 = vmax.f32 %v809, 0.0
      %v830 = vmax.f32 %v810, 0.0
      %v831 = vpack.c.bf16 %v812, %v811
      %v832 = vpack.c.bf16 %v814, %v813
      %v833 = vpack.c.bf16 %v816, %v815
      %v834 = vpack.c.bf16 %v818, %v817
      %v835 = vpack.c.bf16 %v820, %v819
      %v836 = vpack.c.bf16 %v822, %v821
      %v837 = vpack.c.bf16 %v824, %v823
      %v838 = vpack.c.bf16 %v826, %v825
      %v839 = vpack.c.bf16 %v828, %v827
      %v840 = vpack.c.bf16 %v830, %v829
      %v842 = vlaneseq
      %v843 = vshrl.u32 %v842, 7
      %v844 = vsub.s32 0, %v843
      %v845 = vrot.slane %v484, %v844
      %v863 = vunpack.c.l.b16 %v468
      %v864 = vunpack.c.l.b16 %v469
      %v865 = vunpack.c.l.b16 %v470
      %v866 = vunpack.c.l.b16 %v471
      %v867 = vunpack.c.l.b16 %v472
      %v868 = vunpack.c.l.b16 %v473
      %v869 = vunpack.c.l.b16 %v474
      %v870 = vunpack.c.l.b16 %v475
      %v871 = vunpack.c.l.b16 %v476
      %v872 = vunpack.c.l.b16 %v477
      %v873 = vunpack.c.l.b16 %v478
      %v874 = vunpack.c.l.b16 %v479
      %v875 = vunpack.c.l.b16 %v480
      %v876 = vunpack.c.l.b16 %v481
      %v877 = vunpack.c.l.b16 %v482
      %v878 = vunpack.c.l.b16 %v483
      %v879 = vpack.c.b16 %v864, %v863
      %v880 = vpack.c.b16 %v866, %v865
      %v881 = vpack.c.b16 %v868, %v867
      %v882 = vpack.c.b16 %v870, %v869
      %v883 = vpack.c.b16 %v872, %v871
      %v884 = vpack.c.b16 %v874, %v873
      %v885 = vpack.c.b16 %v876, %v875
      %v886 = vpack.c.b16 %v878, %v877
      %895 = vmatprep.subr.bf16.mxu0 0
      %896 = vmatpush1.bf16.msra.mxu0 %v879
      %897 = vmatprep.subr.bf16.mxu0 0
      %898 = vmatpush1.bf16.msra.mxu0 %v880
      %899 = vmatprep.subr.bf16.mxu0 0
      %900 = vmatpush1.bf16.msra.mxu0 %v881
      %901 = vmatprep.subr.bf16.mxu0 0
      %902 = vmatpush1.bf16.msra.mxu0 %v882
      %903 = vmatprep.subr.bf16.mxu0 0
      %904 = vmatpush1.bf16.msra.mxu0 %v883
      %905 = vmatprep.subr.bf16.mxu0 0
      %906 = vmatpush1.bf16.msra.mxu0 %v884
      %907 = vmatprep.subr.bf16.mxu0 0
      %908 = vmatpush1.bf16.msra.mxu0 %v885
      %909 = vmatprep.subr.bf16.mxu0 0
      %910 = vmatpush1.bf16.msra.mxu0 %v886
      %911 = vmatprep.subr.bf16.mxu0 0
      %912 = vmatpush1.bf16.msra.mxu0 0
      %913 = vmatprep.subr.bf16.mxu0 0
      %914 = vmatpush1.bf16.msra.mxu0 0
      %915 = vmatprep.subr.bf16.mxu0 0
      %916 = vmatpush1.bf16.msra.mxu0 0
      %917 = vmatprep.subr.bf16.mxu0 0
      %918 = vmatpush1.bf16.msra.mxu0 0
      %919 = vmatprep.subr.bf16.mxu0 0
      %920 = vmatpush1.bf16.msra.mxu0 0
      %921 = vmatprep.subr.bf16.mxu0 0
      %922 = vmatpush1.bf16.msra.mxu0 0
      %923 = vmatprep.subr.bf16.mxu0 0
      %924 = vmatpush1.bf16.msra.mxu0 0
      %925 = vmatprep.subr.bf16.mxu0 0
      %926 = vmatpush1.bf16.msra.mxu0 0
      %927 = vmatprep.mubr.bf16.mxu0 0
      %928 = vmatmul.mubr.bf16.gmra.mrb[0].mxu0 %v831
      %v929 = vpop.f32.mrb[0].mxu0
      %v930 = vadd.f32 %v845, %v929
      %v931 = vpop.f32.mrb[0].mxu0
      %v932 = vpop.f32.mrb[0].mxu0
      %v933 = vadd.f32 %v845, %v932
      %v934 = vpop.f32.mrb[0].mxu0
      %935 = vmatprep.mubr.bf16.mxu0 0
      %936 = vmatmul.mubr.bf16.gmra.mrb[0].mxu0 %v832
      %v937 = vpop.f32.mrb[0].mxu0
      %v938 = vadd.f32 %v845, %v937
      %v939 = vpop.f32.mrb[0].mxu0
      %v940 = vpop.f32.mrb[0].mxu0
      %v941 = vadd.f32 %v845, %v940
      %v942 = vpop.f32.mrb[0].mxu0
      %943 = vmatprep.mubr.bf16.mxu0 0
      %944 = vmatmul.mubr.bf16.gmra.mrb[0].mxu0 %v833
      %v945 = vpop.f32.mrb[0].mxu0
      %v946 = vadd.f32 %v845, %v945
      %v947 = vpop.f32.mrb[0].mxu0
      %v948 = vpop.f32.mrb[0].mxu0
      %v949 = vadd.f32 %v845, %v948
      %v950 = vpop.f32.mrb[0].mxu0
      %951 = vmatprep.mubr.bf16.mxu0 0
      %952 = vmatmul.mubr.bf16.gmra.mrb[0].mxu0 %v834
      %v953 = vpop.f32.mrb[0].mxu0
      %v954 = vadd.f32 %v845, %v953
      %v955 = vpop.f32.mrb[0].mxu0
      %v956 = vpop.f32.mrb[0].mxu0
      %v957 = vadd.f32 %v845, %v956
      %v958 = vpop.f32.mrb[0].mxu0
      %959 = vmatprep.mubr.bf16.mxu0 0
      %960 = vmatmul.mubr.bf16.gmra.mrb[0].mxu0 %v835
      %v961 = vpop.f32.mrb[0].mxu0
      %v962 = vadd.f32 %v845, %v961
      %v963 = vpop.f32.mrb[0].mxu0
      %v964 = vpop.f32.mrb[0].mxu0
      %v965 = vadd.f32 %v845, %v964
      %v966 = vpop.f32.mrb[0].mxu0
      %967 = vmatprep.mubr.bf16.mxu0 0
      %968 = vmatmul.mubr.bf16.gmra.mrb[0].mxu0 %v836
      %v969 = vpop.f32.mrb[0].mxu0
      %v970 = vadd.f32 %v845, %v969
      %v971 = vpop.f32.mrb[0].mxu0
      %v972 = vpop.f32.mrb[0].mxu0
      %v973 = vadd.f32 %v845, %v972
      %v974 = vpop.f32.mrb[0].mxu0
      %975 = vmatprep.mubr.bf16.mxu0 0
      %976 = vmatmul.mubr.bf16.gmra.mrb[0].mxu0 %v837
      %v977 = vpop.f32.mrb[0].mxu0
      %v978 = vadd.f32 %v845, %v977
      %v979 = vpop.f32.mrb[0].mxu0
      %v980 = vpop.f32.mrb[0].mxu0
      %v981 = vadd.f32 %v845, %v980
      %v982 = vpop.f32.mrb[0].mxu0
      %983 = vmatprep.mubr.bf16.mxu0 0
      %984 = vmatmul.mubr.bf16.gmra.mrb[0].mxu0 %v838
      %v985 = vpop.f32.mrb[0].mxu0
      %v986 = vadd.f32 %v845, %v985
      %v987 = vpop.f32.mrb[0].mxu0
      %v988 = vpop.f32.mrb[0].mxu0
      %v989 = vadd.f32 %v845, %v988
      %v990 = vpop.f32.mrb[0].mxu0
      %991 = vmatprep.mubr.bf16.mxu0 0
      %992 = vmatmul.mubr.bf16.gmra.mrb[0].mxu0 %v839
      %v993 = vpop.f32.mrb[0].mxu0
      %v994 = vadd.f32 %v845, %v993
      %v995 = vpop.f32.mrb[0].mxu0
      %v996 = vpop.f32.mrb[0].mxu0
      %v997 = vadd.f32 %v845, %v996
      %v998 = vpop.f32.mrb[0].mxu0
      %999 = vmatprep.mubr.bf16.mxu0 0
      %1000 = vmatmul.mubr.bf16.gmra.mrb[0].mxu0 %v840
      %v1001 = vpop.f32.mrb[0].mxu0
      %v1002 = vadd.f32 %v845, %v1001
      %v1003 = vpop.f32.mrb[0].mxu0
      %v1004 = vpop.f32.mrb[0].mxu0
      %v1005 = vadd.f32 %v845, %v1004
      %v1006 = vpop.f32.mrb[0].mxu0
      %1007 = vdwg.mxu0
      %v1008 = vmax.f32 %v930, 0.0
      %v1009 = vmax.f32 %v933, 0.0
      %v1010 = vmax.f32 %v938, 0.0
      %v1011 = vmax.f32 %v941, 0.0
      %v1012 = vmax.f32 %v946, 0.0
      %v1013 = vmax.f32 %v949, 0.0
      %v1014 = vmax.f32 %v954, 0.0
      %v1015 = vmax.f32 %v957, 0.0
      %v1016 = vmax.f32 %v962, 0.0
      %v1017 = vmax.f32 %v965, 0.0
      %v1018 = vmax.f32 %v970, 0.0
      %v1019 = vmax.f32 %v973, 0.0
      %v1020 = vmax.f32 %v978, 0.0
      %v1021 = vmax.f32 %v981, 0.0
      %v1022 = vmax.f32 %v986, 0.0
      %v1023 = vmax.f32 %v989, 0.0
      %v1024 = vmax.f32 %v994, 0.0
      %v1025 = vmax.f32 %v997, 0.0
      %v1026 = vmax.f32 %v1002, 0.0
      %v1027 = vmax.f32 %v1005, 0.0
      %v1028 = vpack.c.bf16 %v1009, %v1008
      %v1029 = vpack.c.bf16 %v1011, %v1010
      %v1030 = vpack.c.bf16 %v1013, %v1012
      %v1031 = vpack.c.bf16 %v1015, %v1014
      %v1032 = vpack.c.bf16 %v1017, %v1016
      %v1033 = vpack.c.bf16 %v1019, %v1018
      %v1034 = vpack.c.bf16 %v1021, %v1020
      %v1035 = vpack.c.bf16 %v1023, %v1022
      %v1036 = vpack.c.bf16 %v1025, %v1024
      %v1037 = vpack.c.bf16 %v1027, %v1026
      %v1039 = vlaneseq
      %v1040 = vshrl.u32 %v1039, 7
      %v1041 = vsub.s32 0, %v1040
      %v1042 = vrot.slane %v493, %v1041
      %v1052 = vunpack.c.l.b16 %v485
      %v1053 = vunpack.c.l.b16 %v486
      %v1054 = vunpack.c.l.b16 %v487
      %v1055 = vunpack.c.l.b16 %v488
      %v1056 = vunpack.c.l.b16 %v489
      %v1057 = vunpack.c.l.b16 %v490
      %v1058 = vunpack.c.l.b16 %v491
      %v1059 = vunpack.c.l.b16 %v492
      %v1060 = vpack.c.b16 %v1053, %v1052
      %v1061 = vpack.c.b16 %v1055, %v1054
      %v1062 = vpack.c.b16 %v1057, %v1056
      %v1063 = vpack.c.b16 %v1059, %v1058
      %v1069 = vsel %vm529, %v1028, 0
      %v1072 = vsel %vm529, %v1029, 0
      %v1075 = vsel %vm529, %v1030, 0
      %v1078 = vsel %vm529, %v1031, 0
      %v1081 = vsel %vm529, %v1032, 0
      %v1084 = vsel %vm529, %v1033, 0
      %v1087 = vsel %vm529, %v1034, 0
      %v1090 = vsel %vm529, %v1035, 0
      %v1093 = vsel %vm529, %v1036, 0
      %v1096 = vsel %vm529, %v1037, 0
      %1098 = vmatprep.subr.bf16.mxu0 0
      %1099 = vmatpush1.bf16.msra.mxu0 %v1060
      %1100 = vmatprep.subr.bf16.mxu0 0
      %1101 = vmatpush1.bf16.msra.mxu0 %v1061
      %1102 = vmatprep.subr.bf16.mxu0 0
      %1103 = vmatpush1.bf16.msra.mxu0 %v1062
      %1104 = vmatprep.subr.bf16.mxu0 0
      %1105 = vmatpush1.bf16.msra.mxu0 %v1063
      %1106 = vmatprep.subr.bf16.mxu0 0
      %1107 = vmatpush1.bf16.msra.mxu0 0
      %1108 = vmatprep.subr.bf16.mxu0 0
      %1109 = vmatpush1.bf16.msra.mxu0 0
      %1110 = vmatprep.subr.bf16.mxu0 0
      %1111 = vmatpush1.bf16.msra.mxu0 0
      %1112 = vmatprep.subr.bf16.mxu0 0
      %1113 = vmatpush1.bf16.msra.mxu0 0
      %1114 = vmatprep.subr.bf16.mxu0 0
      %1115 = vmatpush1.bf16.msra.mxu0 0
      %1116 = vmatprep.subr.bf16.mxu0 0
      %1117 = vmatpush1.bf16.msra.mxu0 0
      %1118 = vmatprep.subr.bf16.mxu0 0
      %1119 = vmatpush1.bf16.msra.mxu0 0
      %1120 = vmatprep.subr.bf16.mxu0 0
      %1121 = vmatpush1.bf16.msra.mxu0 0
      %1122 = vmatprep.subr.bf16.mxu0 0
      %1123 = vmatpush1.bf16.msra.mxu0 0
      %1124 = vmatprep.subr.bf16.mxu0 0
      %1125 = vmatpush1.bf16.msra.mxu0 0
      %1126 = vmatprep.subr.bf16.mxu0 0
      %1127 = vmatpush1.bf16.msra.mxu0 0
      %1128 = vmatprep.subr.bf16.mxu0 0
      %1129 = vmatpush1.bf16.msra.mxu0 0
      %1130 = vmatprep.mubr.bf16.mxu0 0
      %1131 = vmatmul.mubr.bf16.gmra.mrb[0].mxu0 %v1069
      %v1132 = vpop.f32.mrb[0].mxu0
      %v1133 = vadd.f32 %v1042, %v1132
      %v1134 = vpop.f32.mrb[0].mxu0
      %v1135 = vpop.f32.mrb[0].mxu0
      %v1136 = vadd.f32 %v1042, %v1135
      %v1137 = vpop.f32.mrb[0].mxu0
      %1138 = vmatprep.mubr.bf16.mxu0 0
      %1139 = vmatmul.mubr.bf16.gmra.mrb[0].mxu0 %v1072
      %v1140 = vpop.f32.mrb[0].mxu0
      %v1141 = vadd.f32 %v1042, %v1140
      %v1142 = vpop.f32.mrb[0].mxu0
      %v1143 = vpop.f32.mrb[0].mxu0
      %v1144 = vadd.f32 %v1042, %v1143
      %v1145 = vpop.f32.mrb[0].mxu0
      %1146 = vmatprep.mubr.bf16.mxu0 0
      %1147 = vmatmul.mubr.bf16.gmra.mrb[0].mxu0 %v1075
      %v1148 = vpop.f32.mrb[0].mxu0
      %v1149 = vadd.f32 %v1042, %v1148
      %v1150 = vpop.f32.mrb[0].mxu0
      %v1151 = vpop.f32.mrb[0].mxu0
      %v1152 = vadd.f32 %v1042, %v1151
      %v1153 = vpop.f32.mrb[0].mxu0
      %1154 = vmatprep.mubr.bf16.mxu0 0
      %1155 = vmatmul.mubr.bf16.gmra.mrb[0].mxu0 %v1078
      %v1156 = vpop.f32.mrb[0].mxu0
      %v1157 = vadd.f32 %v1042, %v1156
      %v1158 = vpop.f32.mrb[0].mxu0
      %v1159 = vpop.f32.mrb[0].mxu0
      %v1160 = vadd.f32 %v1042, %v1159
      %v1161 = vpop.f32.mrb[0].mxu0
      %1162 = vmatprep.mubr.bf16.mxu0 0
      %1163 = vmatmul.mubr.bf16.gmra.mrb[0].mxu0 %v1081
      %v1164 = vpop.f32.mrb[0].mxu0
      %v1165 = vadd.f32 %v1042, %v1164
      %v1166 = vpop.f32.mrb[0].mxu0
      %v1167 = vpop.f32.mrb[0].mxu0
      %v1168 = vadd.f32 %v1042, %v1167
      %v1169 = vpop.f32.mrb[0].mxu0
      %1170 = vmatprep.mubr.bf16.mxu0 0
      %1171 = vmatmul.mubr.bf16.gmra.mrb[0].mxu0 %v1084
      %v1172 = vpop.f32.mrb[0].mxu0
      %v1173 = vadd.f32 %v1042, %v1172
      %v1174 = vpop.f32.mrb[0].mxu0
      %v1175 = vpop.f32.mrb[0].mxu0
      %v1176 = vadd.f32 %v1042, %v1175
      %v1177 = vpop.f32.mrb[0].mxu0
      %1178 = vmatprep.mubr.bf16.mxu0 0
      %1179 = vmatmul.mubr.bf16.gmra.mrb[0].mxu0 %v1087
      %v1180 = vpop.f32.mrb[0].mxu0
      %v1181 = vadd.f32 %v1042, %v1180
      %v1182 = vpop.f32.mrb[0].mxu0
      %v1183 = vpop.f32.mrb[0].mxu0
      %v1184 = vadd.f32 %v1042, %v1183
      %v1185 = vpop.f32.mrb[0].mxu0
      %1186 = vmatprep.mubr.bf16.mxu0 0
      %1187 = vmatmul.mubr.bf16.gmra.mrb[0].mxu0 %v1090
      %v1188 = vpop.f32.mrb[0].mxu0
      %v1189 = vadd.f32 %v1042, %v1188
      %v1190 = vpop.f32.mrb[0].mxu0
      %v1191 = vpop.f32.mrb[0].mxu0
      %v1192 = vadd.f32 %v1042, %v1191
      %v1193 = vpop.f32.mrb[0].mxu0
      %1194 = vmatprep.mubr.bf16.mxu0 0
      %1195 = vmatmul.mubr.bf16.gmra.mrb[0].mxu0 %v1093
      %v1196 = vpop.f32.mrb[0].mxu0
      %v1197 = vadd.f32 %v1042, %v1196
      %v1198 = vpop.f32.mrb[0].mxu0
      %v1199 = vpop.f32.mrb[0].mxu0
      %v1200 = vadd.f32 %v1042, %v1199
      %v1201 = vpop.f32.mrb[0].mxu0
      %1202 = vmatprep.mubr.bf16.mxu0 0
      %1203 = vmatmul.mubr.bf16.gmra.mrb[0].mxu0 %v1096
      %v1204 = vpop.f32.mrb[0].mxu0
      %v1205 = vadd.f32 %v1042, %v1204
      %v1206 = vpop.f32.mrb[0].mxu0
      %v1207 = vpop.f32.mrb[0].mxu0
      %v1208 = vadd.f32 %v1042, %v1207
      %v1209 = vpop.f32.mrb[0].mxu0
      %1210 = vdwg.mxu0
      %v1211 = vmax.f32 %v1133, 0.0
      %v1212 = vmax.f32 %v1136, 0.0
      %v1213 = vmax.f32 %v1141, 0.0
      %v1214 = vmax.f32 %v1144, 0.0
      %v1215 = vmax.f32 %v1149, 0.0
      %v1216 = vmax.f32 %v1152, 0.0
      %v1217 = vmax.f32 %v1157, 0.0
      %v1218 = vmax.f32 %v1160, 0.0
      %v1219 = vmax.f32 %v1165, 0.0
      %v1220 = vmax.f32 %v1168, 0.0
      %v1221 = vmax.f32 %v1173, 0.0
      %v1222 = vmax.f32 %v1176, 0.0
      %v1223 = vmax.f32 %v1181, 0.0
      %v1224 = vmax.f32 %v1184, 0.0
      %v1225 = vmax.f32 %v1189, 0.0
      %v1226 = vmax.f32 %v1192, 0.0
      %v1227 = vmax.f32 %v1197, 0.0
      %v1228 = vmax.f32 %v1200, 0.0
      %v1229 = vmax.f32 %v1205, 0.0
      %v1230 = vmax.f32 %v1208, 0.0
      %v1231 = vsel %vm529, %v1211, -inf
      %v1232 = vsel %vm529, %v1213, -inf
      %v1233 = vsel %vm529, %v1215, -inf
      %v1234 = vmax.f32 %v1231, %v1233
      %v1235 = vsel %vm529, %v1217, -inf
      %v1236 = vmax.f32 %v1232, %v1235
      %v1237 = vsel %vm529, %v1219, -inf
      %v1238 = vmax.f32 %v1234, %v1237
      %v1239 = vsel %vm529, %v1221, -inf
      %v1240 = vmax.f32 %v1236, %v1239
      %v1241 = vsel %vm529, %v1223, -inf
      %v1242 = vmax.f32 %v1238, %v1241
      %v1243 = vsel %vm529, %v1225, -inf
      %v1244 = vmax.f32 %v1240, %v1243
      %v1245 = vsel %vm529, %v1227, -inf
      %v1246 = vmax.f32 %v1242, %v1245
      %v1247 = vsel %vm529, %v1229, -inf
      %v1248 = vmax.f32 %v1244, %v1247
      %v1249 = vmax.f32 %v1246, %v1248
      %v1250 = vsel %vm529, %v1212, -inf
      %v1251 = vsel %vm529, %v1214, -inf
      %v1252 = vsel %vm529, %v1216, -inf
      %v1253 = vmax.f32 %v1250, %v1252
      %v1254 = vsel %vm529, %v1218, -inf
      %v1255 = vmax.f32 %v1251, %v1254
      %v1256 = vsel %vm529, %v1220, -inf
      %v1257 = vmax.f32 %v1253, %v1256
      %v1258 = vsel %vm529, %v1222, -inf
      %v1259 = vmax.f32 %v1255, %v1258
      %v1260 = vsel %vm529, %v1224, -inf
      %v1261 = vmax.f32 %v1257, %v1260
      %v1262 = vsel %vm529, %v1226, -inf
      %v1263 = vmax.f32 %v1259, %v1262
      %v1264 = vsel %vm529, %v1228, -inf
      %v1265 = vmax.f32 %v1261, %v1264
      %v1266 = vsel %vm529, %v1230, -inf
      %v1267 = vmax.f32 %v1263, %v1266
      %v1268 = vmax.f32 %v1265, %v1267
      %v1269 = vpack.c.bf16 %v1268, %v1249
      %v1271 = vunpack.c.l.b16 %v1269
      %v1272 = vunpack.c.h.b16 %v1269
      %v1273 = vpack.c.b16 %v1271, %v1271
      %v1274 = vpack.c.b16 %v1272, %v1272
      %vm1277 = vcmask 519168
      %1278 = vst.msk [vmem:[%s406] sm:$0xf] %vm1277, %v1273
      %1279 = vst.msk [vmem:[%s406 + $0x4] sm:$0xf] %vm1277, %v1274
      %s1280 = smul.u32 2, %s25
      %p1281 = scmp.lt.s32.totalorder %s24, 1
      %s1282 = scalar_select %p1281, %s24, 1
      %p1283 = scmp.lt.s32.totalorder %s1280, 1
      %s1284 = scalar_select %p1283, %s1280, 1
      %s1285 = smul.addr %s1282, 2
      %s1286 = sadd.s32 %s1284, %s1285
      %s1287 = smul.addr %s1286, 4
      %s1288 = scalar_lea.vmem %s9, %s1287
      // Predicated region
      $region57: #{dgcnn_segment_forward.10} parent=55 // pred_check
        %p1289 = pneg %p255
      $region58: #{dgcnn_segment_forward.10} parent=55 // pred_check_branch
        %1291 = sbr.rel (%p1289) target = $region60
      $region59: #{dgcnn_segment_forward.10} parent=55 // pred_region
        %s1292 = smul.u32 2, %s25
      $region60: #{dgcnn_segment_forward.10} parent=55 // pred_fallthru
        _
    $region56: #{dgcnn_segment_forward.10} parent=5 // pred_fallthru
      _
    %p1293 = scmp.le.s32.totalorder 2, %s15
    // Predicated region
    $region61: #{dgcnn_segment_forward.10} parent=5 // pred_check
      %p1294 = pneg %p1293
    $region62: #{dgcnn_segment_forward.10} parent=5 // pred_check_branch
      %1296 = sbr.rel (%p1294) target = $region64
    $region63: #{dgcnn_segment_forward.10} parent=5 // pred_region
      %s1297 = ssub.s32 %s15, 2
      // Predicated region
      $region65: #{dgcnn_segment_forward.10} parent=63 // pred_check
        %p1298 = pneg %p261
      $region66: #{dgcnn_segment_forward.10} parent=63 // pred_check_branch
        %1300 = sbr.rel (%p1298) target = $region68
      $region67: #{dgcnn_segment_forward.10} parent=63 // pred_region
        %s1301 = smul.u32 2, %s27
        %p1302 = scmp.lt.s32.totalorder %s26, 1
        %s1303 = scalar_select %p1302, %s26, 1
        %p1304 = scmp.lt.s32.totalorder %s1301, 1
        %s1305 = scalar_select %p1304, %s1301, 1
        %s1306 = smul.addr %s1303, 2
        %s1307 = sadd.s32 %s1305, %s1306
        %s1308 = smul.addr %s1307, 4
        %s1309 = scalar_lea.vmem %s9, %s1308
      $region68: #{dgcnn_segment_forward.10} parent=63 // pred_fallthru
        _
    $region64: #{dgcnn_segment_forward.10} parent=5 // pred_fallthru
      _
  $region6: #{dgcnn_segment_forward.10} parent=0 // loop_footer
    %s19 = sadd.s32 1, %s15
  $region7: #{dgcnn_segment_forward.10} parent=0 // loop_footer_branch
    %14 = sbr.rel target = $region3
  $region8: #{dgcnn_segment_forward.10} parent=0 // loop_exit
    _

// kernel: dgcnn_segment_forward.13
$region0: #{dgcnn_segment_forward.13}
  #allocation0 [shape = 'u32[]', space=smem, size = 0x4, offset = 0x4, fixed_abs, tag = 'smem constant byte address 0x4 - core index']
  #allocation1 [shape = 'u32[144,128]{1,0:T(1,128)}', space=vmem, size = 0x12000, scoped, tag = 'internal scratch']
  %s0 = inlined_call_operand.vmem [shape: bf16[32,192], index: 0, kind: input, shape index: {}]
  %s1 = inlined_call_operand.vmem [shape: bf16[192,192], index: 1, kind: input, shape index: {}]
  %s2 = inlined_call_operand.vmem [shape: f32[1,192], index: 2, kind: input, shape index: {}]
  %s3 = inlined_call_operand.vmem [shape: bf16[192,192], index: 3, kind: input, shape index: {}]
  %s4 = inlined_call_operand.vmem [shape: f32[1,192], index: 4, kind: input, shape index: {}]
  %s5 = inlined_call_operand.hbm [shape: f32[32,192], index: 5, kind: output, shape index: {}]
  %s6 = sld [smem:[#allocation0]]
  $region30: #{dgcnn_segment_forward.13} parent=0
    _
  %s8 = ssub.s32 1, %s6
  %s9 = scalar_select 0, %s8, %s6
  $region1: #{dgcnn_segment_forward.13} parent=0
    #allocation2 [shape = 'u8[32768]{0}', space=vmem, size = 0x8000, scoped, tag = 'output window, operand 0, single buffered']
    #allocation3 [shape = 's32[1]{0}', space=sflag, size = 0x4, scoped, tag = 'scoped memory for dgcnn_segment_forward.13']
    %10 = vsyncpa [#allocation3], 0
    // Predicated region
    $region2: #{dgcnn_segment_forward.13} parent=1 // pred_check
      _
    $region3: #{dgcnn_segment_forward.13} parent=1 // pred_check_branch
      %12 = sbr.rel (0) target = $region5
    $region4: #{dgcnn_segment_forward.13} parent=1 // pred_region
      _
    $region5: #{dgcnn_segment_forward.13} parent=1 // pred_fallthru
      _
    // Predicated region
    $region6: #{dgcnn_segment_forward.13} parent=1 // pred_check
      _
    $region7: #{dgcnn_segment_forward.13} parent=1 // pred_check_branch
      %14 = sbr.rel (0) target = $region9
    $region8: #{dgcnn_segment_forward.13} parent=1 // pred_region
      _
    $region9: #{dgcnn_segment_forward.13} parent=1 // pred_fallthru
      _
    // Predicated region
    $region10: #{dgcnn_segment_forward.13} parent=1 // pred_check
      _
    $region11: #{dgcnn_segment_forward.13} parent=1 // pred_check_branch
      %16 = sbr.rel (0) target = $region13
    $region12: #{dgcnn_segment_forward.13} parent=1 // pred_region
      _
    $region13: #{dgcnn_segment_forward.13} parent=1 // pred_fallthru
      _
    // Predicated region
    $region14: #{dgcnn_segment_forward.13} parent=1 // pred_check
      _
    $region15: #{dgcnn_segment_forward.13} parent=1 // pred_check_branch
      %18 = sbr.rel (0) target = $region17
    $region16: #{dgcnn_segment_forward.13} parent=1 // pred_region
      _
    $region17: #{dgcnn_segment_forward.13} parent=1 // pred_fallthru
      _
    // Predicated region
    $region18: #{dgcnn_segment_forward.13} parent=1 // pred_check
      _
    $region19: #{dgcnn_segment_forward.13} parent=1 // pred_check_branch
      %20 = sbr.rel (0) target = $region21
    $region20: #{dgcnn_segment_forward.13} parent=1 // pred_region
      _
    $region21: #{dgcnn_segment_forward.13} parent=1 // pred_fallthru
      _
    %v22 = vld [vmem:[%s0] sm:$0xff]
    %v23 = vld [vmem:[%s0 + $0x8] sm:$0xff]
    %v24 = vld [vmem:[%s0 + $0x10] sm:$0xff]
    %v25 = vld [vmem:[%s0 + $0x18] sm:$0xff]
    %v26 = vld [vmem:[%s1] sm:$0xff]
    %v27 = vld [vmem:[%s1 + $0x8] sm:$0xff]
    %v28 = vld [vmem:[%s1 + $0x10] sm:$0xff]
    %v29 = vld [vmem:[%s1 + $0x18] sm:$0xff]
    %v30 = vld [vmem:[%s1 + $0x20] sm:$0xff]
    %v31 = vld [vmem:[%s1 + $0x28] sm:$0xff]
    %v32 = vld [vmem:[%s1 + $0x30] sm:$0xff]
    %v33 = vld [vmem:[%s1 + $0x38] sm:$0xff]
    %v34 = vld [vmem:[%s1 + $0x40] sm:$0xff]
    %v35 = vld [vmem:[%s1 + $0x48] sm:$0xff]
    %v36 = vld [vmem:[%s1 + $0x50] sm:$0xff]
    %v37 = vld [vmem:[%s1 + $0x58] sm:$0xff]
    %v38 = vld [vmem:[%s1 + $0x60] sm:$0xff]
    %v39 = vld [vmem:[%s1 + $0x68] sm:$0xff]
    %v40 = vld [vmem:[%s1 + $0x70] sm:$0xff]
    %v41 = vld [vmem:[%s1 + $0x78] sm:$0xff]
    %v42 = vld [vmem:[%s1 + $0x80] sm:$0xff]
    %v43 = vld [vmem:[%s1 + $0x88] sm:$0xff]
    %v44 = vld [vmem:[%s1 + $0x90] sm:$0xff]
    %v45 = vld [vmem:[%s1 + $0x98] sm:$0xff]
    %v46 = vld [vmem:[%s1 + $0xa0] sm:$0xff]
    %v47 = vld [vmem:[%s1 + $0xa8] sm:$0xff]
    %v48 = vld [vmem:[%s1 + $0xb0] sm:$0xff]
    %v49 = vld [vmem:[%s1 + $0xb8] sm:$0xff]
    %v50 = vld [vmem:[%s2] sm:$0x3]
    %v52 = vlaneseq
    %v53 = vshrl.u32 %v52, 7
    %v54 = vsub.s32 0, %v53
    %v55 = vrot.slane %v50, %v54
    %v56 = vlaneseq
    %v57 = vshrl.u32 %v56, 7
    %v58 = vsub.s32 1, %v57
    %v59 = vrot.slane %v50, %v58
    %v66 = vunpack.c.l.b16 %v22
    %v67 = vunpack.c.h.b16 %v22
    %v68 = vunpack.c.l.b16 %v23
    %v69 = vunpack.c.h.b16 %v23
    %v70 = vunpack.c.l.b16 %v24
    %v71 = vunpack.c.h.b16 %v24
    %v72 = vunpack.c.l.b16 %v25
    %v73 = vunpack.c.h.b16 %v25
    %v74 = vpack.c.b16 %v68, %v66
    %v75 = vpack.c.b16 %v69, %v67
    %v76 = vpack.c.b16 %v72, %v70
    %v77 = vpack.c.b16 %v73, %v71
    %v104 = vunpack.c.l.b16 %v26
    %v105 = vunpack.c.h.b16 %v26
    %v106 = vunpack.c.l.b16 %v27
    %v107 = vunpack.c.h.b16 %v27
    %v108 = vunpack.c.l.b16 %v28
    %v109 = vunpack.c.h.b16 %v28
    %v110 = vunpack.c.l.b16 %v29
    %v111 = vunpack.c.h.b16 %v29
    %v112 = vunpack.c.l.b16 %v30
    %v113 = vunpack.c.h.b16 %v30
    %v114 = vunpack.c.l.b16 %v31
    %v115 = vunpack.c.h.b16 %v31
    %v116 = vunpack.c.l.b16 %v32
    %v117 = vunpack.c.h.b16 %v32
    %v118 = vunpack.c.l.b16 %v33
    %v119 = vunpack.c.h.b16 %v33
    %v120 = vunpack.c.l.b16 %v34
    %v121 = vunpack.c.h.b16 %v34
    %v122 = vunpack.c.l.b16 %v35
    %v123 = vunpack.c.h.b16 %v35
    %v124 = vunpack.c.l.b16 %v36
    %v125 = vunpack.c.h.b16 %v36
    %v126 = vunpack.c.l.b16 %v37
    %v127 = vunpack.c.h.b16 %v37
    %v128 = vunpack.c.l.b16 %v38
    %v129 = vunpack.c.h.b16 %v38
    %v130 = vunpack.c.l.b16 %v39
    %v131 = vunpack.c.h.b16 %v39
    %v132 = vunpack.c.l.b16 %v40
    %v133 = vunpack.c.h.b16 %v40
    %v134 = vunpack.c.l.b16 %v41
    %v135 = vunpack.c.h.b16 %v41
    %v136 = vunpack.c.l.b16 %v42
    %v137 = vunpack.c.h.b16 %v42
    %v138 = vunpack.c.l.b16 %v43
    %v139 = vunpack.c.h.b16 %v43
    %v140 = vunpack.c.l.b16 %v44
    %v141 = vunpack.c.h.b16 %v44
    %v142 = vunpack.c.l.b16 %v45
    %v143 = vunpack.c.h.b16 %v45
    %v144 = vunpack.c.l.b16 %v46
    %v145 = vunpack.c.h.b16 %v46
    %v146 = vunpack.c.l.b16 %v47
    %v147 = vunpack.c.h.b16 %v47
    %v148 = vunpack.c.l.b16 %v48
    %v149 = vunpack.c.h.b16 %v48
    %v150 = vunpack.c.l.b16 %v49
    %v151 = vunpack.c.h.b16 %v49
    %v152 = vpack.c.b16 %v106, %v104
    %v153 = vpack.c.b16 %v107, %v105
    %v154 = vpack.c.b16 %v110, %v108
    %v155 = vpack.c.b16 %v111, %v109
    %v156 = vpack.c.b16 %v114, %v112
    %v157 = vpack.c.b16 %v115, %v113
    %v158 = vpack.c.b16 %v118, %v116
    %v159 = vpack.c.b16 %v119, %v117
    %v160 = vpack.c.b16 %v122, %v120
    %v161 = vpack.c.b16 %v123, %v121
    %v162 = vpack.c.b16 %v126, %v124
    %v163 = vpack.c.b16 %v127, %v125
    %v164 = vpack.c.b16 %v130, %v128
    %v165 = vpack.c.b16 %v131, %v129
    %v166 = vpack.c.b16 %v134, %v132
    %v167 = vpack.c.b16 %v135, %v133
    %v168 = vpack.c.b16 %v138, %v136
    %v169 = vpack.c.b16 %v139, %v137
    %v170 = vpack.c.b16 %v142, %v140
    %v171 = vpack.c.b16 %v143, %v141
    %v172 = vpack.c.b16 %v146, %v144
    %v173 = vpack.c.b16 %v147, %v145
    %v174 = vpack.c.b16 %v150, %v148
    %v175 = vpack.c.b16 %v151, %v149
    %vm200 = vcmask 523264
    %v202 = vsel %vm200, %v75, 0
    %v205 = vsel %vm200, %v77, 0
    %207 = vmatprep.subr.bf16.mxu0 %v153
    %208 = vmatpush1.bf16.msra.mxu0 %v152
    %209 = vmatprep.subr.bf16.mxu0 %v155
    %210 = vmatpush1.bf16.msra.mxu0 %v154
    %211 = vmatprep.subr.bf16.mxu0 %v157
    %212 = vmatpush1.bf16.msra.mxu0 %v156
    %213 = vmatprep.subr.bf16.mxu0 %v159
    %214 = vmatpush1.bf16.msra.mxu0 %v158
    %215 = vmatprep.subr.bf16.mxu0 %v161
    %216 = vmatpush1.bf16.msra.mxu0 %v160
    %217 = vmatprep.subr.bf16.mxu0 %v163
    %218 = vmatpush1.bf16.msra.mxu0 %v162
    %219 = vmatprep.subr.bf16.mxu0 %v165
    %220 = vmatpush1.bf16.msra.mxu0 %v164
    %221 = vmatprep.subr.bf16.mxu0 %v167
    %222 = vmatpush1.bf16.msra.mxu0 %v166
    %223 = vmatprep.subr.bf16.mxu0 %v169
    %224 = vmatpush1.bf16.msra.mxu0 %v168
    %225 = vmatprep.subr.bf16.mxu0 %v171
    %226 = vmatpush1.bf16.msra.mxu0 %v170
    %227 = vmatprep.subr.bf16.mxu0 %v173
    %228 = vmatpush1.bf16.msra.mxu0 %v172
    %229 = vmatprep.subr.bf16.mxu0 %v175
    %230 = vmatpush1.bf16.msra.mxu0 %v174
    %231 = vmatprep.subr.bf16.mxu0 0
    %232 = vmatpush1.bf16.msra.mxu0 0
    %233 = vmatprep.subr.bf16.mxu0 0
    %234 = vmatpush1.bf16.msra.mxu0 0
    %235 = vmatprep.subr.bf16.mxu0 0
    %236 = vmatpush1.bf16.msra.mxu0 0
    %237 = vmatprep.subr.bf16.mxu0 0
    %238 = vmatpush1.bf16.msra.mxu0 0
    %239 = vmatprep.mubr.bf16.mxu0 %v202
    %240 = vmatmul.mubr.bf16.gmra.mrb[0].mxu0 %v74
    %v241 = vpop.f32.mrb[0].mxu0
    %v242 = vadd.f32 %v55, %v241
    %v243 = vpop.f32.mrb[0].mxu0
    %v244 = vadd.f32 %v59, %v243
    %v245 = vpop.f32.mrb[0].mxu0
    %v246 = vadd.f32 %v55, %v245
    %v247 = vpop.f32.mrb[0].mxu0
    %v248 = vadd.f32 %v59, %v247
    %249 = vmatprep.mubr.bf16.mxu0 %v205
    %250 = vmatmul.mubr.bf16.gmra.mrb[0].mxu0 %v76
    %v251 = vpop.f32.mrb[0].mxu0
    %v252 = vadd.f32 %v55, %v251
    %v253 = vpop.f32.mrb[0].mxu0
    %v254 = vadd.f32 %v59, %v253
    %v255 = vpop.f32.mrb[0].mxu0
    %v256 = vadd.f32 %v55, %v255
    %v257 = vpop.f32.mrb[0].mxu0
    %v258 = vadd.f32 %v59, %v257
    %259 = vdwg.mxu0
    %v260 = vmax.f32 %v242, 0.0
    %v261 = vmax.f32 %v244, 0.0
    %v262 = vmax.f32 %v246, 0.0
    %v263 = vmax.f32 %v248, 0.0
    %v264 = vmax.f32 %v252, 0.0
    %v265 = vmax.f32 %v254, 0.0
    %v266 = vmax.f32 %v256, 0.0
    %v267 = vmax.f32 %v258, 0.0
    %v268 = vpack.c.bf16 %v262, %v260
    %v269 = vpack.c.bf16 %v263, %v261
    %v270 = vpack.c.bf16 %v266, %v264
    %v271 = vpack.c.bf16 %v267, %v265
    %v272 = vld [vmem:[%s3] sm:$0xff]
    %v273 = vld [vmem:[%s3 + $0x8] sm:$0xff]
    %v274 = vld [vmem:[%s3 + $0x10] sm:$0xff]
    %v275 = vld [vmem:[%s3 + $0x18] sm:$0xff]
    %v276 = vld [vmem:[%s3 + $0x20] sm:$0xff]
    %v277 = vld [vmem:[%s3 + $0x28] sm:$0xff]
    %v278 = vld [vmem:[%s3 + $0x30] sm:$0xff]
    %v279 = vld [vmem:[%s3 + $0x38] sm:$0xff]
    %v280 = vld [vmem:[%s3 + $0x40] sm:$0xff]
    %v281 = vld [vmem:[%s3 + $0x48] sm:$0xff]
    %v282 = vld [vmem:[%s3 + $0x50] sm:$0xff]
    %v283 = vld [vmem:[%s3 + $0x58] sm:$0xff]
    %v284 = vld [vmem:[%s3 + $0x60] sm:$0xff]
    %v285 = vld [vmem:[%s3 + $0x68] sm:$0xff]
    %v286 = vld [vmem:[%s3 + $0x70] sm:$0xff]
    %v287 = vld [vmem:[%s3 + $0x78] sm:$0xff]
    %v288 = vld [vmem:[%s3 + $0x80] sm:$0xff]
    %v289 = vld [vmem:[%s3 + $0x88] sm:$0xff]
    %v290 = vld [vmem:[%s3 + $0x90] sm:$0xff]
    %v291 = vld [vmem:[%s3 + $0x98] sm:$0xff]
    %v292 = vld [vmem:[%s3 + $0xa0] sm:$0xff]
    %v293 = vld [vmem:[%s3 + $0xa8] sm:$0xff]
    %v294 = vld [vmem:[%s3 + $0xb0] sm:$0xff]
    %v295 = vld [vmem:[%s3 + $0xb8] sm:$0xff]
    %v296 = vld [vmem:[%s4] sm:$0x3]
    %v298 = vlaneseq
    %v299 = vshrl.u32 %v298, 7
    %v300 = vsub.s32 0, %v299
    %v301 = vrot.slane %v296, %v300
    %v302 = vlaneseq
    %v303 = vshrl.u32 %v302, 7
    %v304 = vsub.s32 1, %v303
    %v305 = vrot.slane %v296, %v304
    %v332 = vunpack.c.l.b16 %v272
    %v333 = vunpack.c.h.b16 %v272
    %v334 = vunpack.c.l.b16 %v273
    %v335 = vunpack.c.h.b16 %v273
    %v336 = vunpack.c.l.b16 %v274
    %v337 = vunpack.c.h.b16 %v274
    %v338 = vunpack.c.l.b16 %v275
    %v339 = vunpack.c.h.b16 %v275
    %v340 = vunpack.c.l.b16 %v276
    %v341 = vunpack.c.h.b16 %v276
    %v342 = vunpack.c.l.b16 %v277
    %v343 = vunpack.c.h.b16 %v277
    %v344 = vunpack.c.l.b16 %v278
    %v345 = vunpack.c.h.b16 %v278
    %v346 = vunpack.c.l.b16 %v279
    %v347 = vunpack.c.h.b16 %v279
    %v348 = vunpack.c.l.b16 %v280
    %v349 = vunpack.c.h.b16 %v280
    %v350 = vunpack.c.l.b16 %v281
    %v351 = vunpack.c.h.b16 %v281
    %v352 = vunpack.c.l.b16 %v282
    %v353 = vunpack.c.h.b16 %v282
    %v354 = vunpack.c.l.b16 %v283
    %v355 = vunpack.c.h.b16 %v283
    %v356 = vunpack.c.l.b16 %v284
    %v357 = vunpack.c.h.b16 %v284
    %v358 = vunpack.c.l.b16 %v285
    %v359 = vunpack.c.h.b16 %v285
    %v360 = vunpack.c.l.b16 %v286
    %v361 = vunpack.c.h.b16 %v286
    %v362 = vunpack.c.l.b16 %v287
    %v363 = vunpack.c.h.b16 %v287
    %v364 = vunpack.c.l.b16 %v288
    %v365 = vunpack.c.h.b16 %v288
    %v366 = vunpack.c.l.b16 %v289
    %v367 = vunpack.c.h.b16 %v289
    %v368 = vunpack.c.l.b16 %v290
    %v369 = vunpack.c.h.b16 %v290
    %v370 = vunpack.c.l.b16 %v291
    %v371 = vunpack.c.h.b16 %v291
    %v372 = vunpack.c.l.b16 %v292
    %v373 = vunpack.c.h.b16 %v292
    %v374 = vunpack.c.l.b16 %v293
    %v375 = vunpack.c.h.b16 %v293
    %v376 = vunpack.c.l.b16 %v294
    %v377 = vunpack.c.h.b16 %v294
    %v378 = vunpack.c.l.b16 %v295
    %v379 = vunpack.c.h.b16 %v295
    %v380 = vpack.c.b16 %v334, %v332
    %v381 = vpack.c.b16 %v335, %v333
    %v382 = vpack.c.b16 %v338, %v336
    %v383 = vpack.c.b16 %v339, %v337
    %v384 = vpack.c.b16 %v342, %v340
    %v385 = vpack.c.b16 %v343, %v341
    %v386 = vpack.c.b16 %v346, %v344
    %v387 = vpack.c.b16 %v347, %v345
    %v388 = vpack.c.b16 %v350, %v348
    %v389 = vpack.c.b16 %v351, %v349
    %v390 = vpack.c.b16 %v354, %v352
    %v391 = vpack.c.b16 %v355, %v353
    %v392 = vpack.c.b16 %v358, %v356
    %v393 = vpack.c.b16 %v359, %v357
    %v394 = vpack.c.b16 %v362, %v360
    %v395 = vpack.c.b16 %v363, %v361
    %v396 = vpack.c.b16 %v366, %v364
    %v397 = vpack.c.b16 %v367, %v365
    %v398 = vpack.c.b16 %v370, %v368
    %v399 = vpack.c.b16 %v371, %v369
    %v400 = vpack.c.b16 %v374, %v372
    %v401 = vpack.c.b16 %v375, %v373
    %v402 = vpack.c.b16 %v378, %v376
    %v403 = vpack.c.b16 %v379, %v377
    %v429 = vsel %vm200, %v269, 0
    %v432 = vsel %vm200, %v271, 0
    %434 = vmatprep.subr.bf16.mxu0 %v381
    %435 = vmatpush1.bf16.msra.mxu0 %v380
    %436 = vmatprep.subr.bf16.mxu0 %v383
    %437 = vmatpush1.bf16.msra.mxu0 %v382
    %438 = vmatprep.subr.bf16.mxu0 %v385
    %439 = vmatpush1.bf16.msra.mxu0 %v384
    %440 = vmatprep.subr.bf16.mxu0 %v387
    %441 = vmatpush1.bf16.msra.mxu0 %v386
    %442 = vmatprep.subr.bf16.mxu0 %v389
    %443 = vmatpush1.bf16.msra.mxu0 %v388
    %444 = vmatprep.subr.bf16.mxu0 %v391
    %445 = vmatpush1.bf16.msra.mxu0 %v390
    %446 = vmatprep.subr.bf16.mxu0 %v393
    %447 = vmatpush1.bf16.msra.mxu0 %v392
    %448 = vmatprep.subr.bf16.mxu0 %v395
    %449 = vmatpush1.bf16.msra.mxu0 %v394
    %450 = vmatprep.subr.bf16.mxu0 %v397
    %451 = vmatpush1.bf16.msra.mxu0 %v396
    %452 = vmatprep.subr.bf16.mxu0 %v399
    %453 = vmatpush1.bf16.msra.mxu0 %v398
    %454 = vmatprep.subr.bf16.mxu0 %v401
    %455 = vmatpush1.bf16.msra.mxu0 %v400
    %456 = vmatprep.subr.bf16.mxu0 %v403
    %457 = vmatpush1.bf16.msra.mxu0 %v402
    %458 = vmatprep.subr.bf16.mxu0 0
    %459 = vmatpush1.bf16.msra.mxu0 0
    %460 = vmatprep.subr.bf16.mxu0 0
    %461 = vmatpush1.bf16.msra.mxu0 0
    %462 = vmatprep.subr.bf16.mxu0 0
    %463 = vmatpush1.bf16.msra.mxu0 0
    %464 = vmatprep.subr.bf16.mxu0 0
    %465 = vmatpush1.bf16.msra.mxu0 0
    %466 = vmatprep.mubr.bf16.mxu0 %v429
    %467 = vmatmul.mubr.bf16.gmra.mrb[0].mxu0 %v268
    %v468 = vpop.f32.mrb[0].mxu0
    %v469 = vadd.f32 %v301, %v468
    %v470 = vpop.f32.mrb[0].mxu0
    %v471 = vadd.f32 %v305, %v470
    %v472 = vpop.f32.mrb[0].mxu0
    %v473 = vadd.f32 %v301, %v472
    %v474 = vpop.f32.mrb[0].mxu0
    %v475 = vadd.f32 %v305, %v474
    %476 = vmatprep.mubr.bf16.mxu0 %v432
    %477 = vmatmul.mubr.bf16.gmra.mrb[0].mxu0 %v270
    %v478 = vpop.f32.mrb[0].mxu0
    %v479 = vadd.f32 %v301, %v478
    %v480 = vpop.f32.mrb[0].mxu0
    %v481 = vadd.f32 %v305, %v480
    %v482 = vpop.f32.mrb[0].mxu0
    %v483 = vadd.f32 %v301, %v482
    %v484 = vpop.f32.mrb[0].mxu0
    %v485 = vadd.f32 %v305, %v484
    %486 = vdwg.mxu0
    %v487 = vmax.f32 %v469, 0.0
    %v488 = vmax.f32 %v471, 0.0
    %v489 = vmax.f32 %v473, 0.0
    %v490 = vmax.f32 %v475, 0.0
    %v491 = vmax.f32 %v479, 0.0
    %v492 = vmax.f32 %v481, 0.0
    %v493 = vmax.f32 %v483, 0.0
    %v494 = vmax.f32 %v485, 0.0
    %495 = vst [vmem:[#allocation2] sm:$0xff] %v487
    %496 = vst.msk [vmem:[#allocation2 + $0x8] sm:$0xff] %vm200, %v488
    %497 = vst [vmem:[#allocation2 + $0x10] sm:$0xff] %v489
    %498 = vst.msk [vmem:[#allocation2 + $0x18] sm:$0xff] %vm200, %v490
    %499 = vst [vmem:[#allocation2 + $0x20] sm:$0xff] %v491
    %500 = vst.msk [vmem:[#allocation2 + $0x28] sm:$0xff] %vm200, %v492
    %501 = vst [vmem:[#allocation2 + $0x30] sm:$0xff] %v493
    %502 = vst.msk [vmem:[#allocation2 + $0x38] sm:$0xff] %vm200, %v494
    // Predicated region
    $region22: #{dgcnn_segment_forward.13} parent=1 // pred_check
      _
    $region23: #{dgcnn_segment_forward.13} parent=1 // pred_check_branch
      %504 = sbr.rel (0) target = $region25
    $region24: #{dgcnn_segment_forward.13} parent=1 // pred_region
      %s506 = ssub.s32 1024, 1024
      %507 = vsyncadd [#allocation3], %s506
      %s508 = sshll.u32 [#allocation2], 4
      %s509 = int_to_ptr.vmem [resolvable:$true] %s508
      %514 = dma.vmem_to_hbm [thread:$0]  %s509, 1024, %s5, [#allocation3], 256, 256, 16
    $region25: #{dgcnn_segment_forward.13} parent=1 // pred_fallthru
      _
    // Predicated region
    $region26: #{dgcnn_segment_forward.13} parent=1 // pred_check
      _
    $region27: #{dgcnn_segment_forward.13} parent=1 // pred_check_branch
      %516 = sbr.rel (0) target = $region29
    $region28: #{dgcnn_segment_forward.13} parent=1 // pred_region
      %517 = dma.done [#allocation3], 1024
    $region29: #{dgcnn_segment_forward.13} parent=1 // pred_fallthru
      _
    %518 = vsyncpa [#allocation3], 1

// kernel: dgcnn_segment_forward.12
$region0: #{dgcnn_segment_forward.12}
  #allocation0 [shape = 'u32[]', space=smem, size = 0x4, offset = 0x4, fixed_abs, tag = 'smem constant byte address 0x4 - core index']
  #allocation1 [shape = 'u32[144,128]{1,0:T(1,128)}', space=vmem, size = 0x12000, scoped, tag = 'internal scratch']
  %s0 = inlined_call_operand.vmem [shape: bf16[2,16,64], index: 0, kind: input, shape index: {}]
  %s1 = inlined_call_operand.vmem [shape: bf16[2,10,16,64], index: 1, kind: input, shape index: {}]
  %s2 = inlined_call_operand.vmem [shape: bf16[3,64,128], index: 2, kind: input, shape index: {}]
  %s3 = inlined_call_operand.vmem [shape: bf16[3,64,128], index: 3, kind: input, shape index: {}]
  %s4 = inlined_call_operand.vmem [shape: f32[3,1,128], index: 4, kind: input, shape index: {}]
  %s5 = inlined_call_operand.vmem [shape: bf16[3,128,64], index: 5, kind: input, shape index: {}]
  %s6 = inlined_call_operand.vmem [shape: f32[3,1,64], index: 6, kind: input, shape index: {}]
  %s7 = inlined_call_operand.vmem [shape: bf16[3,64,64], index: 7, kind: input, shape index: {}]
  %s8 = inlined_call_operand.vmem [shape: f32[3,1,64], index: 8, kind: input, shape index: {}]
  %s9 = inlined_call_operand.vmem [shape: bf16[2,16,192], index: 9, kind: output, shape index: {}]
  %s10 = sld [smem:[#allocation0]]
  $region69: #{dgcnn_segment_forward.12} parent=0
    _
  %s12 = ssub.s32 1, %s10
  %s13 = scalar_select 0, %s12, %s10
  loop: start=0, step=1, limit=4
  $region2: #{dgcnn_segment_forward.12} parent=0 // loop_pre_header
    _
  $region3: #{dgcnn_segment_forward.12} parent=0 // loop_header
    %s15 = sphi 0, %s19
    %p16 = scmp.ge.s32.totalorder %s15, 4
    %s22 = sphi 0, %s34
    %s23 = sphi 0, %s30
    %s24 = sphi 0, %s22
    %s25 = sphi 0, %s23
    %s26 = sphi 0, %s24
    %s27 = sphi 0, %s25
    %s39 = sphi 0, %s41
    %s42 = sphi 0, %s39
    %s43 = sphi 0, %s42
    %s59 = sphi 0, %s43
    %s67 = sphi 0, %s69
    %s70 = sphi 0, %s67
    %s71 = sphi 0, %s70
    %s87 = sphi 0, %s71
    %s91 = sphi 0, %s91
    %s93 = sphi 0, %s91
    %s94 = sphi 0, %s93
    %s108 = sphi 0, %s94
    %s112 = sphi 0, %s112
    %s114 = sphi 0, %s112
    %s115 = sphi 0, %s114
    %s129 = sphi 0, %s115
    %s133 = sphi 0, %s133
    %s135 = sphi 0, %s133
    %s136 = sphi 0, %s135
    %s150 = sphi 0, %s136
    %s154 = sphi 0, %s154
    %s156 = sphi 0, %s154
    %s157 = sphi 0, %s156
    %s171 = sphi 0, %s157
    %s175 = sphi 0, %s175
    %s177 = sphi 0, %s175
    %s178 = sphi 0, %s177
    %s192 = sphi 0, %s178
    %s196 = sphi 0, %s196
    %s198 = sphi 0, %s196
    %s199 = sphi 0, %s198
    %s213 = sphi 0, %s199
    %s217 = sphi 0, %s217
    %s219 = sphi 0, %s217
    %s220 = sphi 0, %s219
    %s234 = sphi 0, %s220
    %s242 = sphi 0, %s244
    %s245 = sphi 0, %s242
    %s246 = sphi 0, %s245
    %s262 = sphi 0, %s246
  $region4: #{dgcnn_segment_forward.12} parent=0 // loop_header_branch
    %18 = sbr.rel (%p16) target = $region8
  $region5: #{dgcnn_segment_forward.12} parent=0 // loop_body
    %s20 = ssub.s32 %s15, 1
    %s21 = ssub.s32 %s15, 2
    %s28 = sadd.s32 1, %s23
    %p29 = scmp.ge.s32.totalorder %s28, 1
    %s30 = scalar_select %p29, 0, %s28
    %s31 = sadd.s32 1, %s22
    %s32 = scalar_select %p29, %s31, %s22
    %p33 = scmp.ge.s32.totalorder %s32, 2
    %s34 = scalar_select %p33, 0, %s32
    %s35 = ssub.s32 %s22, %s34
    %s36 = ssub.s32 %s23, %s30
    %s37 = sor.u32 %s35, %s36
    %p38 = scmp.eq.s32.totalorder %s37, 0
    %s40 = sadd.s32 %s39, 1
    %s41 = scalar_select %p38, %s39, %s40
    %p44 = pneg %p38
    %p45 = scmp.eq.s32.totalorder %s15, 1
    %p46 = por %p44, %p45
    %p47 = scmp.ne.s32.totalorder %s39, %s42
    %p48 = scmp.eq.s32.totalorder %s15, 0
    %p49 = por %p47, %p48
    %p50 = scmp.ne.s32.totalorder %s39, %s42
    %p51 = scmp.eq.s32.totalorder %s20, 1
    %p52 = por %p50, %p51
    %p53 = scmp.ne.s32.totalorder %s42, %s43
    %p54 = scmp.eq.s32.totalorder %s20, 0
    %p55 = por %p53, %p54
    %p56 = scmp.ne.s32.totalorder %s42, %s43
    %p57 = scmp.eq.s32.totalorder %s21, 1
    %p58 = por %p56, %p57
    %p60 = scmp.ne.s32.totalorder %s43, %s59
    %p61 = scmp.eq.s32.totalorder %s21, 0
    %p62 = por %p60, %p61
    %s63 = ssub.s32 %s22, %s34
    %s64 = ssub.s32 %s23, %s30
    %s65 = sor.u32 %s63, %s64
    %p66 = scmp.eq.s32.totalorder %s65, 0
    %s68 = sadd.s32 %s67, 1
    %s69 = scalar_select %p66, %s67, %s68
    %p72 = pneg %p66
    %p73 = scmp.eq.s32.totalorder %s15, 1
    %p74 = por %p72, %p73
    %p75 = scmp.ne.s32.totalorder %s67, %s70
    %p76 = scmp.eq.s32.totalorder %s15, 0
    %p77 = por %p75, %p76
    %p78 = scmp.ne.s32.totalorder %s67, %s70
    %p79 = scmp.eq.s32.totalorder %s20, 1
    %p80 = por %p78, %p79
    %p81 = scmp.ne.s32.totalorder %s70, %s71
    %p82 = scmp.eq.s32.totalorder %s20, 0
    %p83 = por %p81, %p82
    %p84 = scmp.ne.s32.totalorder %s70, %s71
    %p85 = scmp.eq.s32.totalorder %s21, 1
    %p86 = por %p84, %p85
    %p88 = scmp.ne.s32.totalorder %s71, %s87
    %p89 = scmp.eq.s32.totalorder %s21, 0
    %p90 = por %p88, %p89
    %s92 = sadd.s32 %s91, 1
    %p95 = scmp.eq.s32.totalorder %s15, 1
    %p96 = scmp.ne.s32.totalorder %s91, %s93
    %p97 = scmp.eq.s32.totalorder %s15, 0
    %p98 = por %p96, %p97
    %p99 = scmp.ne.s32.totalorder %s91, %s93
    %p100 = scmp.eq.s32.totalorder %s20, 1
    %p101 = por %p99, %p100
    %p102 = scmp.ne.s32.totalorder %s93, %s94
    %p103 = scmp.eq.s32.totalorder %s20, 0
    %p104 = por %p102, %p103
    %p105 = scmp.ne.s32.totalorder %s93, %s94
    %p106 = scmp.eq.s32.totalorder %s21, 1
    %p107 = por %p105, %p106
    %p109 = scmp.ne.s32.totalorder %s94, %s108
    %p110 = scmp.eq.s32.totalorder %s21, 0
    %p111 = por %p109, %p110
    %s113 = sadd.s32 %s112, 1
    %p116 = scmp.eq.s32.totalorder %s15, 1
    %p117 = scmp.ne.s32.totalorder %s112, %s114
    %p118 = scmp.eq.s32.totalorder %s15, 0
    %p119 = por %p117, %p118
    %p120 = scmp.ne.s32.totalorder %s112, %s114
    %p121 = scmp.eq.s32.totalorder %s20, 1
    %p122 = por %p120, %p121
    %p123 = scmp.ne.s32.totalorder %s114, %s115
    %p124 = scmp.eq.s32.totalorder %s20, 0
    %p125 = por %p123, %p124
    %p126 = scmp.ne.s32.totalorder %s114, %s115
    %p127 = scmp.eq.s32.totalorder %s21, 1
    %p128 = por %p126, %p127
    %p130 = scmp.ne.s32.totalorder %s115, %s129
    %p131 = scmp.eq.s32.totalorder %s21, 0
    %p132 = por %p130, %p131
    %s134 = sadd.s32 %s133, 1
    %p137 = scmp.eq.s32.totalorder %s15, 1
    %p138 = scmp.ne.s32.totalorder %s133, %s135
    %p139 = scmp.eq.s32.totalorder %s15, 0
    %p140 = por %p138, %p139
    %p141 = scmp.ne.s32.totalorder %s133, %s135
    %p142 = scmp.eq.s32.totalorder %s20, 1
    %p143 = por %p141, %p142
    %p144 = scmp.ne.s32.totalorder %s135, %s136
    %p145 = scmp.eq.s32.totalorder %s20, 0
    %p146 = por %p144, %p145
    %p147 = scmp.ne.s32.totalorder %s135, %s136
    %p148 = scmp.eq.s32.totalorder %s21, 1
    %p149 = por %p147, %p148
    %p151 = scmp.ne.s32.totalorder %s136, %s150
    %p152 = scmp.eq.s32.totalorder %s21, 0
    %p153 = por %p151, %p152
    %s155 = sadd.s32 %s154, 1
    %p158 = scmp.eq.s32.totalorder %s15, 1
    %p159 = scmp.ne.s32.totalorder %s154, %s156
    %p160 = scmp.eq.s32.totalorder %s15, 0
    %p161 = por %p159, %p160
    %p162 = scmp.ne.s32.totalorder %s154, %s156
    %p163 = scmp.eq.s32.totalorder %s20, 1
    %p164 = por %p162, %p163
    %p165 = scmp.ne.s32.totalorder %s156, %s157
    %p166 = scmp.eq.s32.totalorder %s20, 0
    %p167 = por %p165, %p166
    %p168 = scmp.ne.s32.totalorder %s156, %s157
    %p169 = scmp.eq.s32.totalorder %s21, 1
    %p170 = por %p168, %p169
    %p172 = scmp.ne.s32.totalorder %s157, %s171
    %p173 = scmp.eq.s32.totalorder %s21, 0
    %p174 = por %p172, %p173
    %s176 = sadd.s32 %s175, 1
    %p179 = scmp.eq.s32.totalorder %s15, 1
    %p180 = scmp.ne.s32.totalorder %s175, %s177
    %p181 = scmp.eq.s32.totalorder %s15, 0
    %p182 = por %p180, %p181
    %p183 = scmp.ne.s32.totalorder %s175, %s177
    %p184 = scmp.eq.s32.totalorder %s20, 1
    %p185 = por %p183, %p184
    %p186 = scmp.ne.s32.totalorder %s177, %s178
    %p187 = scmp.eq.s32.totalorder %s20, 0
    %p188 = por %p186, %p187
    %p189 = scmp.ne.s32.totalorder %s177, %s178
    %p190 = scmp.eq.s32.totalorder %s21, 1
    %p191 = por %p189, %p190
    %p193 = scmp.ne.s32.totalorder %s178, %s192
    %p194 = scmp.eq.s32.totalorder %s21, 0
    %p195 = por %p193, %p194
    %s197 = sadd.s32 %s196, 1
    %p200 = scmp.eq.s32.totalorder %s15, 1
    %p201 = scmp.ne.s32.totalorder %s196, %s198
    %p202 = scmp.eq.s32.totalorder %s15, 0
    %p203 = por %p201, %p202
    %p204 = scmp.ne.s32.totalorder %s196, %s198
    %p205 = scmp.eq.s32.totalorder %s20, 1
    %p206 = por %p204, %p205
    %p207 = scmp.ne.s32.totalorder %s198, %s199
    %p208 = scmp.eq.s32.totalorder %s20, 0
    %p209 = por %p207, %p208
    %p210 = scmp.ne.s32.totalorder %s198, %s199
    %p211 = scmp.eq.s32.totalorder %s21, 1
    %p212 = por %p210, %p211
    %p214 = scmp.ne.s32.totalorder %s199, %s213
    %p215 = scmp.eq.s32.totalorder %s21, 0
    %p216 = por %p214, %p215
    %s218 = sadd.s32 %s217, 1
    %p221 = scmp.eq.s32.totalorder %s15, 1
    %p222 = scmp.ne.s32.totalorder %s217, %s219
    %p223 = scmp.eq.s32.totalorder %s15, 0
    %p224 = por %p222, %p223
    %p225 = scmp.ne.s32.totalorder %s217, %s219
    %p226 = scmp.eq.s32.totalorder %s20, 1
    %p227 = por %p225, %p226
    %p228 = scmp.ne.s32.totalorder %s219, %s220
    %p229 = scmp.eq.s32.totalorder %s20, 0
    %p230 = por %p228, %p229
    %p231 = scmp.ne.s32.totalorder %s219, %s220
    %p232 = scmp.eq.s32.totalorder %s21, 1
    %p233 = por %p231, %p232
    %p235 = scmp.ne.s32.totalorder %s220, %s234
    %p236 = scmp.eq.s32.totalorder %s21, 0
    %p237 = por %p235, %p236
    %s238 = ssub.s32 %s22, %s34
    %s239 = ssub.s32 %s23, %s30
    %s240 = sor.u32 %s238, %s239
    %p241 = scmp.eq.s32.totalorder %s240, 0
    %s243 = sadd.s32 %s242, 1
    %s244 = scalar_select %p241, %s242, %s243
    %p247 = pneg %p241
    %p248 = scmp.eq.s32.totalorder %s15, 1
    %p249 = por %p247, %p248
    %p250 = scmp.ne.s32.totalorder %s242, %s245
    %p251 = scmp.eq.s32.totalorder %s15, 0
    %p252 = por %p250, %p251
    %p253 = scmp.ne.s32.totalorder %s242, %s245
    %p254 = scmp.eq.s32.totalorder %s20, 1
    %p255 = por %p253, %p254
    %p256 = scmp.ne.s32.totalorder %s245, %s246
    %p257 = scmp.eq.s32.totalorder %s20, 0
    %p258 = por %p256, %p257
    %p259 = scmp.ne.s32.totalorder %s245, %s246
    %p260 = scmp.eq.s32.totalorder %s21, 1
    %p261 = por %p259, %p260
    %p263 = scmp.ne.s32.totalorder %s246, %s262
    %p264 = scmp.eq.s32.totalorder %s21, 0
    %p265 = por %p263, %p264
    %p266 = scmp.le.s32.totalorder 1, %s15
    %p267 = scmp.lt.s32.totalorder %s15, 3
    %p268 = pnand %p266, %p267
    %p269 = pneg %p268
    // Predicated region
    $region9: #{dgcnn_segment_forward.12} parent=5 // pred_check
      _
    $region10: #{dgcnn_segment_forward.12} parent=5 // pred_check_branch
      %271 = sbr.rel (%p268) target = $region12
    $region11: #{dgcnn_segment_forward.12} parent=5 // pred_region
      %s272 = ssub.s32 %s15, 1
      // Predicated region
      $region13: #{dgcnn_segment_forward.12} parent=11 // pred_check
        %p273 = pneg %p104
      $region14: #{dgcnn_segment_forward.12} parent=11 // pred_check_branch
        %275 = sbr.rel (%p273) target = $region16
      $region15: #{dgcnn_segment_forward.12} parent=11 // pred_region
        _
      $region16: #{dgcnn_segment_forward.12} parent=11 // pred_fallthru
        _
      // Predicated region
      $region17: #{dgcnn_segment_forward.12} parent=11 // pred_check
        %p276 = pneg %p125
      $region18: #{dgcnn_segment_forward.12} parent=11 // pred_check_branch
        %278 = sbr.rel (%p276) target = $region20
      $region19: #{dgcnn_segment_forward.12} parent=11 // pred_region
        _
      $region20: #{dgcnn_segment_forward.12} parent=11 // pred_fallthru
        _
      // Predicated region
      $region21: #{dgcnn_segment_forward.12} parent=11 // pred_check
        %p279 = pneg %p146
      $region22: #{dgcnn_segment_forward.12} parent=11 // pred_check_branch
        %281 = sbr.rel (%p279) target = $region24
      $region23: #{dgcnn_segment_forward.12} parent=11 // pred_region
        _
      $region24: #{dgcnn_segment_forward.12} parent=11 // pred_fallthru
        _
      // Predicated region
      $region25: #{dgcnn_segment_forward.12} parent=11 // pred_check
        %p282 = pneg %p167
      $region26: #{dgcnn_segment_forward.12} parent=11 // pred_check_branch
        %284 = sbr.rel (%p282) target = $region28
      $region27: #{dgcnn_segment_forward.12} parent=11 // pred_region
        _
      $region28: #{dgcnn_segment_forward.12} parent=11 // pred_fallthru
        _
      // Predicated region
      $region29: #{dgcnn_segment_forward.12} parent=11 // pred_check
        %p285 = pneg %p188
      $region30: #{dgcnn_segment_forward.12} parent=11 // pred_check_branch
        %287 = sbr.rel (%p285) target = $region32
      $region31: #{dgcnn_segment_forward.12} parent=11 // pred_region
        _
      $region32: #{dgcnn_segment_forward.12} parent=11 // pred_fallthru
        _
      // Predicated region
      $region33: #{dgcnn_segment_forward.12} parent=11 // pred_check
        %p288 = pneg %p209
      $region34: #{dgcnn_segment_forward.12} parent=11 // pred_check_branch
        %290 = sbr.rel (%p288) target = $region36
      $region35: #{dgcnn_segment_forward.12} parent=11 // pred_region
        _
      $region36: #{dgcnn_segment_forward.12} parent=11 // pred_fallthru
        _
      // Predicated region
      $region37: #{dgcnn_segment_forward.12} parent=11 // pred_check
        %p291 = pneg %p230
      $region38: #{dgcnn_segment_forward.12} parent=11 // pred_check_branch
        %293 = sbr.rel (%p291) target = $region40
      $region39: #{dgcnn_segment_forward.12} parent=11 // pred_region
        _
      $region40: #{dgcnn_segment_forward.12} parent=11 // pred_fallthru
        _
    $region12: #{dgcnn_segment_forward.12} parent=5 // pred_fallthru
      _
    %p294 = scmp.lt.s32.totalorder %s15, 2
    // Predicated region
    $region41: #{dgcnn_segment_forward.12} parent=5 // pred_check
      %p295 = pneg %p294
    $region42: #{dgcnn_segment_forward.12} parent=5 // pred_check_branch
      %297 = sbr.rel (%p295) target = $region44
    $region43: #{dgcnn_segment_forward.12} parent=5 // pred_region
      // Predicated region
      $region45: #{dgcnn_segment_forward.12} parent=43 // pred_check
        %p298 = pneg %p49
      $region46: #{dgcnn_segment_forward.12} parent=43 // pred_check_branch
        %300 = sbr.rel (%p298) target = $region48
      $region47: #{dgcnn_segment_forward.12} parent=43 // pred_region
        %s301 = smul.u32 2, %s23
        %p302 = scmp.lt.s32.totalorder %s22, 1
        %s303 = scalar_select %p302, %s22, 1
        %p304 = scmp.lt.s32.totalorder %s301, 1
        %s305 = scalar_select %p304, %s301, 1
        %s306 = smul.addr %s303, 2
        %s307 = sadd.s32 %s305, %s306
        %s308 = smul.addr %s307, 4
        %s309 = scalar_lea.vmem %s0, %s308
        %s310 = smul.u32 2, %s23
      $region48: #{dgcnn_segment_forward.12} parent=43 // pred_fallthru
        _
      // Predicated region
      $region49: #{dgcnn_segment_forward.12} parent=43 // pred_check
        %p311 = pneg %p77
      $region50: #{dgcnn_segment_forward.12} parent=43 // pred_check_branch
        %313 = sbr.rel (%p311) target = $region52
      $region51: #{dgcnn_segment_forward.12} parent=43 // pred_region
        %s314 = smul.u32 2, %s23
        %p315 = scmp.lt.s32.totalorder %s22, 1
        %s316 = scalar_select %p315, %s22, 1
        %p317 = scmp.lt.s32.totalorder %s314, 1
        %s318 = scalar_select %p317, %s314, 1
        %s319 = smul.addr %s316, 20
        %s320 = sadd.s32 %s318, %s319
        %s321 = smul.addr %s320, 4
        %s322 = scalar_lea.vmem %s1, %s321
        %s323 = smul.u32 2, %s23
      $region52: #{dgcnn_segment_forward.12} parent=43 // pred_fallthru
        _
    $region44: #{dgcnn_segment_forward.12} parent=5 // pred_fallthru
      _
    %p324 = scmp.le.s32.totalorder 1, %s15
    %p325 = scmp.lt.s32.totalorder %s15, 3
    %p326 = pnand %p324, %p325
    %p327 = pneg %p326
    // Predicated region
    $region53: #{dgcnn_segment_forward.12} parent=5 // pred_check
      _
    $region54: #{dgcnn_segment_forward.12} parent=5 // pred_check_branch
      %329 = sbr.rel (%p326) target = $region56
    $region55: #{dgcnn_segment_forward.12} parent=5 // pred_region
      %s330 = ssub.s32 %s15, 1
      %s331 = smul.u32 2, %s25
      %p332 = scmp.lt.s32.totalorder %s24, 1
      %s333 = scalar_select %p332, %s24, 1
      %p334 = scmp.lt.s32.totalorder %s331, 1
      %s335 = scalar_select %p334, %s331, 1
      %s336 = smul.addr %s333, 2
      %s337 = sadd.s32 %s335, %s336
      %s338 = smul.addr %s337, 4
      %s339 = scalar_lea.vmem %s0, %s338
      %p340 = pneg %p55
      %p341 = pneg %p52
      %s342 = smul.u32 2, %s25
      %p343 = scmp.lt.s32.totalorder %s24, 1
      %s344 = scalar_select %p343, %s24, 1
      %p345 = scmp.lt.s32.totalorder %s342, 1
      %s346 = scalar_select %p345, %s342, 1
      %s347 = smul.addr %s344, 20
      %s348 = sadd.s32 %s346, %s347
      %s349 = smul.addr %s348, 4
      %s350 = scalar_lea.vmem %s1, %s349
      %p351 = pneg %p83
      %p352 = pneg %p80
      %p353 = pneg %p104
      %p354 = pneg %p101
      %p355 = pneg %p125
      %p356 = pneg %p122
      %p357 = pneg %p146
      %p358 = pneg %p143
      %p359 = pneg %p167
      %p360 = pneg %p164
      %p361 = pneg %p188
      %p362 = pneg %p185
      %p363 = pneg %p209
      %p364 = pneg %p206
      %p365 = pneg %p230
      %p366 = pneg %p227
      %p367 = pneg %p258
      %p368 = pneg %p255
      %s369 = smul.u32 2, %s25
      %p370 = scmp.lt.s32.totalorder %s24, 1
      %s371 = scalar_select %p370, %s24, 1
      %p372 = scmp.lt.s32.totalorder %s369, 1
      %s373 = scalar_select %p372, %s369, 1
      %s374 = smul.addr %s373, 2
      %s375 = smul.addr %s371, 4
      %s376 = sadd.s32 %s374, %s375
      %s377 = smul.addr %s376, 4
      %s378 = scalar_lea.vmem %s9, %s377
      %s379 = smul.u32 2, %s25
      %p380 = scmp.lt.s32.totalorder %s24, 1
      %s381 = scalar_select %p380, %s24, 1
      %p382 = scmp.lt.s32.totalorder %s379, 1
      %s383 = scalar_select %p382, %s379, 1
      %s384 = smul.addr %s381, 2
      %s385 = sadd.s32 %s383, %s384
      %s386 = smul.addr %s385, 4
      %s387 = scalar_lea.vmem %s0, %s386
      %s388 = smul.u32 2, %s25
      %s389 = smul.u32 2, %s25
      %p390 = scmp.lt.s32.totalorder %s24, 1
      %s391 = scalar_select %p390, %s24, 1
      %p392 = scmp.lt.s32.totalorder %s389, 1
      %s393 = scalar_select %p392, %s389, 1
      %s394 = smul.addr %s391, 20
      %s395 = sadd.s32 %s393, %s394
      %s396 = smul.addr %s395, 4
      %s397 = scalar_lea.vmem %s1, %s396
      %s398 = smul.u32 2, %s25
      %s399 = smul.u32 2, %s25
      %p400 = scmp.lt.s32.totalorder %s24, 1
      %s401 = scalar_select %p400, %s24, 1
      %p402 = scmp.lt.s32.totalorder %s399, 1
      %s403 = scalar_select %p402, %s399, 1
      %s404 = smul.addr %s403, 2
      %s405 = smul.addr %s401, 4
      %s406 = sadd.s32 %s404, %s405
      %s407 = smul.addr %s406, 4
      %s408 = scalar_lea.vmem %s9, %s407
      %s409 = smul.u32 2, %s25
      %v411 = vld [vmem:[%s387] sm:$0xf]
      %v412 = vld [vmem:[%s387 + $0x4] sm:$0xf]
      %v413 = vld [vmem:[%s397] sm:$0xf]
      %v414 = vld [vmem:[%s397 + $0x4] sm:$0xf]
      %v415 = vld [vmem:[%s397 + $0x8] sm:$0xf]
      %v416 = vld [vmem:[%s397 + $0xc] sm:$0xf]
      %v417 = vld [vmem:[%s397 + $0x10] sm:$0xf]
      %v418 = vld [vmem:[%s397 + $0x14] sm:$0xf]
      %v419 = vld [vmem:[%s397 + $0x18] sm:$0xf]
      %v420 = vld [vmem:[%s397 + $0x1c] sm:$0xf]
      %v421 = vld [vmem:[%s397 + $0x20] sm:$0xf]
      %v422 = vld [vmem:[%s397 + $0x24] sm:$0xf]
      %v423 = vld [vmem:[%s397 + $0x28] sm:$0xf]
      %v424 = vld [vmem:[%s397 + $0x2c] sm:$0xf]
      %v425 = vld [vmem:[%s397 + $0x30] sm:$0xf]
      %v426 = vld [vmem:[%s397 + $0x34] sm:$0xf]
      %v427 = vld [vmem:[%s397 + $0x38] sm:$0xf]
      %v428 = vld [vmem:[%s397 + $0x3c] sm:$0xf]
      %v429 = vld [vmem:[%s397 + $0x40] sm:$0xf]
      %v430 = vld [vmem:[%s397 + $0x44] sm:$0xf]
      %v431 = vld [vmem:[%s397 + $0x48] sm:$0xf]
      %v432 = vld [vmem:[%s397 + $0x4c] sm:$0xf]
      %v433 = vsub.bf16 %v413, %v411
      %v434 = vsub.bf16 %v414, %v412
      %v435 = vsub.bf16 %v415, %v411
      %v436 = vsub.bf16 %v416, %v412
      %v437 = vsub.bf16 %v417, %v411
      %v438 = vsub.bf16 %v418, %v412
      %v439 = vsub.bf16 %v419, %v411
      %v440 = vsub.bf16 %v420, %v412
      %v441 = vsub.bf16 %v421, %v411
      %v442 = vsub.bf16 %v422, %v412
      %v443 = vsub.bf16 %v423, %v411
      %v444 = vsub.bf16 %v424, %v412
      %v445 = vsub.bf16 %v425, %v411
      %v446 = vsub.bf16 %v426, %v412
      %v447 = vsub.bf16 %v427, %v411
      %v448 = vsub.bf16 %v428, %v412
      %v449 = vsub.bf16 %v429, %v411
      %v450 = vsub.bf16 %v430, %v412
      %v451 = vsub.bf16 %v431, %v411
      %v452 = vsub.bf16 %v432, %v412
      %v453 = vld [vmem:[%s2] sm:$0xf]
      %v454 = vld [vmem:[%s2 + $0x4] sm:$0xf]
      %v455 = vld [vmem:[%s2 + $0x8] sm:$0xf]
      %v456 = vld [vmem:[%s2 + $0xc] sm:$0xf]
      %v457 = vld [vmem:[%s2 + $0x10] sm:$0xf]
      %v458 = vld [vmem:[%s2 + $0x14] sm:$0xf]
      %v459 = vld [vmem:[%s2 + $0x18] sm:$0xf]
      %v460 = vld [vmem:[%s2 + $0x1c] sm:$0xf]
      %v461 = vld [vmem:[%s3] sm:$0xf]
      %v462 = vld [vmem:[%s3 + $0x4] sm:$0xf]
      %v463 = vld [vmem:[%s3 + $0x8] sm:$0xf]
      %v464 = vld [vmem:[%s3 + $0xc] sm:$0xf]
      %v465 = vld [vmem:[%s3 + $0x10] sm:$0xf]
      %v466 = vld [vmem:[%s3 + $0x14] sm:$0xf]
      %v467 = vld [vmem:[%s3 + $0x18] sm:$0xf]
      %v468 = vld [vmem:[%s3 + $0x1c] sm:$0xf]
      %v469 = vld [vmem:[%s4] sm:$0x1]
      %v470 = vld [vmem:[%s5] sm:$0xf]
      %v471 = vld [vmem:[%s5 + $0x4] sm:$0xf]
      %v472 = vld [vmem:[%s5 + $0x8] sm:$0xf]
      %v473 = vld [vmem:[%s5 + $0xc] sm:$0xf]
      %v474 = vld [vmem:[%s5 + $0x10] sm:$0xf]
      %v475 = vld [vmem:[%s5 + $0x14] sm:$0xf]
      %v476 = vld [vmem:[%s5 + $0x18] sm:$0xf]
      %v477 = vld [vmem:[%s5 + $0x1c] sm:$0xf]
      %v478 = vld [vmem:[%s5 + $0x20] sm:$0xf]
      %v479 = vld [vmem:[%s5 + $0x24] sm:$0xf]
      %v480 = vld [vmem:[%s5 + $0x28] sm:$0xf]
      %v481 = vld [vmem:[%s5 + $0x2c] sm:$0xf]
      %v482 = vld [vmem:[%s5 + $0x30] sm:$0xf]
      %v483 = vld [vmem:[%s5 + $0x34] sm:$0xf]
      %v484 = vld [vmem:[%s5 + $0x38] sm:$0xf]
      %v485 = vld [vmem:[%s5 + $0x3c] sm:$0xf]
      %v486 = vld [vmem:[%s6] sm:$0x1]
      %v487 = vld [vmem:[%s7] sm:$0xf]
      %v488 = vld [vmem:[%s7 + $0x4] sm:$0xf]
      %v489 = vld [vmem:[%s7 + $0x8] sm:$0xf]
      %v490 = vld [vmem:[%s7 + $0xc] sm:$0xf]
      %v491 = vld [vmem:[%s7 + $0x10] sm:$0xf]
      %v492 = vld [vmem:[%s7 + $0x14] sm:$0xf]
      %v493 = vld [vmem:[%s7 + $0x18] sm:$0xf]
      %v494 = vld [vmem:[%s7 + $0x1c] sm:$0xf]
      %v495 = vld [vmem:[%s8] sm:$0x1]
      %v497 = vlaneseq
      %v498 = vshrl.u32 %v497, 7
      %v499 = vsub.s32 0, %v498
      %v500 = vrot.slane %v469, %v499
      %v504 = vunpack.c.l.b16 %v411
      %v505 = vunpack.c.l.b16 %v412
      %v506 = vpack.c.b16 %v505, %v504
      %v515 = vunpack.c.l.b16 %v453
      %v516 = vunpack.c.l.b16 %v454
      %v517 = vunpack.c.l.b16 %v455
      %v518 = vunpack.c.l.b16 %v456
      %v519 = vunpack.c.l.b16 %v457
      %v520 = vunpack.c.l.b16 %v458
      %v521 = vunpack.c.l.b16 %v459
      %v522 = vunpack.c.l.b16 %v460
      %v523 = vpack.c.b16 %v516, %v515
      %v524 = vpack.c.b16 %v518, %v517
      %v525 = vpack.c.b16 %v520, %v519
      %v526 = vpack.c.b16 %v522, %v521
      %vm531 = vcmask 523264
      %v533 = vsel %vm531, %v506, 0
      %535 = vmatprep.subr.bf16.mxu0 0
      %536 = vmatpush1.bf16.msra.mxu0 %v523
      %537 = vmatprep.subr.bf16.mxu0 0
      %538 = vmatpush1.bf16.msra.mxu0 %v524
      %539 = vmatprep.subr.bf16.mxu0 0
      %540 = vmatpush1.bf16.msra.mxu0 %v525
      %541 = vmatprep.subr.bf16.mxu0 0
      %542 = vmatpush1.bf16.msra.mxu0 %v526
      %543 = vmatprep.subr.bf16.mxu0 0
      %544 = vmatpush1.bf16.msra.mxu0 0
      %545 = vmatprep.subr.bf16.mxu0 0
      %546 = vmatpush1.bf16.msra.mxu0 0
      %547 = vmatprep.subr.bf16.mxu0 0
      %548 = vmatpush1.bf16.msra.mxu0 0
      %549 = vmatprep.subr.bf16.mxu0 0
      %550 = vmatpush1.bf16.msra.mxu0 0
      %551 = vmatprep.subr.bf16.mxu0 0
      %552 = vmatpush1.bf16.msra.mxu0 0
      %553 = vmatprep.subr.bf16.mxu0 0
      %554 = vmatpush1.bf16.msra.mxu0 0
      %555 = vmatprep.subr.bf16.mxu0 0
      %556 = vmatpush1.bf16.msra.mxu0 0
      %557 = vmatprep.subr.bf16.mxu0 0
      %558 = vmatpush1.bf16.msra.mxu0 0
      %559 = vmatprep.subr.bf16.mxu0 0
      %560 = vmatpush1.bf16.msra.mxu0 0
      %561 = vmatprep.subr.bf16.mxu0 0
      %562 = vmatpush1.bf16.msra.mxu0 0
      %563 = vmatprep.subr.bf16.mxu0 0
      %564 = vmatpush1.bf16.msra.mxu0 0
      %565 = vmatprep.subr.bf16.mxu0 0
      %566 = vmatpush1.bf16.msra.mxu0 0
      %567 = vmatprep.mubr.bf16.mxu0 0
      %568 = vmatmul.mubr.bf16.gmra.mrb[0].mxu0 %v533
      %v569 = vpop.f32.mrb[0].mxu0
      %v570 = vadd.f32 %v500, %v569
      %v571 = vpop.f32.mrb[0].mxu0
      %v572 = vpop.f32.mrb[0].mxu0
      %v573 = vadd.f32 %v500, %v572
      %v574 = vpop.f32.mrb[0].mxu0
      %575 = vdwg.mxu0
      %v596 = vunpack.c.l.b16 %v433
      %v597 = vunpack.c.l.b16 %v434
      %v598 = vunpack.c.l.b16 %v435
      %v599 = vunpack.c.l.b16 %v436
      %v600 = vunpack.c.l.b16 %v437
      %v601 = vunpack.c.l.b16 %v438
      %v602 = vunpack.c.l.b16 %v439
      %v603 = vunpack.c.l.b16 %v440
      %v604 = vunpack.c.l.b16 %v441
      %v605 = vunpack.c.l.b16 %v442
      %v606 = vunpack.c.l.b16 %v443
      %v607 = vunpack.c.l.b16 %v444
      %v608 = vunpack.c.l.b16 %v445
      %v609 = vunpack.c.l.b16 %v446
      %v610 = vunpack.c.l.b16 %v447
      %v611 = vunpack.c.l.b16 %v448
      %v612 = vunpack.c.l.b16 %v449
      %v613 = vunpack.c.l.b16 %v450
      %v614 = vunpack.c.l.b16 %v451
      %v615 = vunpack.c.l.b16 %v452
      %v616 = vpack.c.b16 %v597, %v596
      %v617 = vpack.c.b16 %v599, %v598
      %v618 = vpack.c.b16 %v601, %v600
      %v619 = vpack.c.b16 %v603, %v602
      %v620 = vpack.c.b16 %v605, %v604
      %v621 = vpack.c.b16 %v607, %v606
      %v622 = vpack.c.b16 %v609, %v608
      %v623 = vpack.c.b16 %v611, %v610
      %v624 = vpack.c.b16 %v613, %v612
      %v625 = vpack.c.b16 %v615, %v614
      %v634 = vunpack.c.l.b16 %v461
      %v635 = vunpack.c.l.b16 %v462
      %v636 = vunpack.c.l.b16 %v463
      %v637 = vunpack.c.l.b16 %v464
      %v638 = vunpack.c.l.b16 %v465
      %v639 = vunpack.c.l.b16 %v466
      %v640 = vunpack.c.l.b16 %v467
      %v641 = vunpack.c.l.b16 %v468
      %v642 = vpack.c.b16 %v635, %v634
      %v643 = vpack.c.b16 %v637, %v636
      %v644 = vpack.c.b16 %v639, %v638
      %v645 = vpack.c.b16 %v641, %v640
      %v651 = vsel %vm531, %v616, 0
      %v654 = vsel %vm531, %v617, 0
      %v657 = vsel %vm531, %v618, 0
      %v660 = vsel %vm531, %v619, 0
      %v663 = vsel %vm531, %v620, 0
      %v666 = vsel %vm531, %v621, 0
      %v669 = vsel %vm531, %v622, 0
      %v672 = vsel %vm531, %v623, 0
      %v675 = vsel %vm531, %v624, 0
      %v678 = vsel %vm531, %v625, 0
      %680 = vmatprep.subr.bf16.mxu0 0
      %681 = vmatpush1.bf16.msra.mxu0 %v642
      %682 = vmatprep.subr.bf16.mxu0 0
      %683 = vmatpush1.bf16.msra.mxu0 %v643
      %684 = vmatprep.subr.bf16.mxu0 0
      %685 = vmatpush1.bf16.msra.mxu0 %v644
      %686 = vmatprep.subr.bf16.mxu0 0
      %687 = vmatpush1.bf16.msra.mxu0 %v645
      %688 = vmatprep.subr.bf16.mxu0 0
      %689 = vmatpush1.bf16.msra.mxu0 0
      %690 = vmatprep.subr.bf16.mxu0 0
      %691 = vmatpush1.bf16.msra.mxu0 0
      %692 = vmatprep.subr.bf16.mxu0 0
      %693 = vmatpush1.bf16.msra.mxu0 0
      %694 = vmatprep.subr.bf16.mxu0 0
      %695 = vmatpush1.bf16.msra.mxu0 0
      %696 = vmatprep.subr.bf16.mxu0 0
      %697 = vmatpush1.bf16.msra.mxu0 0
      %698 = vmatprep.subr.bf16.mxu0 0
      %699 = vmatpush1.bf16.msra.mxu0 0
      %700 = vmatprep.subr.bf16.mxu0 0
      %701 = vmatpush1.bf16.msra.mxu0 0
      %702 = vmatprep.subr.bf16.mxu0 0
      %703 = vmatpush1.bf16.msra.mxu0 0
      %704 = vmatprep.subr.bf16.mxu0 0
      %705 = vmatpush1.bf16.msra.mxu0 0
      %706 = vmatprep.subr.bf16.mxu0 0
      %707 = vmatpush1.bf16.msra.mxu0 0
      %708 = vmatprep.subr.bf16.mxu0 0
      %709 = vmatpush1.bf16.msra.mxu0 0
      %710 = vmatprep.subr.bf16.mxu0 0
      %711 = vmatpush1.bf16.msra.mxu0 0
      %712 = vmatprep.mubr.bf16.mxu0 0
      %713 = vmatmul.mubr.bf16.gmra.mrb[0].mxu0 %v651
      %v714 = vpop.f32.mrb[0].mxu0
      %v715 = vadd.f32 0.0, %v714
      %v716 = vpop.f32.mrb[0].mxu0
      %v717 = vpop.f32.mrb[0].mxu0
      %v718 = vadd.f32 0.0, %v717
      %v719 = vpop.f32.mrb[0].mxu0
      %720 = vmatprep.mubr.bf16.mxu0 0
      %721 = vmatmul.mubr.bf16.gmra.mrb[0].mxu0 %v654
      %v722 = vpop.f32.mrb[0].mxu0
      %v723 = vadd.f32 0.0, %v722
      %v724 = vpop.f32.mrb[0].mxu0
      %v725 = vpop.f32.mrb[0].mxu0
      %v726 = vadd.f32 0.0, %v725
      %v727 = vpop.f32.mrb[0].mxu0
      %728 = vmatprep.mubr.bf16.mxu0 0
      %729 = vmatmul.mubr.bf16.gmra.mrb[0].mxu0 %v657
      %v730 = vpop.f32.mrb[0].mxu0
      %v731 = vadd.f32 0.0, %v730
      %v732 = vpop.f32.mrb[0].mxu0
      %v733 = vpop.f32.mrb[0].mxu0
      %v734 = vadd.f32 0.0, %v733
      %v735 = vpop.f32.mrb[0].mxu0
      %736 = vmatprep.mubr.bf16.mxu0 0
      %737 = vmatmul.mubr.bf16.gmra.mrb[0].mxu0 %v660
      %v738 = vpop.f32.mrb[0].mxu0
      %v739 = vadd.f32 0.0, %v738
      %v740 = vpop.f32.mrb[0].mxu0
      %v741 = vpop.f32.mrb[0].mxu0
      %v742 = vadd.f32 0.0, %v741
      %v743 = vpop.f32.mrb[0].mxu0
      %744 = vmatprep.mubr.bf16.mxu0 0
      %745 = vmatmul.mubr.bf16.gmra.mrb[0].mxu0 %v663
      %v746 = vpop.f32.mrb[0].mxu0
      %v747 = vadd.f32 0.0, %v746
      %v748 = vpop.f32.mrb[0].mxu0
      %v749 = vpop.f32.mrb[0].mxu0
      %v750 = vadd.f32 0.0, %v749
      %v751 = vpop.f32.mrb[0].mxu0
      %752 = vmatprep.mubr.bf16.mxu0 0
      %753 = vmatmul.mubr.bf16.gmra.mrb[0].mxu0 %v666
      %v754 = vpop.f32.mrb[0].mxu0
      %v755 = vadd.f32 0.0, %v754
      %v756 = vpop.f32.mrb[0].mxu0
      %v757 = vpop.f32.mrb[0].mxu0
      %v758 = vadd.f32 0.0, %v757
      %v759 = vpop.f32.mrb[0].mxu0
      %760 = vmatprep.mubr.bf16.mxu0 0
      %761 = vmatmul.mubr.bf16.gmra.mrb[0].mxu0 %v669
      %v762 = vpop.f32.mrb[0].mxu0
      %v763 = vadd.f32 0.0, %v762
      %v764 = vpop.f32.mrb[0].mxu0
      %v765 = vpop.f32.mrb[0].mxu0
      %v766 = vadd.f32 0.0, %v765
      %v767 = vpop.f32.mrb[0].mxu0
      %768 = vmatprep.mubr.bf16.mxu0 0
      %769 = vmatmul.mubr.bf16.gmra.mrb[0].mxu0 %v672
      %v770 = vpop.f32.mrb[0].mxu0
      %v771 = vadd.f32 0.0, %v770
      %v772 = vpop.f32.mrb[0].mxu0
      %v773 = vpop.f32.mrb[0].mxu0
      %v774 = vadd.f32 0.0, %v773
      %v775 = vpop.f32.mrb[0].mxu0
      %776 = vmatprep.mubr.bf16.mxu0 0
      %777 = vmatmul.mubr.bf16.gmra.mrb[0].mxu0 %v675
      %v778 = vpop.f32.mrb[0].mxu0
      %v779 = vadd.f32 0.0, %v778
      %v780 = vpop.f32.mrb[0].mxu0
      %v781 = vpop.f32.mrb[0].mxu0
      %v782 = vadd.f32 0.0, %v781
      %v783 = vpop.f32.mrb[0].mxu0
      %784 = vmatprep.mubr.bf16.mxu0 0
      %785 = vmatmul.mubr.bf16.gmra.mrb[0].mxu0 %v678
      %v786 = vpop.f32.mrb[0].mxu0
      %v787 = vadd.f32 0.0, %v786
      %v788 = vpop.f32.mrb[0].mxu0
      %v789 = vpop.f32.mrb[0].mxu0
      %v790 = vadd.f32 0.0, %v789
      %v791 = vpop.f32.mrb[0].mxu0
      %792 = vdwg.mxu0
      %v793 = vadd.f32 %v715, %v570
      %v794 = vadd.f32 %v718, %v573
      %v795 = vadd.f32 %v723, %v570
      %v796 = vadd.f32 %v726, %v573
      %v797 = vadd.f32 %v731, %v570
      %v798 = vadd.f32 %v734, %v573
      %v799 = vadd.f32 %v739, %v570
      %v800 = vadd.f32 %v742, %v573
      %v801 = vadd.f32 %v747, %v570
      %v802 = vadd.f32 %v750, %v573
      %v803 = vadd.f32 %v755, %v570
      %v804 = vadd.f32 %v758, %v573
      %v805 = vadd.f32 %v763, %v570
      %v806 = vadd.f32 %v766, %v573
      %v807 = vadd.f32 %v771, %v570
      %v808 = vadd.f32 %v774, %v573
      %v809 = vadd.f32 %v779, %v570
      %v810 = vadd.f32 %v782, %v573
      %v811 = vadd.f32 %v787, %v570
      %v812 = vadd.f32 %v790, %v573
      %v813 = vmax.f32 %v793, 0.0
      %v814 = vmax.f32 %v794, 0.0
      %v815 = vmax.f32 %v795, 0.0
      %v816 = vmax.f32 %v796, 0.0
      %v817 = vmax.f32 %v797, 0.0
      %v818 = vmax.f32 %v798, 0.0
      %v819 = vmax.f32 %v799, 0.0
      %v820 = vmax.f32 %v800, 0.0
      %v821 = vmax.f32 %v801, 0.0
      %v822 = vmax.f32 %v802, 0.0
      %v823 = vmax.f32 %v803, 0.0
      %v824 = vmax.f32 %v804, 0.0
      %v825 = vmax.f32 %v805, 0.0
      %v826 = vmax.f32 %v806, 0.0
      %v827 = vmax.f32 %v807, 0.0
      %v828 = vmax.f32 %v808, 0.0
      %v829 = vmax.f32 %v809, 0.0
      %v830 = vmax.f32 %v810, 0.0
      %v831 = vmax.f32 %v811, 0.0
      %v832 = vmax.f32 %v812, 0.0
      %v833 = vpack.c.bf16 %v814, %v813
      %v834 = vpack.c.bf16 %v816, %v815
      %v835 = vpack.c.bf16 %v818, %v817
      %v836 = vpack.c.bf16 %v820, %v819
      %v837 = vpack.c.bf16 %v822, %v821
      %v838 = vpack.c.bf16 %v824, %v823
      %v839 = vpack.c.bf16 %v826, %v825
      %v840 = vpack.c.bf16 %v828, %v827
      %v841 = vpack.c.bf16 %v830, %v829
      %v842 = vpack.c.bf16 %v832, %v831
      %v844 = vlaneseq
      %v845 = vshrl.u32 %v844, 7
      %v846 = vsub.s32 0, %v845
      %v847 = vrot.slane %v486, %v846
      %v865 = vunpack.c.l.b16 %v470
      %v866 = vunpack.c.l.b16 %v471
      %v867 = vunpack.c.l.b16 %v472
      %v868 = vunpack.c.l.b16 %v473
      %v869 = vunpack.c.l.b16 %v474
      %v870 = vunpack.c.l.b16 %v475
      %v871 = vunpack.c.l.b16 %v476
      %v872 = vunpack.c.l.b16 %v477
      %v873 = vunpack.c.l.b16 %v478
      %v874 = vunpack.c.l.b16 %v479
      %v875 = vunpack.c.l.b16 %v480
      %v876 = vunpack.c.l.b16 %v481
      %v877 = vunpack.c.l.b16 %v482
      %v878 = vunpack.c.l.b16 %v483
      %v879 = vunpack.c.l.b16 %v484
      %v880 = vunpack.c.l.b16 %v485
      %v881 = vpack.c.b16 %v866, %v865
      %v882 = vpack.c.b16 %v868, %v867
      %v883 = vpack.c.b16 %v870, %v869
      %v884 = vpack.c.b16 %v872, %v871
      %v885 = vpack.c.b16 %v874, %v873
      %v886 = vpack.c.b16 %v876, %v875
      %v887 = vpack.c.b16 %v878, %v877
      %v888 = vpack.c.b16 %v880, %v879
      %897 = vmatprep.subr.bf16.mxu0 0
      %898 = vmatpush1.bf16.msra.mxu0 %v881
      %899 = vmatprep.subr.bf16.mxu0 0
      %900 = vmatpush1.bf16.msra.mxu0 %v882
      %901 = vmatprep.subr.bf16.mxu0 0
      %902 = vmatpush1.bf16.msra.mxu0 %v883
      %903 = vmatprep.subr.bf16.mxu0 0
      %904 = vmatpush1.bf16.msra.mxu0 %v884
      %905 = vmatprep.subr.bf16.mxu0 0
      %906 = vmatpush1.bf16.msra.mxu0 %v885
      %907 = vmatprep.subr.bf16.mxu0 0
      %908 = vmatpush1.bf16.msra.mxu0 %v886
      %909 = vmatprep.subr.bf16.mxu0 0
      %910 = vmatpush1.bf16.msra.mxu0 %v887
      %911 = vmatprep.subr.bf16.mxu0 0
      %912 = vmatpush1.bf16.msra.mxu0 %v888
      %913 = vmatprep.subr.bf16.mxu0 0
      %914 = vmatpush1.bf16.msra.mxu0 0
      %915 = vmatprep.subr.bf16.mxu0 0
      %916 = vmatpush1.bf16.msra.mxu0 0
      %917 = vmatprep.subr.bf16.mxu0 0
      %918 = vmatpush1.bf16.msra.mxu0 0
      %919 = vmatprep.subr.bf16.mxu0 0
      %920 = vmatpush1.bf16.msra.mxu0 0
      %921 = vmatprep.subr.bf16.mxu0 0
      %922 = vmatpush1.bf16.msra.mxu0 0
      %923 = vmatprep.subr.bf16.mxu0 0
      %924 = vmatpush1.bf16.msra.mxu0 0
      %925 = vmatprep.subr.bf16.mxu0 0
      %926 = vmatpush1.bf16.msra.mxu0 0
      %927 = vmatprep.subr.bf16.mxu0 0
      %928 = vmatpush1.bf16.msra.mxu0 0
      %929 = vmatprep.mubr.bf16.mxu0 0
      %930 = vmatmul.mubr.bf16.gmra.mrb[0].mxu0 %v833
      %v931 = vpop.f32.mrb[0].mxu0
      %v932 = vadd.f32 %v847, %v931
      %v933 = vpop.f32.mrb[0].mxu0
      %v934 = vpop.f32.mrb[0].mxu0
      %v935 = vadd.f32 %v847, %v934
      %v936 = vpop.f32.mrb[0].mxu0
      %937 = vmatprep.mubr.bf16.mxu0 0
      %938 = vmatmul.mubr.bf16.gmra.mrb[0].mxu0 %v834
      %v939 = vpop.f32.mrb[0].mxu0
      %v940 = vadd.f32 %v847, %v939
      %v941 = vpop.f32.mrb[0].mxu0
      %v942 = vpop.f32.mrb[0].mxu0
      %v943 = vadd.f32 %v847, %v942
      %v944 = vpop.f32.mrb[0].mxu0
      %945 = vmatprep.mubr.bf16.mxu0 0
      %946 = vmatmul.mubr.bf16.gmra.mrb[0].mxu0 %v835
      %v947 = vpop.f32.mrb[0].mxu0
      %v948 = vadd.f32 %v847, %v947
      %v949 = vpop.f32.mrb[0].mxu0
      %v950 = vpop.f32.mrb[0].mxu0
      %v951 = vadd.f32 %v847, %v950
      %v952 = vpop.f32.mrb[0].mxu0
      %953 = vmatprep.mubr.bf16.mxu0 0
      %954 = vmatmul.mubr.bf16.gmra.mrb[0].mxu0 %v836
      %v955 = vpop.f32.mrb[0].mxu0
      %v956 = vadd.f32 %v847, %v955
      %v957 = vpop.f32.mrb[0].mxu0
      %v958 = vpop.f32.mrb[0].mxu0
      %v959 = vadd.f32 %v847, %v958
      %v960 = vpop.f32.mrb[0].mxu0
      %961 = vmatprep.mubr.bf16.mxu0 0
      %962 = vmatmul.mubr.bf16.gmra.mrb[0].mxu0 %v837
      %v963 = vpop.f32.mrb[0].mxu0
      %v964 = vadd.f32 %v847, %v963
      %v965 = vpop.f32.mrb[0].mxu0
      %v966 = vpop.f32.mrb[0].mxu0
      %v967 = vadd.f32 %v847, %v966
      %v968 = vpop.f32.mrb[0].mxu0
      %969 = vmatprep.mubr.bf16.mxu0 0
      %970 = vmatmul.mubr.bf16.gmra.mrb[0].mxu0 %v838
      %v971 = vpop.f32.mrb[0].mxu0
      %v972 = vadd.f32 %v847, %v971
      %v973 = vpop.f32.mrb[0].mxu0
      %v974 = vpop.f32.mrb[0].mxu0
      %v975 = vadd.f32 %v847, %v974
      %v976 = vpop.f32.mrb[0].mxu0
      %977 = vmatprep.mubr.bf16.mxu0 0
      %978 = vmatmul.mubr.bf16.gmra.mrb[0].mxu0 %v839
      %v979 = vpop.f32.mrb[0].mxu0
      %v980 = vadd.f32 %v847, %v979
      %v981 = vpop.f32.mrb[0].mxu0
      %v982 = vpop.f32.mrb[0].mxu0
      %v983 = vadd.f32 %v847, %v982
      %v984 = vpop.f32.mrb[0].mxu0
      %985 = vmatprep.mubr.bf16.mxu0 0
      %986 = vmatmul.mubr.bf16.gmra.mrb[0].mxu0 %v840
      %v987 = vpop.f32.mrb[0].mxu0
      %v988 = vadd.f32 %v847, %v987
      %v989 = vpop.f32.mrb[0].mxu0
      %v990 = vpop.f32.mrb[0].mxu0
      %v991 = vadd.f32 %v847, %v990
      %v992 = vpop.f32.mrb[0].mxu0
      %993 = vmatprep.mubr.bf16.mxu0 0
      %994 = vmatmul.mubr.bf16.gmra.mrb[0].mxu0 %v841
      %v995 = vpop.f32.mrb[0].mxu0
      %v996 = vadd.f32 %v847, %v995
      %v997 = vpop.f32.mrb[0].mxu0
      %v998 = vpop.f32.mrb[0].mxu0
      %v999 = vadd.f32 %v847, %v998
      %v1000 = vpop.f32.mrb[0].mxu0
      %1001 = vmatprep.mubr.bf16.mxu0 0
      %1002 = vmatmul.mubr.bf16.gmra.mrb[0].mxu0 %v842
      %v1003 = vpop.f32.mrb[0].mxu0
      %v1004 = vadd.f32 %v847, %v1003
      %v1005 = vpop.f32.mrb[0].mxu0
      %v1006 = vpop.f32.mrb[0].mxu0
      %v1007 = vadd.f32 %v847, %v1006
      %v1008 = vpop.f32.mrb[0].mxu0
      %1009 = vdwg.mxu0
      %v1010 = vmax.f32 %v932, 0.0
      %v1011 = vmax.f32 %v935, 0.0
      %v1012 = vmax.f32 %v940, 0.0
      %v1013 = vmax.f32 %v943, 0.0
      %v1014 = vmax.f32 %v948, 0.0
      %v1015 = vmax.f32 %v951, 0.0
      %v1016 = vmax.f32 %v956, 0.0
      %v1017 = vmax.f32 %v959, 0.0
      %v1018 = vmax.f32 %v964, 0.0
      %v1019 = vmax.f32 %v967, 0.0
      %v1020 = vmax.f32 %v972, 0.0
      %v1021 = vmax.f32 %v975, 0.0
      %v1022 = vmax.f32 %v980, 0.0
      %v1023 = vmax.f32 %v983, 0.0
      %v1024 = vmax.f32 %v988, 0.0
      %v1025 = vmax.f32 %v991, 0.0
      %v1026 = vmax.f32 %v996, 0.0
      %v1027 = vmax.f32 %v999, 0.0
      %v1028 = vmax.f32 %v1004, 0.0
      %v1029 = vmax.f32 %v1007, 0.0
      %v1030 = vpack.c.bf16 %v1011, %v1010
      %v1031 = vpack.c.bf16 %v1013, %v1012
      %v1032 = vpack.c.bf16 %v1015, %v1014
      %v1033 = vpack.c.bf16 %v1017, %v1016
      %v1034 = vpack.c.bf16 %v1019, %v1018
      %v1035 = vpack.c.bf16 %v1021, %v1020
      %v1036 = vpack.c.bf16 %v1023, %v1022
      %v1037 = vpack.c.bf16 %v1025, %v1024
      %v1038 = vpack.c.bf16 %v1027, %v1026
      %v1039 = vpack.c.bf16 %v1029, %v1028
      %v1041 = vlaneseq
      %v1042 = vshrl.u32 %v1041, 7
      %v1043 = vsub.s32 0, %v1042
      %v1044 = vrot.slane %v495, %v1043
      %v1054 = vunpack.c.l.b16 %v487
      %v1055 = vunpack.c.l.b16 %v488
      %v1056 = vunpack.c.l.b16 %v489
      %v1057 = vunpack.c.l.b16 %v490
      %v1058 = vunpack.c.l.b16 %v491
      %v1059 = vunpack.c.l.b16 %v492
      %v1060 = vunpack.c.l.b16 %v493
      %v1061 = vunpack.c.l.b16 %v494
      %v1062 = vpack.c.b16 %v1055, %v1054
      %v1063 = vpack.c.b16 %v1057, %v1056
      %v1064 = vpack.c.b16 %v1059, %v1058
      %v1065 = vpack.c.b16 %v1061, %v1060
      %v1071 = vsel %vm531, %v1030, 0
      %v1074 = vsel %vm531, %v1031, 0
      %v1077 = vsel %vm531, %v1032, 0
      %v1080 = vsel %vm531, %v1033, 0
      %v1083 = vsel %vm531, %v1034, 0
      %v1086 = vsel %vm531, %v1035, 0
      %v1089 = vsel %vm531, %v1036, 0
      %v1092 = vsel %vm531, %v1037, 0
      %v1095 = vsel %vm531, %v1038, 0
      %v1098 = vsel %vm531, %v1039, 0
      %1100 = vmatprep.subr.bf16.mxu0 0
      %1101 = vmatpush1.bf16.msra.mxu0 %v1062
      %1102 = vmatprep.subr.bf16.mxu0 0
      %1103 = vmatpush1.bf16.msra.mxu0 %v1063
      %1104 = vmatprep.subr.bf16.mxu0 0
      %1105 = vmatpush1.bf16.msra.mxu0 %v1064
      %1106 = vmatprep.subr.bf16.mxu0 0
      %1107 = vmatpush1.bf16.msra.mxu0 %v1065
      %1108 = vmatprep.subr.bf16.mxu0 0
      %1109 = vmatpush1.bf16.msra.mxu0 0
      %1110 = vmatprep.subr.bf16.mxu0 0
      %1111 = vmatpush1.bf16.msra.mxu0 0
      %1112 = vmatprep.subr.bf16.mxu0 0
      %1113 = vmatpush1.bf16.msra.mxu0 0
      %1114 = vmatprep.subr.bf16.mxu0 0
      %1115 = vmatpush1.bf16.msra.mxu0 0
      %1116 = vmatprep.subr.bf16.mxu0 0
      %1117 = vmatpush1.bf16.msra.mxu0 0
      %1118 = vmatprep.subr.bf16.mxu0 0
      %1119 = vmatpush1.bf16.msra.mxu0 0
      %1120 = vmatprep.subr.bf16.mxu0 0
      %1121 = vmatpush1.bf16.msra.mxu0 0
      %1122 = vmatprep.subr.bf16.mxu0 0
      %1123 = vmatpush1.bf16.msra.mxu0 0
      %1124 = vmatprep.subr.bf16.mxu0 0
      %1125 = vmatpush1.bf16.msra.mxu0 0
      %1126 = vmatprep.subr.bf16.mxu0 0
      %1127 = vmatpush1.bf16.msra.mxu0 0
      %1128 = vmatprep.subr.bf16.mxu0 0
      %1129 = vmatpush1.bf16.msra.mxu0 0
      %1130 = vmatprep.subr.bf16.mxu0 0
      %1131 = vmatpush1.bf16.msra.mxu0 0
      %1132 = vmatprep.mubr.bf16.mxu0 0
      %1133 = vmatmul.mubr.bf16.gmra.mrb[0].mxu0 %v1071
      %v1134 = vpop.f32.mrb[0].mxu0
      %v1135 = vadd.f32 %v1044, %v1134
      %v1136 = vpop.f32.mrb[0].mxu0
      %v1137 = vpop.f32.mrb[0].mxu0
      %v1138 = vadd.f32 %v1044, %v1137
      %v1139 = vpop.f32.mrb[0].mxu0
      %1140 = vmatprep.mubr.bf16.mxu0 0
      %1141 = vmatmul.mubr.bf16.gmra.mrb[0].mxu0 %v1074
      %v1142 = vpop.f32.mrb[0].mxu0
      %v1143 = vadd.f32 %v1044, %v1142
      %v1144 = vpop.f32.mrb[0].mxu0
      %v1145 = vpop.f32.mrb[0].mxu0
      %v1146 = vadd.f32 %v1044, %v1145
      %v1147 = vpop.f32.mrb[0].mxu0
      %1148 = vmatprep.mubr.bf16.mxu0 0
      %1149 = vmatmul.mubr.bf16.gmra.mrb[0].mxu0 %v1077
      %v1150 = vpop.f32.mrb[0].mxu0
      %v1151 = vadd.f32 %v1044, %v1150
      %v1152 = vpop.f32.mrb[0].mxu0
      %v1153 = vpop.f32.mrb[0].mxu0
      %v1154 = vadd.f32 %v1044, %v1153
      %v1155 = vpop.f32.mrb[0].mxu0
      %1156 = vmatprep.mubr.bf16.mxu0 0
      %1157 = vmatmul.mubr.bf16.gmra.mrb[0].mxu0 %v1080
      %v1158 = vpop.f32.mrb[0].mxu0
      %v1159 = vadd.f32 %v1044, %v1158
      %v1160 = vpop.f32.mrb[0].mxu0
      %v1161 = vpop.f32.mrb[0].mxu0
      %v1162 = vadd.f32 %v1044, %v1161
      %v1163 = vpop.f32.mrb[0].mxu0
      %1164 = vmatprep.mubr.bf16.mxu0 0
      %1165 = vmatmul.mubr.bf16.gmra.mrb[0].mxu0 %v1083
      %v1166 = vpop.f32.mrb[0].mxu0
      %v1167 = vadd.f32 %v1044, %v1166
      %v1168 = vpop.f32.mrb[0].mxu0
      %v1169 = vpop.f32.mrb[0].mxu0
      %v1170 = vadd.f32 %v1044, %v1169
      %v1171 = vpop.f32.mrb[0].mxu0
      %1172 = vmatprep.mubr.bf16.mxu0 0
      %1173 = vmatmul.mubr.bf16.gmra.mrb[0].mxu0 %v1086
      %v1174 = vpop.f32.mrb[0].mxu0
      %v1175 = vadd.f32 %v1044, %v1174
      %v1176 = vpop.f32.mrb[0].mxu0
      %v1177 = vpop.f32.mrb[0].mxu0
      %v1178 = vadd.f32 %v1044, %v1177
      %v1179 = vpop.f32.mrb[0].mxu0
      %1180 = vmatprep.mubr.bf16.mxu0 0
      %1181 = vmatmul.mubr.bf16.gmra.mrb[0].mxu0 %v1089
      %v1182 = vpop.f32.mrb[0].mxu0
      %v1183 = vadd.f32 %v1044, %v1182
      %v1184 = vpop.f32.mrb[0].mxu0
      %v1185 = vpop.f32.mrb[0].mxu0
      %v1186 = vadd.f32 %v1044, %v1185
      %v1187 = vpop.f32.mrb[0].mxu0
      %1188 = vmatprep.mubr.bf16.mxu0 0
      %1189 = vmatmul.mubr.bf16.gmra.mrb[0].mxu0 %v1092
      %v1190 = vpop.f32.mrb[0].mxu0
      %v1191 = vadd.f32 %v1044, %v1190
      %v1192 = vpop.f32.mrb[0].mxu0
      %v1193 = vpop.f32.mrb[0].mxu0
      %v1194 = vadd.f32 %v1044, %v1193
      %v1195 = vpop.f32.mrb[0].mxu0
      %1196 = vmatprep.mubr.bf16.mxu0 0
      %1197 = vmatmul.mubr.bf16.gmra.mrb[0].mxu0 %v1095
      %v1198 = vpop.f32.mrb[0].mxu0
      %v1199 = vadd.f32 %v1044, %v1198
      %v1200 = vpop.f32.mrb[0].mxu0
      %v1201 = vpop.f32.mrb[0].mxu0
      %v1202 = vadd.f32 %v1044, %v1201
      %v1203 = vpop.f32.mrb[0].mxu0
      %1204 = vmatprep.mubr.bf16.mxu0 0
      %1205 = vmatmul.mubr.bf16.gmra.mrb[0].mxu0 %v1098
      %v1206 = vpop.f32.mrb[0].mxu0
      %v1207 = vadd.f32 %v1044, %v1206
      %v1208 = vpop.f32.mrb[0].mxu0
      %v1209 = vpop.f32.mrb[0].mxu0
      %v1210 = vadd.f32 %v1044, %v1209
      %v1211 = vpop.f32.mrb[0].mxu0
      %1212 = vdwg.mxu0
      %v1213 = vmax.f32 %v1135, 0.0
      %v1214 = vmax.f32 %v1138, 0.0
      %v1215 = vmax.f32 %v1143, 0.0
      %v1216 = vmax.f32 %v1146, 0.0
      %v1217 = vmax.f32 %v1151, 0.0
      %v1218 = vmax.f32 %v1154, 0.0
      %v1219 = vmax.f32 %v1159, 0.0
      %v1220 = vmax.f32 %v1162, 0.0
      %v1221 = vmax.f32 %v1167, 0.0
      %v1222 = vmax.f32 %v1170, 0.0
      %v1223 = vmax.f32 %v1175, 0.0
      %v1224 = vmax.f32 %v1178, 0.0
      %v1225 = vmax.f32 %v1183, 0.0
      %v1226 = vmax.f32 %v1186, 0.0
      %v1227 = vmax.f32 %v1191, 0.0
      %v1228 = vmax.f32 %v1194, 0.0
      %v1229 = vmax.f32 %v1199, 0.0
      %v1230 = vmax.f32 %v1202, 0.0
      %v1231 = vmax.f32 %v1207, 0.0
      %v1232 = vmax.f32 %v1210, 0.0
      %v1233 = vsel %vm531, %v1213, -inf
      %v1234 = vsel %vm531, %v1215, -inf
      %v1235 = vsel %vm531, %v1217, -inf
      %v1236 = vmax.f32 %v1233, %v1235
      %v1237 = vsel %vm531, %v1219, -inf
      %v1238 = vmax.f32 %v1234, %v1237
      %v1239 = vsel %vm531, %v1221, -inf
      %v1240 = vmax.f32 %v1236, %v1239
      %v1241 = vsel %vm531, %v1223, -inf
      %v1242 = vmax.f32 %v1238, %v1241
      %v1243 = vsel %vm531, %v1225, -inf
      %v1244 = vmax.f32 %v1240, %v1243
      %v1245 = vsel %vm531, %v1227, -inf
      %v1246 = vmax.f32 %v1242, %v1245
      %v1247 = vsel %vm531, %v1229, -inf
      %v1248 = vmax.f32 %v1244, %v1247
      %v1249 = vsel %vm531, %v1231, -inf
      %v1250 = vmax.f32 %v1246, %v1249
      %v1251 = vmax.f32 %v1248, %v1250
      %v1252 = vsel %vm531, %v1214, -inf
      %v1253 = vsel %vm531, %v1216, -inf
      %v1254 = vsel %vm531, %v1218, -inf
      %v1255 = vmax.f32 %v1252, %v1254
      %v1256 = vsel %vm531, %v1220, -inf
      %v1257 = vmax.f32 %v1253, %v1256
      %v1258 = vsel %vm531, %v1222, -inf
      %v1259 = vmax.f32 %v1255, %v1258
      %v1260 = vsel %vm531, %v1224, -inf
      %v1261 = vmax.f32 %v1257, %v1260
      %v1262 = vsel %vm531, %v1226, -inf
      %v1263 = vmax.f32 %v1259, %v1262
      %v1264 = vsel %vm531, %v1228, -inf
      %v1265 = vmax.f32 %v1261, %v1264
      %v1266 = vsel %vm531, %v1230, -inf
      %v1267 = vmax.f32 %v1263, %v1266
      %v1268 = vsel %vm531, %v1232, -inf
      %v1269 = vmax.f32 %v1265, %v1268
      %v1270 = vmax.f32 %v1267, %v1269
      %s1271 = scalar_lea.vmem %s2, 32
      %v1272 = vld [vmem:[%s1271] sm:$0xf]
      %v1273 = vld [vmem:[%s1271 + $0x4] sm:$0xf]
      %v1274 = vld [vmem:[%s1271 + $0x8] sm:$0xf]
      %v1275 = vld [vmem:[%s1271 + $0xc] sm:$0xf]
      %v1276 = vld [vmem:[%s1271 + $0x10] sm:$0xf]
      %v1277 = vld [vmem:[%s1271 + $0x14] sm:$0xf]
      %v1278 = vld [vmem:[%s1271 + $0x18] sm:$0xf]
      %v1279 = vld [vmem:[%s1271 + $0x1c] sm:$0xf]
      %s1280 = scalar_lea.vmem %s3, 32
      %v1281 = vld [vmem:[%s1280] sm:$0xf]
      %v1282 = vld [vmem:[%s1280 + $0x4] sm:$0xf]
      %v1283 = vld [vmem:[%s1280 + $0x8] sm:$0xf]
      %v1284 = vld [vmem:[%s1280 + $0xc] sm:$0xf]
      %v1285 = vld [vmem:[%s1280 + $0x10] sm:$0xf]
      %v1286 = vld [vmem:[%s1280 + $0x14] sm:$0xf]
      %v1287 = vld [vmem:[%s1280 + $0x18] sm:$0xf]
      %v1288 = vld [vmem:[%s1280 + $0x1c] sm:$0xf]
      %s1289 = scalar_lea.vmem %s4, 1
      %v1290 = vld [vmem:[%s1289] sm:$0x1]
      %s1291 = scalar_lea.vmem %s5, 64
      %v1292 = vld [vmem:[%s1291] sm:$0xf]
      %v1293 = vld [vmem:[%s1291 + $0x4] sm:$0xf]
      %v1294 = vld [vmem:[%s1291 + $0x8] sm:$0xf]
      %v1295 = vld [vmem:[%s1291 + $0xc] sm:$0xf]
      %v1296 = vld [vmem:[%s1291 + $0x10] sm:$0xf]
      %v1297 = vld [vmem:[%s1291 + $0x14] sm:$0xf]
      %v1298 = vld [vmem:[%s1291 + $0x18] sm:$0xf]
      %v1299 = vld [vmem:[%s1291 + $0x1c] sm:$0xf]
      %v1300 = vld [vmem:[%s1291 + $0x20] sm:$0xf]
      %v1301 = vld [vmem:[%s1291 + $0x24] sm:$0xf]
      %v1302 = vld [vmem:[%s1291 + $0x28] sm:$0xf]
      %v1303 = vld [vmem:[%s1291 + $0x2c] sm:$0xf]
      %v1304 = vld [vmem:[%s1291 + $0x30] sm:$0xf]
      %v1305 = vld [vmem:[%s1291 + $0x34] sm:$0xf]
      %v1306 = vld [vmem:[%s1291 + $0x38] sm:$0xf]
      %v1307 = vld [vmem:[%s1291 + $0x3c] sm:$0xf]
      %s1308 = scalar_lea.vmem %s6, 1
      %v1309 = vld [vmem:[%s1308] sm:$0x1]
      %s1310 = scalar_lea.vmem %s7, 32
      %v1311 = vld [vmem:[%s1310] sm:$0xf]
      %v1312 = vld [vmem:[%s1310 + $0x4] sm:$0xf]
      %v1313 = vld [vmem:[%s1310 + $0x8] sm:$0xf]
      %v1314 = vld [vmem:[%s1310 + $0xc] sm:$0xf]
      %v1315 = vld [vmem:[%s1310 + $0x10] sm:$0xf]
      %v1316 = vld [vmem:[%s1310 + $0x14] sm:$0xf]
      %v1317 = vld [vmem:[%s1310 + $0x18] sm:$0xf]
      %v1318 = vld [vmem:[%s1310 + $0x1c] sm:$0xf]
      %s1319 = scalar_lea.vmem %s8, 1
      %v1320 = vld [vmem:[%s1319] sm:$0x1]
      %v1322 = vlaneseq
      %v1323 = vshrl.u32 %v1322, 7
      %v1324 = vsub.s32 0, %v1323
      %v1325 = vrot.slane %v1290, %v1324
      %v1335 = vunpack.c.l.b16 %v1272
      %v1336 = vunpack.c.l.b16 %v1273
      %v1337 = vunpack.c.l.b16 %v1274
      %v1338 = vunpack.c.l.b16 %v1275
      %v1339 = vunpack.c.l.b16 %v1276
      %v1340 = vunpack.c.l.b16 %v1277
      %v1341 = vunpack.c.l.b16 %v1278
      %v1342 = vunpack.c.l.b16 %v1279
      %v1343 = vpack.c.b16 %v1336, %v1335
      %v1344 = vpack.c.b16 %v1338, %v1337
      %v1345 = vpack.c.b16 %v1340, %v1339
      %v1346 = vpack.c.b16 %v1342, %v1341
      %1351 = vmatprep.subr.bf16.mxu0 0
      %1352 = vmatpush1.bf16.msra.mxu0 %v1343
      %1353 = vmatprep.subr.bf16.mxu0 0
      %1354 = vmatpush1.bf16.msra.mxu0 %v1344
      %1355 = vmatprep.subr.bf16.mxu0 0
      %1356 = vmatpush1.bf16.msra.mxu0 %v1345
      %1357 = vmatprep.subr.bf16.mxu0 0
      %1358 = vmatpush1.bf16.msra.mxu0 %v1346
      %1359 = vmatprep.subr.bf16.mxu0 0
      %1360 = vmatpush1.bf16.msra.mxu0 0
      %1361 = vmatprep.subr.bf16.mxu0 0
      %1362 = vmatpush1.bf16.msra.mxu0 0
      %1363 = vmatprep.subr.bf16.mxu0 0
      %1364 = vmatpush1.bf16.msra.mxu0 0
      %1365 = vmatprep.subr.bf16.mxu0 0
      %1366 = vmatpush1.bf16.msra.mxu0 0
      %1367 = vmatprep.subr.bf16.mxu0 0
      %1368 = vmatpush1.bf16.msra.mxu0 0
      %1369 = vmatprep.subr.bf16.mxu0 0
      %1370 = vmatpush1.bf16.msra.mxu0 0
      %1371 = vmatprep.subr.bf16.mxu0 0
      %1372 = vmatpush1.bf16.msra.mxu0 0
      %1373 = vmatprep.subr.bf16.mxu0 0
      %1374 = vmatpush1.bf16.msra.mxu0 0
      %1375 = vmatprep.subr.bf16.mxu0 0
      %1376 = vmatpush1.bf16.msra.mxu0 0
      %1377 = vmatprep.subr.bf16.mxu0 0
      %1378 = vmatpush1.bf16.msra.mxu0 0
      %1379 = vmatprep.subr.bf16.mxu0 0
      %1380 = vmatpush1.bf16.msra.mxu0 0
      %1381 = vmatprep.subr.bf16.mxu0 0
      %1382 = vmatpush1.bf16.msra.mxu0 0
      %1383 = vmatprep.mubr.bf16.mxu0 0
      %1384 = vmatmul.mubr.bf16.gmra.mrb[0].mxu0 %v533
      %v1385 = vpop.f32.mrb[0].mxu0
      %v1386 = vadd.f32 %v1325, %v1385
      %v1387 = vpop.f32.mrb[0].mxu0
      %v1388 = vpop.f32.mrb[0].mxu0
      %v1389 = vadd.f32 %v1325, %v1388
      %v1390 = vpop.f32.mrb[0].mxu0
      %1391 = vdwg.mxu0
      %v1400 = vunpack.c.l.b16 %v1281
      %v1401 = vunpack.c.l.b16 %v1282
      %v1402 = vunpack.c.l.b16 %v1283
      %v1403 = vunpack.c.l.b16 %v1284
      %v1404 = vunpack.c.l.b16 %v1285
      %v1405 = vunpack.c.l.b16 %v1286
      %v1406 = vunpack.c.l.b16 %v1287
      %v1407 = vunpack.c.l.b16 %v1288
      %v1408 = vpack.c.b16 %v1401, %v1400
      %v1409 = vpack.c.b16 %v1403, %v1402
      %v1410 = vpack.c.b16 %v1405, %v1404
      %v1411 = vpack.c.b16 %v1407, %v1406
      %1416 = vmatprep.subr.bf16.mxu0 0
      %1417 = vmatpush1.bf16.msra.mxu0 %v1408
      %1418 = vmatprep.subr.bf16.mxu0 0
      %1419 = vmatpush1.bf16.msra.mxu0 %v1409
      %1420 = vmatprep.subr.bf16.mxu0 0
      %1421 = vmatpush1.bf16.msra.mxu0 %v1410
      %1422 = vmatprep.subr.bf16.mxu0 0
      %1423 = vmatpush1.bf16.msra.mxu0 %v1411
      %1424 = vmatprep.subr.bf16.mxu0 0
      %1425 = vmatpush1.bf16.msra.mxu0 0
      %1426 = vmatprep.subr.bf16.mxu0 0
      %1427 = vmatpush1.bf16.msra.mxu0 0
      %1428 = vmatprep.subr.bf16.mxu0 0
      %1429 = vmatpush1.bf16.msra.mxu0 0
      %1430 = vmatprep.subr.bf16.mxu0 0
      %1431 = vmatpush1.bf16.msra.mxu0 0
      %1432 = vmatprep.subr.bf16.mxu0 0
      %1433 = vmatpush1.bf16.msra.mxu0 0
      %1434 = vmatprep.subr.bf16.mxu0 0
      %1435 = vmatpush1.bf16.msra.mxu0 0
      %1436 = vmatprep.subr.bf16.mxu0 0
      %1437 = vmatpush1.bf16.msra.mxu0 0
      %1438 = vmatprep.subr.bf16.mxu0 0
      %1439 = vmatpush1.bf16.msra.mxu0 0
      %1440 = vmatprep.subr.bf16.mxu0 0
      %1441 = vmatpush1.bf16.msra.mxu0 0
      %1442 = vmatprep.subr.bf16.mxu0 0
      %1443 = vmatpush1.bf16.msra.mxu0 0
      %1444 = vmatprep.subr.bf16.mxu0 0
      %1445 = vmatpush1.bf16.msra.mxu0 0
      %1446 = vmatprep.subr.bf16.mxu0 0
      %1447 = vmatpush1.bf16.msra.mxu0 0
      %1448 = vmatprep.mubr.bf16.mxu0 0
      %1449 = vmatmul.mubr.bf16.gmra.mrb[0].mxu0 %v651
      %v1450 = vpop.f32.mrb[0].mxu0
      %v1451 = vadd.f32 0.0, %v1450
      %v1452 = vpop.f32.mrb[0].mxu0
      %v1453 = vpop.f32.mrb[0].mxu0
      %v1454 = vadd.f32 0.0, %v1453
      %v1455 = vpop.f32.mrb[0].mxu0
      %1456 = vmatprep.mubr.bf16.mxu0 0
      %1457 = vmatmul.mubr.bf16.gmra.mrb[0].mxu0 %v654
      %v1458 = vpop.f32.mrb[0].mxu0
      %v1459 = vadd.f32 0.0, %v1458
      %v1460 = vpop.f32.mrb[0].mxu0
      %v1461 = vpop.f32.mrb[0].mxu0
      %v1462 = vadd.f32 0.0, %v1461
      %v1463 = vpop.f32.mrb[0].mxu0
      %1464 = vmatprep.mubr.bf16.mxu0 0
      %1465 = vmatmul.mubr.bf16.gmra.mrb[0].mxu0 %v657
      %v1466 = vpop.f32.mrb[0].mxu0
      %v1467 = vadd.f32 0.0, %v1466
      %v1468 = vpop.f32.mrb[0].mxu0
      %v1469 = vpop.f32.mrb[0].mxu0
      %v1470 = vadd.f32 0.0, %v1469
      %v1471 = vpop.f32.mrb[0].mxu0
      %1472 = vmatprep.mubr.bf16.mxu0 0
      %1473 = vmatmul.mubr.bf16.gmra.mrb[0].mxu0 %v660
      %v1474 = vpop.f32.mrb[0].mxu0
      %v1475 = vadd.f32 0.0, %v1474
      %v1476 = vpop.f32.mrb[0].mxu0
      %v1477 = vpop.f32.mrb[0].mxu0
      %v1478 = vadd.f32 0.0, %v1477
      %v1479 = vpop.f32.mrb[0].mxu0
      %1480 = vmatprep.mubr.bf16.mxu0 0
      %1481 = vmatmul.mubr.bf16.gmra.mrb[0].mxu0 %v663
      %v1482 = vpop.f32.mrb[0].mxu0
      %v1483 = vadd.f32 0.0, %v1482
      %v1484 = vpop.f32.mrb[0].mxu0
      %v1485 = vpop.f32.mrb[0].mxu0
      %v1486 = vadd.f32 0.0, %v1485
      %v1487 = vpop.f32.mrb[0].mxu0
      %1488 = vmatprep.mubr.bf16.mxu0 0
      %1489 = vmatmul.mubr.bf16.gmra.mrb[0].mxu0 %v666
      %v1490 = vpop.f32.mrb[0].mxu0
      %v1491 = vadd.f32 0.0, %v1490
      %v1492 = vpop.f32.mrb[0].mxu0
      %v1493 = vpop.f32.mrb[0].mxu0
      %v1494 = vadd.f32 0.0, %v1493
      %v1495 = vpop.f32.mrb[0].mxu0
      %1496 = vmatprep.mubr.bf16.mxu0 0
      %1497 = vmatmul.mubr.bf16.gmra.mrb[0].mxu0 %v669
      %v1498 = vpop.f32.mrb[0].mxu0
      %v1499 = vadd.f32 0.0, %v1498
      %v1500 = vpop.f32.mrb[0].mxu0
      %v1501 = vpop.f32.mrb[0].mxu0
      %v1502 = vadd.f32 0.0, %v1501
      %v1503 = vpop.f32.mrb[0].mxu0
      %1504 = vmatprep.mubr.bf16.mxu0 0
      %1505 = vmatmul.mubr.bf16.gmra.mrb[0].mxu0 %v672
      %v1506 = vpop.f32.mrb[0].mxu0
      %v1507 = vadd.f32 0.0, %v1506
      %v1508 = vpop.f32.mrb[0].mxu0
      %v1509 = vpop.f32.mrb[0].mxu0
      %v1510 = vadd.f32 0.0, %v1509
      %v1511 = vpop.f32.mrb[0].mxu0
      %1512 = vmatprep.mubr.bf16.mxu0 0
      %1513 = vmatmul.mubr.bf16.gmra.mrb[0].mxu0 %v675
      %v1514 = vpop.f32.mrb[0].mxu0
      %v1515 = vadd.f32 0.0, %v1514
      %v1516 = vpop.f32.mrb[0].mxu0
      %v1517 = vpop.f32.mrb[0].mxu0
      %v1518 = vadd.f32 0.0, %v1517
      %v1519 = vpop.f32.mrb[0].mxu0
      %1520 = vmatprep.mubr.bf16.mxu0 0
      %1521 = vmatmul.mubr.bf16.gmra.mrb[0].mxu0 %v678
      %v1522 = vpop.f32.mrb[0].mxu0
      %v1523 = vadd.f32 0.0, %v1522
      %v1524 = vpop.f32.mrb[0].mxu0
      %v1525 = vpop.f32.mrb[0].mxu0
      %v1526 = vadd.f32 0.0, %v1525
      %v1527 = vpop.f32.mrb[0].mxu0
      %1528 = vdwg.mxu0
      %v1529 = vadd.f32 %v1451, %v1386
      %v1530 = vadd.f32 %v1454, %v1389
      %v1531 = vadd.f32 %v1459, %v1386
      %v1532 = vadd.f32 %v1462, %v1389
      %v1533 = vadd.f32 %v1467, %v1386
      %v1534 = vadd.f32 %v1470, %v1389
      %v1535 = vadd.f32 %v1475, %v1386
      %v1536 = vadd.f32 %v1478, %v1389
      %v1537 = vadd.f32 %v1483, %v1386
      %v1538 = vadd.f32 %v1486, %v1389
      %v1539 = vadd.f32 %v1491, %v1386
      %v1540 = vadd.f32 %v1494, %v1389
      %v1541 = vadd.f32 %v1499, %v1386
      %v1542 = vadd.f32 %v1502, %v1389
      %v1543 = vadd.f32 %v1507, %v1386
      %v1544 = vadd.f32 %v1510, %v1389
      %v1545 = vadd.f32 %v1515, %v1386
      %v1546 = vadd.f32 %v1518, %v1389
      %v1547 = vadd.f32 %v1523, %v1386
      %v1548 = vadd.f32 %v1526, %v1389
      %v1549 = vmax.f32 %v1529, 0.0
      %v1550 = vmax.f32 %v1530, 0.0
      %v1551 = vmax.f32 %v1531, 0.0
      %v1552 = vmax.f32 %v1532, 0.0
      %v1553 = vmax.f32 %v1533, 0.0
      %v1554 = vmax.f32 %v1534, 0.0
      %v1555 = vmax.f32 %v1535, 0.0
      %v1556 = vmax.f32 %v1536, 0.0
      %v1557 = vmax.f32 %v1537, 0.0
      %v1558 = vmax.f32 %v1538, 0.0
      %v1559 = vmax.f32 %v1539, 0.0
      %v1560 = vmax.f32 %v1540, 0.0
      %v1561 = vmax.f32 %v1541, 0.0
      %v1562 = vmax.f32 %v1542, 0.0
      %v1563 = vmax.f32 %v1543, 0.0
      %v1564 = vmax.f32 %v1544, 0.0
      %v1565 = vmax.f32 %v1545, 0.0
      %v1566 = vmax.f32 %v1546, 0.0
      %v1567 = vmax.f32 %v1547, 0.0
      %v1568 = vmax.f32 %v1548, 0.0
      %v1569 = vpack.c.bf16 %v1550, %v1549
      %v1570 = vpack.c.bf16 %v1552, %v1551
      %v1571 = vpack.c.bf16 %v1554, %v1553
      %v1572 = vpack.c.bf16 %v1556, %v1555
      %v1573 = vpack.c.bf16 %v1558, %v1557
      %v1574 = vpack.c.bf16 %v1560, %v1559
      %v1575 = vpack.c.bf16 %v1562, %v1561
      %v1576 = vpack.c.bf16 %v1564, %v1563
      %v1577 = vpack.c.bf16 %v1566, %v1565
      %v1578 = vpack.c.bf16 %v1568, %v1567
      %v1580 = vlaneseq
      %v1581 = vshrl.u32 %v1580, 7
      %v1582 = vsub.s32 0, %v1581
      %v1583 = vrot.slane %v1309, %v1582
      %v1601 = vunpack.c.l.b16 %v1292
      %v1602 = vunpack.c.l.b16 %v1293
      %v1603 = vunpack.c.l.b16 %v1294
      %v1604 = vunpack.c.l.b16 %v1295
      %v1605 = vunpack.c.l.b16 %v1296
      %v1606 = vunpack.c.l.b16 %v1297
      %v1607 = vunpack.c.l.b16 %v1298
      %v1608 = vunpack.c.l.b16 %v1299
      %v1609 = vunpack.c.l.b16 %v1300
      %v1610 = vunpack.c.l.b16 %v1301
      %v1611 = vunpack.c.l.b16 %v1302
      %v1612 = vunpack.c.l.b16 %v1303
      %v1613 = vunpack.c.l.b16 %v1304
      %v1614 = vunpack.c.l.b16 %v1305
      %v1615 = vunpack.c.l.b16 %v1306
      %v1616 = vunpack.c.l.b16 %v1307
      %v1617 = vpack.c.b16 %v1602, %v1601
      %v1618 = vpack.c.b16 %v1604, %v1603
      %v1619 = vpack.c.b16 %v1606, %v1605
      %v1620 = vpack.c.b16 %v1608, %v1607
      %v1621 = vpack.c.b16 %v1610, %v1609
      %v1622 = vpack.c.b16 %v1612, %v1611
      %v1623 = vpack.c.b16 %v1614, %v1613
      %v1624 = vpack.c.b16 %v1616, %v1615
      %1633 = vmatprep.subr.bf16.mxu0 0
      %1634 = vmatpush1.bf16.msra.mxu0 %v1617
      %1635 = vmatprep.subr.bf16.mxu0 0
      %1636 = vmatpush1.bf16.msra.mxu0 %v1618
      %1637 = vmatprep.subr.bf16.mxu0 0
      %1638 = vmatpush1.bf16.msra.mxu0 %v1619
      %1639 = vmatprep.subr.bf16.mxu0 0
      %1640 = vmatpush1.bf16.msra.mxu0 %v1620
      %1641 = vmatprep.subr.bf16.mxu0 0
      %1642 = vmatpush1.bf16.msra.mxu0 %v1621
      %1643 = vmatprep.subr.bf16.mxu0 0
      %1644 = vmatpush1.bf16.msra.mxu0 %v1622
      %1645 = vmatprep.subr.bf16.mxu0 0
      %1646 = vmatpush1.bf16.msra.mxu0 %v1623
      %1647 = vmatprep.subr.bf16.mxu0 0
      %1648 = vmatpush1.bf16.msra.mxu0 %v1624
      %1649 = vmatprep.subr.bf16.mxu0 0
      %1650 = vmatpush1.bf16.msra.mxu0 0
      %1651 = vmatprep.subr.bf16.mxu0 0
      %1652 = vmatpush1.bf16.msra.mxu0 0
      %1653 = vmatprep.subr.bf16.mxu0 0
      %1654 = vmatpush1.bf16.msra.mxu0 0
      %1655 = vmatprep.subr.bf16.mxu0 0
      %1656 = vmatpush1.bf16.msra.mxu0 0
      %1657 = vmatprep.subr.bf16.mxu0 0
      %1658 = vmatpush1.bf16.msra.mxu0 0
      %1659 = vmatprep.subr.bf16.mxu0 0
      %1660 = vmatpush1.bf16.msra.mxu0 0
      %1661 = vmatprep.subr.bf16.mxu0 0
      %1662 = vmatpush1.bf16.msra.mxu0 0
      %1663 = vmatprep.subr.bf16.mxu0 0
      %1664 = vmatpush1.bf16.msra.mxu0 0
      %1665 = vmatprep.mubr.bf16.mxu0 0
      %1666 = vmatmul.mubr.bf16.gmra.mrb[0].mxu0 %v1569
      %v1667 = vpop.f32.mrb[0].mxu0
      %v1668 = vadd.f32 %v1583, %v1667
      %v1669 = vpop.f32.mrb[0].mxu0
      %v1670 = vpop.f32.mrb[0].mxu0
      %v1671 = vadd.f32 %v1583, %v1670
      %v1672 = vpop.f32.mrb[0].mxu0
      %1673 = vmatprep.mubr.bf16.mxu0 0
      %1674 = vmatmul.mubr.bf16.gmra.mrb[0].mxu0 %v1570
      %v1675 = vpop.f32.mrb[0].mxu0
      %v1676 = vadd.f32 %v1583, %v1675
      %v1677 = vpop.f32.mrb[0].mxu0
      %v1678 = vpop.f32.mrb[0].mxu0
      %v1679 = vadd.f32 %v1583, %v1678
      %v1680 = vpop.f32.mrb[0].mxu0
      %1681 = vmatprep.mubr.bf16.mxu0 0
      %1682 = vmatmul.mubr.bf16.gmra.mrb[0].mxu0 %v1571
      %v1683 = vpop.f32.mrb[0].mxu0
      %v1684 = vadd.f32 %v1583, %v1683
      %v1685 = vpop.f32.mrb[0].mxu0
      %v1686 = vpop.f32.mrb[0].mxu0
      %v1687 = vadd.f32 %v1583, %v1686
      %v1688 = vpop.f32.mrb[0].mxu0
      %1689 = vmatprep.mubr.bf16.mxu0 0
      %1690 = vmatmul.mubr.bf16.gmra.mrb[0].mxu0 %v1572
      %v1691 = vpop.f32.mrb[0].mxu0
      %v1692 = vadd.f32 %v1583, %v1691
      %v1693 = vpop.f32.mrb[0].mxu0
      %v1694 = vpop.f32.mrb[0].mxu0
      %v1695 = vadd.f32 %v1583, %v1694
      %v1696 = vpop.f32.mrb[0].mxu0
      %1697 = vmatprep.mubr.bf16.mxu0 0
      %1698 = vmatmul.mubr.bf16.gmra.mrb[0].mxu0 %v1573
      %v1699 = vpop.f32.mrb[0].mxu0
      %v1700 = vadd.f32 %v1583, %v1699
      %v1701 = vpop.f32.mrb[0].mxu0
      %v1702 = vpop.f32.mrb[0].mxu0
      %v1703 = vadd.f32 %v1583, %v1702
      %v1704 = vpop.f32.mrb[0].mxu0
      %1705 = vmatprep.mubr.bf16.mxu0 0
      %1706 = vmatmul.mubr.bf16.gmra.mrb[0].mxu0 %v1574
      %v1707 = vpop.f32.mrb[0].mxu0
      %v1708 = vadd.f32 %v1583, %v1707
      %v1709 = vpop.f32.mrb[0].mxu0
      %v1710 = vpop.f32.mrb[0].mxu0
      %v1711 = vadd.f32 %v1583, %v1710
      %v1712 = vpop.f32.mrb[0].mxu0
      %1713 = vmatprep.mubr.bf16.mxu0 0
      %1714 = vmatmul.mubr.bf16.gmra.mrb[0].mxu0 %v1575
      %v1715 = vpop.f32.mrb[0].mxu0
      %v1716 = vadd.f32 %v1583, %v1715
      %v1717 = vpop.f32.mrb[0].mxu0
      %v1718 = vpop.f32.mrb[0].mxu0
      %v1719 = vadd.f32 %v1583, %v1718
      %v1720 = vpop.f32.mrb[0].mxu0
      %1721 = vmatprep.mubr.bf16.mxu0 0
      %1722 = vmatmul.mubr.bf16.gmra.mrb[0].mxu0 %v1576
      %v1723 = vpop.f32.mrb[0].mxu0
      %v1724 = vadd.f32 %v1583, %v1723
      %v1725 = vpop.f32.mrb[0].mxu0
      %v1726 = vpop.f32.mrb[0].mxu0
      %v1727 = vadd.f32 %v1583, %v1726
      %v1728 = vpop.f32.mrb[0].mxu0
      %1729 = vmatprep.mubr.bf16.mxu0 0
      %1730 = vmatmul.mubr.bf16.gmra.mrb[0].mxu0 %v1577
      %v1731 = vpop.f32.mrb[0].mxu0
      %v1732 = vadd.f32 %v1583, %v1731
      %v1733 = vpop.f32.mrb[0].mxu0
      %v1734 = vpop.f32.mrb[0].mxu0
      %v1735 = vadd.f32 %v1583, %v1734
      %v1736 = vpop.f32.mrb[0].mxu0
      %1737 = vmatprep.mubr.bf16.mxu0 0
      %1738 = vmatmul.mubr.bf16.gmra.mrb[0].mxu0 %v1578
      %v1739 = vpop.f32.mrb[0].mxu0
      %v1740 = vadd.f32 %v1583, %v1739
      %v1741 = vpop.f32.mrb[0].mxu0
      %v1742 = vpop.f32.mrb[0].mxu0
      %v1743 = vadd.f32 %v1583, %v1742
      %v1744 = vpop.f32.mrb[0].mxu0
      %1745 = vdwg.mxu0
      %v1746 = vmax.f32 %v1668, 0.0
      %v1747 = vmax.f32 %v1671, 0.0
      %v1748 = vmax.f32 %v1676, 0.0
      %v1749 = vmax.f32 %v1679, 0.0
      %v1750 = vmax.f32 %v1684, 0.0
      %v1751 = vmax.f32 %v1687, 0.0
      %v1752 = vmax.f32 %v1692, 0.0
      %v1753 = vmax.f32 %v1695, 0.0
      %v1754 = vmax.f32 %v1700, 0.0
      %v1755 = vmax.f32 %v1703, 0.0
      %v1756 = vmax.f32 %v1708, 0.0
      %v1757 = vmax.f32 %v1711, 0.0
      %v1758 = vmax.f32 %v1716, 0.0
      %v1759 = vmax.f32 %v1719, 0.0
      %v1760 = vmax.f32 %v1724, 0.0
      %v1761 = vmax.f32 %v1727, 0.0
      %v1762 = vmax.f32 %v1732, 0.0
      %v1763 = vmax.f32 %v1735, 0.0
      %v1764 = vmax.f32 %v1740, 0.0
      %v1765 = vmax.f32 %v1743, 0.0
      %v1766 = vpack.c.bf16 %v1747, %v1746
      %v1767 = vpack.c.bf16 %v1749, %v1748
      %v1768 = vpack.c.bf16 %v1751, %v1750
      %v1769 = vpack.c.bf16 %v1753, %v1752
      %v1770 = vpack.c.bf16 %v1755, %v1754
      %v1771 = vpack.c.bf16 %v1757, %v1756
      %v1772 = vpack.c.bf16 %v1759, %v1758
      %v1773 = vpack.c.bf16 %v1761, %v1760
      %v1774 = vpack.c.bf16 %v1763, %v1762
      %v1775 = vpack.c.bf16 %v1765, %v1764
      %v1777 = vlaneseq
      %v1778 = vshrl.u32 %v1777, 7
      %v1779 = vsub.s32 0, %v1778
      %v1780 = vrot.slane %v1320, %v1779
      %v1790 = vunpack.c.l.b16 %v1311
      %v1791 = vunpack.c.l.b16 %v1312
      %v1792 = vunpack.c.l.b16 %v1313
      %v1793 = vunpack.c.l.b16 %v1314
      %v1794 = vunpack.c.l.b16 %v1315
      %v1795 = vunpack.c.l.b16 %v1316
      %v1796 = vunpack.c.l.b16 %v1317
      %v1797 = vunpack.c.l.b16 %v1318
      %v1798 = vpack.c.b16 %v1791, %v1790
      %v1799 = vpack.c.b16 %v1793, %v1792
      %v1800 = vpack.c.b16 %v1795, %v1794
      %v1801 = vpack.c.b16 %v1797, %v1796
      %v1807 = vsel %vm531, %v1766, 0
      %v1810 = vsel %vm531, %v1767, 0
      %v1813 = vsel %vm531, %v1768, 0
      %v1816 = vsel %vm531, %v1769, 0
      %v1819 = vsel %vm531, %v1770, 0
      %v1822 = vsel %vm531, %v1771, 0
      %v1825 = vsel %vm531, %v1772, 0
      %v1828 = vsel %vm531, %v1773, 0
      %v1831 = vsel %vm531, %v1774, 0
      %v1834 = vsel %vm531, %v1775, 0
      %1836 = vmatprep.subr.bf16.mxu0 0
      %1837 = vmatpush1.bf16.msra.mxu0 %v1798
      %1838 = vmatprep.subr.bf16.mxu0 0
      %1839 = vmatpush1.bf16.msra.mxu0 %v1799
      %1840 = vmatprep.subr.bf16.mxu0 0
      %1841 = vmatpush1.bf16.msra.mxu0 %v1800
      %1842 = vmatprep.subr.bf16.mxu0 0
      %1843 = vmatpush1.bf16.msra.mxu0 %v1801
      %1844 = vmatprep.subr.bf16.mxu0 0
      %1845 = vmatpush1.bf16.msra.mxu0 0
      %1846 = vmatprep.subr.bf16.mxu0 0
      %1847 = vmatpush1.bf16.msra.mxu0 0
      %1848 = vmatprep.subr.bf16.mxu0 0
      %1849 = vmatpush1.bf16.msra.mxu0 0
      %1850 = vmatprep.subr.bf16.mxu0 0
      %1851 = vmatpush1.bf16.msra.mxu0 0
      %1852 = vmatprep.subr.bf16.mxu0 0
      %1853 = vmatpush1.bf16.msra.mxu0 0
      %1854 = vmatprep.subr.bf16.mxu0 0
      %1855 = vmatpush1.bf16.msra.mxu0 0
      %1856 = vmatprep.subr.bf16.mxu0 0
      %1857 = vmatpush1.bf16.msra.mxu0 0
      %1858 = vmatprep.subr.bf16.mxu0 0
      %1859 = vmatpush1.bf16.msra.mxu0 0
      %1860 = vmatprep.subr.bf16.mxu0 0
      %1861 = vmatpush1.bf16.msra.mxu0 0
      %1862 = vmatprep.subr.bf16.mxu0 0
      %1863 = vmatpush1.bf16.msra.mxu0 0
      %1864 = vmatprep.subr.bf16.mxu0 0
      %1865 = vmatpush1.bf16.msra.mxu0 0
      %1866 = vmatprep.subr.bf16.mxu0 0
      %1867 = vmatpush1.bf16.msra.mxu0 0
      %1868 = vmatprep.mubr.bf16.mxu0 0
      %1869 = vmatmul.mubr.bf16.gmra.mrb[0].mxu0 %v1807
      %v1870 = vpop.f32.mrb[0].mxu0
      %v1871 = vadd.f32 %v1780, %v1870
      %v1872 = vpop.f32.mrb[0].mxu0
      %v1873 = vpop.f32.mrb[0].mxu0
      %v1874 = vadd.f32 %v1780, %v1873
      %v1875 = vpop.f32.mrb[0].mxu0
      %1876 = vmatprep.mubr.bf16.mxu0 0
      %1877 = vmatmul.mubr.bf16.gmra.mrb[0].mxu0 %v1810
      %v1878 = vpop.f32.mrb[0].mxu0
      %v1879 = vadd.f32 %v1780, %v1878
      %v1880 = vpop.f32.mrb[0].mxu0
      %v1881 = vpop.f32.mrb[0].mxu0
      %v1882 = vadd.f32 %v1780, %v1881
      %v1883 = vpop.f32.mrb[0].mxu0
      %1884 = vmatprep.mubr.bf16.mxu0 0
      %1885 = vmatmul.mubr.bf16.gmra.mrb[0].mxu0 %v1813
      %v1886 = vpop.f32.mrb[0].mxu0
      %v1887 = vadd.f32 %v1780, %v1886
      %v1888 = vpop.f32.mrb[0].mxu0
      %v1889 = vpop.f32.mrb[0].mxu0
      %v1890 = vadd.f32 %v1780, %v1889
      %v1891 = vpop.f32.mrb[0].mxu0
      %1892 = vmatprep.mubr.bf16.mxu0 0
      %1893 = vmatmul.mubr.bf16.gmra.mrb[0].mxu0 %v1816
      %v1894 = vpop.f32.mrb[0].mxu0
      %v1895 = vadd.f32 %v1780, %v1894
      %v1896 = vpop.f32.mrb[0].mxu0
      %v1897 = vpop.f32.mrb[0].mxu0
      %v1898 = vadd.f32 %v1780, %v1897
      %v1899 = vpop.f32.mrb[0].mxu0
      %1900 = vmatprep.mubr.bf16.mxu0 0
      %1901 = vmatmul.mubr.bf16.gmra.mrb[0].mxu0 %v1819
      %v1902 = vpop.f32.mrb[0].mxu0
      %v1903 = vadd.f32 %v1780, %v1902
      %v1904 = vpop.f32.mrb[0].mxu0
      %v1905 = vpop.f32.mrb[0].mxu0
      %v1906 = vadd.f32 %v1780, %v1905
      %v1907 = vpop.f32.mrb[0].mxu0
      %1908 = vmatprep.mubr.bf16.mxu0 0
      %1909 = vmatmul.mubr.bf16.gmra.mrb[0].mxu0 %v1822
      %v1910 = vpop.f32.mrb[0].mxu0
      %v1911 = vadd.f32 %v1780, %v1910
      %v1912 = vpop.f32.mrb[0].mxu0
      %v1913 = vpop.f32.mrb[0].mxu0
      %v1914 = vadd.f32 %v1780, %v1913
      %v1915 = vpop.f32.mrb[0].mxu0
      %1916 = vmatprep.mubr.bf16.mxu0 0
      %1917 = vmatmul.mubr.bf16.gmra.mrb[0].mxu0 %v1825
      %v1918 = vpop.f32.mrb[0].mxu0
      %v1919 = vadd.f32 %v1780, %v1918
      %v1920 = vpop.f32.mrb[0].mxu0
      %v1921 = vpop.f32.mrb[0].mxu0
      %v1922 = vadd.f32 %v1780, %v1921
      %v1923 = vpop.f32.mrb[0].mxu0
      %1924 = vmatprep.mubr.bf16.mxu0 0
      %1925 = vmatmul.mubr.bf16.gmra.mrb[0].mxu0 %v1828
      %v1926 = vpop.f32.mrb[0].mxu0
      %v1927 = vadd.f32 %v1780, %v1926
      %v1928 = vpop.f32.mrb[0].mxu0
      %v1929 = vpop.f32.mrb[0].mxu0
      %v1930 = vadd.f32 %v1780, %v1929
      %v1931 = vpop.f32.mrb[0].mxu0
      %1932 = vmatprep.mubr.bf16.mxu0 0
      %1933 = vmatmul.mubr.bf16.gmra.mrb[0].mxu0 %v1831
      %v1934 = vpop.f32.mrb[0].mxu0
      %v1935 = vadd.f32 %v1780, %v1934
      %v1936 = vpop.f32.mrb[0].mxu0
      %v1937 = vpop.f32.mrb[0].mxu0
      %v1938 = vadd.f32 %v1780, %v1937
      %v1939 = vpop.f32.mrb[0].mxu0
      %1940 = vmatprep.mubr.bf16.mxu0 0
      %1941 = vmatmul.mubr.bf16.gmra.mrb[0].mxu0 %v1834
      %v1942 = vpop.f32.mrb[0].mxu0
      %v1943 = vadd.f32 %v1780, %v1942
      %v1944 = vpop.f32.mrb[0].mxu0
      %v1945 = vpop.f32.mrb[0].mxu0
      %v1946 = vadd.f32 %v1780, %v1945
      %v1947 = vpop.f32.mrb[0].mxu0
      %1948 = vdwg.mxu0
      %v1949 = vmax.f32 %v1871, 0.0
      %v1950 = vmax.f32 %v1874, 0.0
      %v1951 = vmax.f32 %v1879, 0.0
      %v1952 = vmax.f32 %v1882, 0.0
      %v1953 = vmax.f32 %v1887, 0.0
      %v1954 = vmax.f32 %v1890, 0.0
      %v1955 = vmax.f32 %v1895, 0.0
      %v1956 = vmax.f32 %v1898, 0.0
      %v1957 = vmax.f32 %v1903, 0.0
      %v1958 = vmax.f32 %v1906, 0.0
      %v1959 = vmax.f32 %v1911, 0.0
      %v1960 = vmax.f32 %v1914, 0.0
      %v1961 = vmax.f32 %v1919, 0.0
      %v1962 = vmax.f32 %v1922, 0.0
      %v1963 = vmax.f32 %v1927, 0.0
      %v1964 = vmax.f32 %v1930, 0.0
      %v1965 = vmax.f32 %v1935, 0.0
      %v1966 = vmax.f32 %v1938, 0.0
      %v1967 = vmax.f32 %v1943, 0.0
      %v1968 = vmax.f32 %v1946, 0.0
      %v1969 = vsel %vm531, %v1949, -inf
      %v1970 = vsel %vm531, %v1951, -inf
      %v1971 = vsel %vm531, %v1953, -inf
      %v1972 = vmax.f32 %v1969, %v1971
      %v1973 = vsel %vm531, %v1955, -inf
      %v1974 = vmax.f32 %v1970, %v1973
      %v1975 = vsel %vm531, %v1957, -inf
      %v1976 = vmax.f32 %v1972, %v1975
      %v1977 = vsel %vm531, %v1959, -inf
      %v1978 = vmax.f32 %v1974, %v1977
      %v1979 = vsel %vm531, %v1961, -inf
      %v1980 = vmax.f32 %v1976, %v1979
      %v1981 = vsel %vm531, %v1963, -inf
      %v1982 = vmax.f32 %v1978, %v1981
      %v1983 = vsel %vm531, %v1965, -inf
      %v1984 = vmax.f32 %v1980, %v1983
      %v1985 = vsel %vm531, %v1967, -inf
      %v1986 = vmax.f32 %v1982, %v1985
      %v1987 = vmax.f32 %v1984, %v1986
      %v1988 = vsel %vm531, %v1950, -inf
      %v1989 = vsel %vm531, %v1952, -inf
      %v1990 = vsel %vm531, %v1954, -inf
      %v1991 = vmax.f32 %v1988, %v1990
      %v1992 = vsel %vm531, %v1956, -inf
      %v1993 = vmax.f32 %v1989, %v1992
      %v1994 = vsel %vm531, %v1958, -inf
      %v1995 = vmax.f32 %v1991, %v1994
      %v1996 = vsel %vm531, %v1960, -inf
      %v1997 = vmax.f32 %v1993, %v1996
      %v1998 = vsel %vm531, %v1962, -inf
      %v1999 = vmax.f32 %v1995, %v1998
      %v2000 = vsel %vm531, %v1964, -inf
      %v2001 = vmax.f32 %v1997, %v2000
      %v2002 = vsel %vm531, %v1966, -inf
      %v2003 = vmax.f32 %v1999, %v2002
      %v2004 = vsel %vm531, %v1968, -inf
      %v2005 = vmax.f32 %v2001, %v2004
      %v2006 = vmax.f32 %v2003, %v2005
      %s2007 = scalar_lea.vmem %s2, 64
      %v2008 = vld [vmem:[%s2007] sm:$0xf]
      %v2009 = vld [vmem:[%s2007 + $0x4] sm:$0xf]
      %v2010 = vld [vmem:[%s2007 + $0x8] sm:$0xf]
      %v2011 = vld [vmem:[%s2007 + $0xc] sm:$0xf]
      %v2012 = vld [vmem:[%s2007 + $0x10] sm:$0xf]
      %v2013 = vld [vmem:[%s2007 + $0x14] sm:$0xf]
      %v2014 = vld [vmem:[%s2007 + $0x18] sm:$0xf]
      %v2015 = vld [vmem:[%s2007 + $0x1c] sm:$0xf]
      %s2016 = scalar_lea.vmem %s3, 64
      %v2017 = vld [vmem:[%s2016] sm:$0xf]
      %v2018 = vld [vmem:[%s2016 + $0x4] sm:$0xf]
      %v2019 = vld [vmem:[%s2016 + $0x8] sm:$0xf]
      %v2020 = vld [vmem:[%s2016 + $0xc] sm:$0xf]
      %v2021 = vld [vmem:[%s2016 + $0x10] sm:$0xf]
      %v2022 = vld [vmem:[%s2016 + $0x14] sm:$0xf]
      %v2023 = vld [vmem:[%s2016 + $0x18] sm:$0xf]
      %v2024 = vld [vmem:[%s2016 + $0x1c] sm:$0xf]
      %s2025 = scalar_lea.vmem %s4, 2
      %v2026 = vld [vmem:[%s2025] sm:$0x1]
      %s2027 = scalar_lea.vmem %s5, 128
      %v2028 = vld [vmem:[%s2027] sm:$0xf]
      %v2029 = vld [vmem:[%s2027 + $0x4] sm:$0xf]
      %v2030 = vld [vmem:[%s2027 + $0x8] sm:$0xf]
      %v2031 = vld [vmem:[%s2027 + $0xc] sm:$0xf]
      %v2032 = vld [vmem:[%s2027 + $0x10] sm:$0xf]
      %v2033 = vld [vmem:[%s2027 + $0x14] sm:$0xf]
      %v2034 = vld [vmem:[%s2027 + $0x18] sm:$0xf]
      %v2035 = vld [vmem:[%s2027 + $0x1c] sm:$0xf]
      %v2036 = vld [vmem:[%s2027 + $0x20] sm:$0xf]
      %v2037 = vld [vmem:[%s2027 + $0x24] sm:$0xf]
      %v2038 = vld [vmem:[%s2027 + $0x28] sm:$0xf]
      %v2039 = vld [vmem:[%s2027 + $0x2c] sm:$0xf]
      %v2040 = vld [vmem:[%s2027 + $0x30] sm:$0xf]
      %v2041 = vld [vmem:[%s2027 + $0x34] sm:$0xf]
      %v2042 = vld [vmem:[%s2027 + $0x38] sm:$0xf]
      %v2043 = vld [vmem:[%s2027 + $0x3c] sm:$0xf]
      %s2044 = scalar_lea.vmem %s6, 2
      %v2045 = vld [vmem:[%s2044] sm:$0x1]
      %s2046 = scalar_lea.vmem %s7, 64
      %v2047 = vld [vmem:[%s2046] sm:$0xf]
      %v2048 = vld [vmem:[%s2046 + $0x4] sm:$0xf]
      %v2049 = vld [vmem:[%s2046 + $0x8] sm:$0xf]
      %v2050 = vld [vmem:[%s2046 + $0xc] sm:$0xf]
      %v2051 = vld [vmem:[%s2046 + $0x10] sm:$0xf]
      %v2052 = vld [vmem:[%s2046 + $0x14] sm:$0xf]
      %v2053 = vld [vmem:[%s2046 + $0x18] sm:$0xf]
      %v2054 = vld [vmem:[%s2046 + $0x1c] sm:$0xf]
      %s2055 = scalar_lea.vmem %s8, 2
      %v2056 = vld [vmem:[%s2055] sm:$0x1]
      %v2058 = vlaneseq
      %v2059 = vshrl.u32 %v2058, 7
      %v2060 = vsub.s32 0, %v2059
      %v2061 = vrot.slane %v2026, %v2060
      %v2071 = vunpack.c.l.b16 %v2008
      %v2072 = vunpack.c.l.b16 %v2009
      %v2073 = vunpack.c.l.b16 %v2010
      %v2074 = vunpack.c.l.b16 %v2011
      %v2075 = vunpack.c.l.b16 %v2012
      %v2076 = vunpack.c.l.b16 %v2013
      %v2077 = vunpack.c.l.b16 %v2014
      %v2078 = vunpack.c.l.b16 %v2015
      %v2079 = vpack.c.b16 %v2072, %v2071
      %v2080 = vpack.c.b16 %v2074, %v2073
      %v2081 = vpack.c.b16 %v2076, %v2075
      %v2082 = vpack.c.b16 %v2078, %v2077
      %2087 = vmatprep.subr.bf16.mxu0 0
      %2088 = vmatpush1.bf16.msra.mxu0 %v2079
      %2089 = vmatprep.subr.bf16.mxu0 0
      %2090 = vmatpush1.bf16.msra.mxu0 %v2080
      %2091 = vmatprep.subr.bf16.mxu0 0
      %2092 = vmatpush1.bf16.msra.mxu0 %v2081
      %2093 = vmatprep.subr.bf16.mxu0 0
      %2094 = vmatpush1.bf16.msra.mxu0 %v2082
      %2095 = vmatprep.subr.bf16.mxu0 0
      %2096 = vmatpush1.bf16.msra.mxu0 0
      %2097 = vmatprep.subr.bf16.mxu0 0
      %2098 = vmatpush1.bf16.msra.mxu0 0
      %2099 = vmatprep.subr.bf16.mxu0 0
      %2100 = vmatpush1.bf16.msra.mxu0 0
      %2101 = vmatprep.subr.bf16.mxu0 0
      %2102 = vmatpush1.bf16.msra.mxu0 0
      %2103 = vmatprep.subr.bf16.mxu0 0
      %2104 = vmatpush1.bf16.msra.mxu0 0
      %2105 = vmatprep.subr.bf16.mxu0 0
      %2106 = vmatpush1.bf16.msra.mxu0 0
      %2107 = vmatprep.subr.bf16.mxu0 0
      %2108 = vmatpush1.bf16.msra.mxu0 0
      %2109 = vmatprep.subr.bf16.mxu0 0
      %2110 = vmatpush1.bf16.msra.mxu0 0
      %2111 = vmatprep.subr.bf16.mxu0 0
      %2112 = vmatpush1.bf16.msra.mxu0 0
      %2113 = vmatprep.subr.bf16.mxu0 0
      %2114 = vmatpush1.bf16.msra.mxu0 0
      %2115 = vmatprep.subr.bf16.mxu0 0
      %2116 = vmatpush1.bf16.msra.mxu0 0
      %2117 = vmatprep.subr.bf16.mxu0 0
      %2118 = vmatpush1.bf16.msra.mxu0 0
      %2119 = vmatprep.mubr.bf16.mxu0 0
      %2120 = vmatmul.mubr.bf16.gmra.mrb[0].mxu0 %v533
      %v2121 = vpop.f32.mrb[0].mxu0
      %v2122 = vadd.f32 %v2061, %v2121
      %v2123 = vpop.f32.mrb[0].mxu0
      %v2124 = vpop.f32.mrb[0].mxu0
      %v2125 = vadd.f32 %v2061, %v2124
      %v2126 = vpop.f32.mrb[0].mxu0
      %2127 = vdwg.mxu0
      %v2136 = vunpack.c.l.b16 %v2017
      %v2137 = vunpack.c.l.b16 %v2018
      %v2138 = vunpack.c.l.b16 %v2019
      %v2139 = vunpack.c.l.b16 %v2020
      %v2140 = vunpack.c.l.b16 %v2021
      %v2141 = vunpack.c.l.b16 %v2022
      %v2142 = vunpack.c.l.b16 %v2023
      %v2143 = vunpack.c.l.b16 %v2024
      %v2144 = vpack.c.b16 %v2137, %v2136
      %v2145 = vpack.c.b16 %v2139, %v2138
      %v2146 = vpack.c.b16 %v2141, %v2140
      %v2147 = vpack.c.b16 %v2143, %v2142
      %2152 = vmatprep.subr.bf16.mxu0 0
      %2153 = vmatpush1.bf16.msra.mxu0 %v2144
      %2154 = vmatprep.subr.bf16.mxu0 0
      %2155 = vmatpush1.bf16.msra.mxu0 %v2145
      %2156 = vmatprep.subr.bf16.mxu0 0
      %2157 = vmatpush1.bf16.msra.mxu0 %v2146
      %2158 = vmatprep.subr.bf16.mxu0 0
      %2159 = vmatpush1.bf16.msra.mxu0 %v2147
      %2160 = vmatprep.subr.bf16.mxu0 0
      %2161 = vmatpush1.bf16.msra.mxu0 0
      %2162 = vmatprep.subr.bf16.mxu0 0
      %2163 = vmatpush1.bf16.msra.mxu0 0
      %2164 = vmatprep.subr.bf16.mxu0 0
      %2165 = vmatpush1.bf16.msra.mxu0 0
      %2166 = vmatprep.subr.bf16.mxu0 0
      %2167 = vmatpush1.bf16.msra.mxu0 0
      %2168 = vmatprep.subr.bf16.mxu0 0
      %2169 = vmatpush1.bf16.msra.mxu0 0
      %2170 = vmatprep.subr.bf16.mxu0 0
      %2171 = vmatpush1.bf16.msra.mxu0 0
      %2172 = vmatprep.subr.bf16.mxu0 0
      %2173 = vmatpush1.bf16.msra.mxu0 0
      %2174 = vmatprep.subr.bf16.mxu0 0
      %2175 = vmatpush1.bf16.msra.mxu0 0
      %2176 = vmatprep.subr.bf16.mxu0 0
      %2177 = vmatpush1.bf16.msra.mxu0 0
      %2178 = vmatprep.subr.bf16.mxu0 0
      %2179 = vmatpush1.bf16.msra.mxu0 0
      %2180 = vmatprep.subr.bf16.mxu0 0
      %2181 = vmatpush1.bf16.msra.mxu0 0
      %2182 = vmatprep.subr.bf16.mxu0 0
      %2183 = vmatpush1.bf16.msra.mxu0 0
      %2184 = vmatprep.mubr.bf16.mxu0 0
      %2185 = vmatmul.mubr.bf16.gmra.mrb[0].mxu0 %v651
      %v2186 = vpop.f32.mrb[0].mxu0
      %v2187 = vadd.f32 0.0, %v2186
      %v2188 = vpop.f32.mrb[0].mxu0
      %v2189 = vpop.f32.mrb[0].mxu0
      %v2190 = vadd.f32 0.0, %v2189
      %v2191 = vpop.f32.mrb[0].mxu0
      %2192 = vmatprep.mubr.bf16.mxu0 0
      %2193 = vmatmul.mubr.bf16.gmra.mrb[0].mxu0 %v654
      %v2194 = vpop.f32.mrb[0].mxu0
      %v2195 = vadd.f32 0.0, %v2194
      %v2196 = vpop.f32.mrb[0].mxu0
      %v2197 = vpop.f32.mrb[0].mxu0
      %v2198 = vadd.f32 0.0, %v2197
      %v2199 = vpop.f32.mrb[0].mxu0
      %2200 = vmatprep.mubr.bf16.mxu0 0
      %2201 = vmatmul.mubr.bf16.gmra.mrb[0].mxu0 %v657
      %v2202 = vpop.f32.mrb[0].mxu0
      %v2203 = vadd.f32 0.0, %v2202
      %v2204 = vpop.f32.mrb[0].mxu0
      %v2205 = vpop.f32.mrb[0].mxu0
      %v2206 = vadd.f32 0.0, %v2205
      %v2207 = vpop.f32.mrb[0].mxu0
      %2208 = vmatprep.mubr.bf16.mxu0 0
      %2209 = vmatmul.mubr.bf16.gmra.mrb[0].mxu0 %v660
      %v2210 = vpop.f32.mrb[0].mxu0
      %v2211 = vadd.f32 0.0, %v2210
      %v2212 = vpop.f32.mrb[0].mxu0
      %v2213 = vpop.f32.mrb[0].mxu0
      %v2214 = vadd.f32 0.0, %v2213
      %v2215 = vpop.f32.mrb[0].mxu0
      %2216 = vmatprep.mubr.bf16.mxu0 0
      %2217 = vmatmul.mubr.bf16.gmra.mrb[0].mxu0 %v663
      %v2218 = vpop.f32.mrb[0].mxu0
      %v2219 = vadd.f32 0.0, %v2218
      %v2220 = vpop.f32.mrb[0].mxu0
      %v2221 = vpop.f32.mrb[0].mxu0
      %v2222 = vadd.f32 0.0, %v2221
      %v2223 = vpop.f32.mrb[0].mxu0
      %2224 = vmatprep.mubr.bf16.mxu0 0
      %2225 = vmatmul.mubr.bf16.gmra.mrb[0].mxu0 %v666
      %v2226 = vpop.f32.mrb[0].mxu0
      %v2227 = vadd.f32 0.0, %v2226
      %v2228 = vpop.f32.mrb[0].mxu0
      %v2229 = vpop.f32.mrb[0].mxu0
      %v2230 = vadd.f32 0.0, %v2229
      %v2231 = vpop.f32.mrb[0].mxu0
      %2232 = vmatprep.mubr.bf16.mxu0 0
      %2233 = vmatmul.mubr.bf16.gmra.mrb[0].mxu0 %v669
      %v2234 = vpop.f32.mrb[0].mxu0
      %v2235 = vadd.f32 0.0, %v2234
      %v2236 = vpop.f32.mrb[0].mxu0
      %v2237 = vpop.f32.mrb[0].mxu0
      %v2238 = vadd.f32 0.0, %v2237
      %v2239 = vpop.f32.mrb[0].mxu0
      %2240 = vmatprep.mubr.bf16.mxu0 0
      %2241 = vmatmul.mubr.bf16.gmra.mrb[0].mxu0 %v672
      %v2242 = vpop.f32.mrb[0].mxu0
      %v2243 = vadd.f32 0.0, %v2242
      %v2244 = vpop.f32.mrb[0].mxu0
      %v2245 = vpop.f32.mrb[0].mxu0
      %v2246 = vadd.f32 0.0, %v2245
      %v2247 = vpop.f32.mrb[0].mxu0
      %2248 = vmatprep.mubr.bf16.mxu0 0
      %2249 = vmatmul.mubr.bf16.gmra.mrb[0].mxu0 %v675
      %v2250 = vpop.f32.mrb[0].mxu0
      %v2251 = vadd.f32 0.0, %v2250
      %v2252 = vpop.f32.mrb[0].mxu0
      %v2253 = vpop.f32.mrb[0].mxu0
      %v2254 = vadd.f32 0.0, %v2253
      %v2255 = vpop.f32.mrb[0].mxu0
      %2256 = vmatprep.mubr.bf16.mxu0 0
      %2257 = vmatmul.mubr.bf16.gmra.mrb[0].mxu0 %v678
      %v2258 = vpop.f32.mrb[0].mxu0
      %v2259 = vadd.f32 0.0, %v2258
      %v2260 = vpop.f32.mrb[0].mxu0
      %v2261 = vpop.f32.mrb[0].mxu0
      %v2262 = vadd.f32 0.0, %v2261
      %v2263 = vpop.f32.mrb[0].mxu0
      %2264 = vdwg.mxu0
      %v2265 = vadd.f32 %v2187, %v2122
      %v2266 = vadd.f32 %v2190, %v2125
      %v2267 = vadd.f32 %v2195, %v2122
      %v2268 = vadd.f32 %v2198, %v2125
      %v2269 = vadd.f32 %v2203, %v2122
      %v2270 = vadd.f32 %v2206, %v2125
      %v2271 = vadd.f32 %v2211, %v2122
      %v2272 = vadd.f32 %v2214, %v2125
      %v2273 = vadd.f32 %v2219, %v2122
      %v2274 = vadd.f32 %v2222, %v2125
      %v2275 = vadd.f32 %v2227, %v2122
      %v2276 = vadd.f32 %v2230, %v2125
      %v2277 = vadd.f32 %v2235, %v2122
      %v2278 = vadd.f32 %v2238, %v2125
      %v2279 = vadd.f32 %v2243, %v2122
      %v2280 = vadd.f32 %v2246, %v2125
      %v2281 = vadd.f32 %v2251, %v2122
      %v2282 = vadd.f32 %v2254, %v2125
      %v2283 = vadd.f32 %v2259, %v2122
      %v2284 = vadd.f32 %v2262, %v2125
      %v2285 = vmax.f32 %v2265, 0.0
      %v2286 = vmax.f32 %v2266, 0.0
      %v2287 = vmax.f32 %v2267, 0.0
      %v2288 = vmax.f32 %v2268, 0.0
      %v2289 = vmax.f32 %v2269, 0.0
      %v2290 = vmax.f32 %v2270, 0.0
      %v2291 = vmax.f32 %v2271, 0.0
      %v2292 = vmax.f32 %v2272, 0.0
      %v2293 = vmax.f32 %v2273, 0.0
      %v2294 = vmax.f32 %v2274, 0.0
      %v2295 = vmax.f32 %v2275, 0.0
      %v2296 = vmax.f32 %v2276, 0.0
      %v2297 = vmax.f32 %v2277, 0.0
      %v2298 = vmax.f32 %v2278, 0.0
      %v2299 = vmax.f32 %v2279, 0.0
      %v2300 = vmax.f32 %v2280, 0.0
      %v2301 = vmax.f32 %v2281, 0.0
      %v2302 = vmax.f32 %v2282, 0.0
      %v2303 = vmax.f32 %v2283, 0.0
      %v2304 = vmax.f32 %v2284, 0.0
      %v2305 = vpack.c.bf16 %v2286, %v2285
      %v2306 = vpack.c.bf16 %v2288, %v2287
      %v2307 = vpack.c.bf16 %v2290, %v2289
      %v2308 = vpack.c.bf16 %v2292, %v2291
      %v2309 = vpack.c.bf16 %v2294, %v2293
      %v2310 = vpack.c.bf16 %v2296, %v2295
      %v2311 = vpack.c.bf16 %v2298, %v2297
      %v2312 = vpack.c.bf16 %v2300, %v2299
      %v2313 = vpack.c.bf16 %v2302, %v2301
      %v2314 = vpack.c.bf16 %v2304, %v2303
      %v2316 = vlaneseq
      %v2317 = vshrl.u32 %v2316, 7
      %v2318 = vsub.s32 0, %v2317
      %v2319 = vrot.slane %v2045, %v2318
      %v2337 = vunpack.c.l.b16 %v2028
      %v2338 = vunpack.c.l.b16 %v2029
      %v2339 = vunpack.c.l.b16 %v2030
      %v2340 = vunpack.c.l.b16 %v2031
      %v2341 = vunpack.c.l.b16 %v2032
      %v2342 = vunpack.c.l.b16 %v2033
      %v2343 = vunpack.c.l.b16 %v2034
      %v2344 = vunpack.c.l.b16 %v2035
      %v2345 = vunpack.c.l.b16 %v2036
      %v2346 = vunpack.c.l.b16 %v2037
      %v2347 = vunpack.c.l.b16 %v2038
      %v2348 = vunpack.c.l.b16 %v2039
      %v2349 = vunpack.c.l.b16 %v2040
      %v2350 = vunpack.c.l.b16 %v2041
      %v2351 = vunpack.c.l.b16 %v2042
      %v2352 = vunpack.c.l.b16 %v2043
      %v2353 = vpack.c.b16 %v2338, %v2337
      %v2354 = vpack.c.b16 %v2340, %v2339
      %v2355 = vpack.c.b16 %v2342, %v2341
      %v2356 = vpack.c.b16 %v2344, %v2343
      %v2357 = vpack.c.b16 %v2346, %v2345
      %v2358 = vpack.c.b16 %v2348, %v2347
      %v2359 = vpack.c.b16 %v2350, %v2349
      %v2360 = vpack.c.b16 %v2352, %v2351
      %2369 = vmatprep.subr.bf16.mxu0 0
      %2370 = vmatpush1.bf16.msra.mxu0 %v2353
      %2371 = vmatprep.subr.bf16.mxu0 0
      %2372 = vmatpush1.bf16.msra.mxu0 %v2354
      %2373 = vmatprep.subr.bf16.mxu0 0
      %2374 = vmatpush1.bf16.msra.mxu0 %v2355
      %2375 = vmatprep.subr.bf16.mxu0 0
      %2376 = vmatpush1.bf16.msra.mxu0 %v2356
      %2377 = vmatprep.subr.bf16.mxu0 0
      %2378 = vmatpush1.bf16.msra.mxu0 %v2357
      %2379 = vmatprep.subr.bf16.mxu0 0
      %2380 = vmatpush1.bf16.msra.mxu0 %v2358
      %2381 = vmatprep.subr.bf16.mxu0 0
      %2382 = vmatpush1.bf16.msra.mxu0 %v2359
      %2383 = vmatprep.subr.bf16.mxu0 0
      %2384 = vmatpush1.bf16.msra.mxu0 %v2360
      %2385 = vmatprep.subr.bf16.mxu0 0
      %2386 = vmatpush1.bf16.msra.mxu0 0
      %2387 = vmatprep.subr.bf16.mxu0 0
      %2388 = vmatpush1.bf16.msra.mxu0 0
      %2389 = vmatprep.subr.bf16.mxu0 0
      %2390 = vmatpush1.bf16.msra.mxu0 0
      %2391 = vmatprep.subr.bf16.mxu0 0
      %2392 = vmatpush1.bf16.msra.mxu0 0
      %2393 = vmatprep.subr.bf16.mxu0 0
      %2394 = vmatpush1.bf16.msra.mxu0 0
      %2395 = vmatprep.subr.bf16.mxu0 0
      %2396 = vmatpush1.bf16.msra.mxu0 0
      %2397 = vmatprep.subr.bf16.mxu0 0
      %2398 = vmatpush1.bf16.msra.mxu0 0
      %2399 = vmatprep.subr.bf16.mxu0 0
      %2400 = vmatpush1.bf16.msra.mxu0 0
      %2401 = vmatprep.mubr.bf16.mxu0 0
      %2402 = vmatmul.mubr.bf16.gmra.mrb[0].mxu0 %v2305
      %v2403 = vpop.f32.mrb[0].mxu0
      %v2404 = vadd.f32 %v2319, %v2403
      %v2405 = vpop.f32.mrb[0].mxu0
      %v2406 = vpop.f32.mrb[0].mxu0
      %v2407 = vadd.f32 %v2319, %v2406
      %v2408 = vpop.f32.mrb[0].mxu0
      %2409 = vmatprep.mubr.bf16.mxu0 0
      %2410 = vmatmul.mubr.bf16.gmra.mrb[0].mxu0 %v2306
      %v2411 = vpop.f32.mrb[0].mxu0
      %v2412 = vadd.f32 %v2319, %v2411
      %v2413 = vpop.f32.mrb[0].mxu0
      %v2414 = vpop.f32.mrb[0].mxu0
      %v2415 = vadd.f32 %v2319, %v2414
      %v2416 = vpop.f32.mrb[0].mxu0
      %2417 = vmatprep.mubr.bf16.mxu0 0
      %2418 = vmatmul.mubr.bf16.gmra.mrb[0].mxu0 %v2307
      %v2419 = vpop.f32.mrb[0].mxu0
      %v2420 = vadd.f32 %v2319, %v2419
      %v2421 = vpop.f32.mrb[0].mxu0
      %v2422 = vpop.f32.mrb[0].mxu0
      %v2423 = vadd.f32 %v2319, %v2422
      %v2424 = vpop.f32.mrb[0].mxu0
      %2425 = vmatprep.mubr.bf16.mxu0 0
      %2426 = vmatmul.mubr.bf16.gmra.mrb[0].mxu0 %v2308
      %v2427 = vpop.f32.mrb[0].mxu0
      %v2428 = vadd.f32 %v2319, %v2427
      %v2429 = vpop.f32.mrb[0].mxu0
      %v2430 = vpop.f32.mrb[0].mxu0
      %v2431 = vadd.f32 %v2319, %v2430
      %v2432 = vpop.f32.mrb[0].mxu0
      %2433 = vmatprep.mubr.bf16.mxu0 0
      %2434 = vmatmul.mubr.bf16.gmra.mrb[0].mxu0 %v2309
      %v2435 = vpop.f32.mrb[0].mxu0
      %v2436 = vadd.f32 %v2319, %v2435
      %v2437 = vpop.f32.mrb[0].mxu0
      %v2438 = vpop.f32.mrb[0].mxu0
      %v2439 = vadd.f32 %v2319, %v2438
      %v2440 = vpop.f32.mrb[0].mxu0
      %2441 = vmatprep.mubr.bf16.mxu0 0
      %2442 = vmatmul.mubr.bf16.gmra.mrb[0].mxu0 %v2310
      %v2443 = vpop.f32.mrb[0].mxu0
      %v2444 = vadd.f32 %v2319, %v2443
      %v2445 = vpop.f32.mrb[0].mxu0
      %v2446 = vpop.f32.mrb[0].mxu0
      %v2447 = vadd.f32 %v2319, %v2446
      %v2448 = vpop.f32.mrb[0].mxu0
      %2449 = vmatprep.mubr.bf16.mxu0 0
      %2450 = vmatmul.mubr.bf16.gmra.mrb[0].mxu0 %v2311
      %v2451 = vpop.f32.mrb[0].mxu0
      %v2452 = vadd.f32 %v2319, %v2451
      %v2453 = vpop.f32.mrb[0].mxu0
      %v2454 = vpop.f32.mrb[0].mxu0
      %v2455 = vadd.f32 %v2319, %v2454
      %v2456 = vpop.f32.mrb[0].mxu0
      %2457 = vmatprep.mubr.bf16.mxu0 0
      %2458 = vmatmul.mubr.bf16.gmra.mrb[0].mxu0 %v2312
      %v2459 = vpop.f32.mrb[0].mxu0
      %v2460 = vadd.f32 %v2319, %v2459
      %v2461 = vpop.f32.mrb[0].mxu0
      %v2462 = vpop.f32.mrb[0].mxu0
      %v2463 = vadd.f32 %v2319, %v2462
      %v2464 = vpop.f32.mrb[0].mxu0
      %2465 = vmatprep.mubr.bf16.mxu0 0
      %2466 = vmatmul.mubr.bf16.gmra.mrb[0].mxu0 %v2313
      %v2467 = vpop.f32.mrb[0].mxu0
      %v2468 = vadd.f32 %v2319, %v2467
      %v2469 = vpop.f32.mrb[0].mxu0
      %v2470 = vpop.f32.mrb[0].mxu0
      %v2471 = vadd.f32 %v2319, %v2470
      %v2472 = vpop.f32.mrb[0].mxu0
      %2473 = vmatprep.mubr.bf16.mxu0 0
      %2474 = vmatmul.mubr.bf16.gmra.mrb[0].mxu0 %v2314
      %v2475 = vpop.f32.mrb[0].mxu0
      %v2476 = vadd.f32 %v2319, %v2475
      %v2477 = vpop.f32.mrb[0].mxu0
      %v2478 = vpop.f32.mrb[0].mxu0
      %v2479 = vadd.f32 %v2319, %v2478
      %v2480 = vpop.f32.mrb[0].mxu0
      %2481 = vdwg.mxu0
      %v2482 = vmax.f32 %v2404, 0.0
      %v2483 = vmax.f32 %v2407, 0.0
      %v2484 = vmax.f32 %v2412, 0.0
      %v2485 = vmax.f32 %v2415, 0.0
      %v2486 = vmax.f32 %v2420, 0.0
      %v2487 = vmax.f32 %v2423, 0.0
      %v2488 = vmax.f32 %v2428, 0.0
      %v2489 = vmax.f32 %v2431, 0.0
      %v2490 = vmax.f32 %v2436, 0.0
      %v2491 = vmax.f32 %v2439, 0.0
      %v2492 = vmax.f32 %v2444, 0.0
      %v2493 = vmax.f32 %v2447, 0.0
      %v2494 = vmax.f32 %v2452, 0.0
      %v2495 = vmax.f32 %v2455, 0.0
      %v2496 = vmax.f32 %v2460, 0.0
      %v2497 = vmax.f32 %v2463, 0.0
      %v2498 = vmax.f32 %v2468, 0.0
      %v2499 = vmax.f32 %v2471, 0.0
      %v2500 = vmax.f32 %v2476, 0.0
      %v2501 = vmax.f32 %v2479, 0.0
      %v2502 = vpack.c.bf16 %v2483, %v2482
      %v2503 = vpack.c.bf16 %v2485, %v2484
      %v2504 = vpack.c.bf16 %v2487, %v2486
      %v2505 = vpack.c.bf16 %v2489, %v2488
      %v2506 = vpack.c.bf16 %v2491, %v2490
      %v2507 = vpack.c.bf16 %v2493, %v2492
      %v2508 = vpack.c.bf16 %v2495, %v2494
      %v2509 = vpack.c.bf16 %v2497, %v2496
      %v2510 = vpack.c.bf16 %v2499, %v2498
      %v2511 = vpack.c.bf16 %v2501, %v2500
      %v2513 = vlaneseq
      %v2514 = vshrl.u32 %v2513, 7
      %v2515 = vsub.s32 0, %v2514
      %v2516 = vrot.slane %v2056, %v2515
      %v2526 = vunpack.c.l.b16 %v2047
      %v2527 = vunpack.c.l.b16 %v2048
      %v2528 = vunpack.c.l.b16 %v2049
      %v2529 = vunpack.c.l.b16 %v2050
      %v2530 = vunpack.c.l.b16 %v2051
      %v2531 = vunpack.c.l.b16 %v2052
      %v2532 = vunpack.c.l.b16 %v2053
      %v2533 = vunpack.c.l.b16 %v2054
      %v2534 = vpack.c.b16 %v2527, %v2526
      %v2535 = vpack.c.b16 %v2529, %v2528
      %v2536 = vpack.c.b16 %v2531, %v2530
      %v2537 = vpack.c.b16 %v2533, %v2532
      %v2543 = vsel %vm531, %v2502, 0
      %v2546 = vsel %vm531, %v2503, 0
      %v2549 = vsel %vm531, %v2504, 0
      %v2552 = vsel %vm531, %v2505, 0
      %v2555 = vsel %vm531, %v2506, 0
      %v2558 = vsel %vm531, %v2507, 0
      %v2561 = vsel %vm531, %v2508, 0
      %v2564 = vsel %vm531, %v2509, 0
      %v2567 = vsel %vm531, %v2510, 0
      %v2570 = vsel %vm531, %v2511, 0
      %2572 = vmatprep.subr.bf16.mxu0 0
      %2573 = vmatpush1.bf16.msra.mxu0 %v2534
      %2574 = vmatprep.subr.bf16.mxu0 0
      %2575 = vmatpush1.bf16.msra.mxu0 %v2535
      %2576 = vmatprep.subr.bf16.mxu0 0
      %2577 = vmatpush1.bf16.msra.mxu0 %v2536
      %2578 = vmatprep.subr.bf16.mxu0 0
      %2579 = vmatpush1.bf16.msra.mxu0 %v2537
      %2580 = vmatprep.subr.bf16.mxu0 0
      %2581 = vmatpush1.bf16.msra.mxu0 0
      %2582 = vmatprep.subr.bf16.mxu0 0
      %2583 = vmatpush1.bf16.msra.mxu0 0
      %2584 = vmatprep.subr.bf16.mxu0 0
      %2585 = vmatpush1.bf16.msra.mxu0 0
      %2586 = vmatprep.subr.bf16.mxu0 0
      %2587 = vmatpush1.bf16.msra.mxu0 0
      %2588 = vmatprep.subr.bf16.mxu0 0
      %2589 = vmatpush1.bf16.msra.mxu0 0
      %2590 = vmatprep.subr.bf16.mxu0 0
      %2591 = vmatpush1.bf16.msra.mxu0 0
      %2592 = vmatprep.subr.bf16.mxu0 0
      %2593 = vmatpush1.bf16.msra.mxu0 0
      %2594 = vmatprep.subr.bf16.mxu0 0
      %2595 = vmatpush1.bf16.msra.mxu0 0
      %2596 = vmatprep.subr.bf16.mxu0 0
      %2597 = vmatpush1.bf16.msra.mxu0 0
      %2598 = vmatprep.subr.bf16.mxu0 0
      %2599 = vmatpush1.bf16.msra.mxu0 0
      %2600 = vmatprep.subr.bf16.mxu0 0
      %2601 = vmatpush1.bf16.msra.mxu0 0
      %2602 = vmatprep.subr.bf16.mxu0 0
      %2603 = vmatpush1.bf16.msra.mxu0 0
      %2604 = vmatprep.mubr.bf16.mxu0 0
      %2605 = vmatmul.mubr.bf16.gmra.mrb[0].mxu0 %v2543
      %v2606 = vpop.f32.mrb[0].mxu0
      %v2607 = vadd.f32 %v2516, %v2606
      %v2608 = vpop.f32.mrb[0].mxu0
      %v2609 = vpop.f32.mrb[0].mxu0
      %v2610 = vadd.f32 %v2516, %v2609
      %v2611 = vpop.f32.mrb[0].mxu0
      %2612 = vmatprep.mubr.bf16.mxu0 0
      %2613 = vmatmul.mubr.bf16.gmra.mrb[0].mxu0 %v2546
      %v2614 = vpop.f32.mrb[0].mxu0
      %v2615 = vadd.f32 %v2516, %v2614
      %v2616 = vpop.f32.mrb[0].mxu0
      %v2617 = vpop.f32.mrb[0].mxu0
      %v2618 = vadd.f32 %v2516, %v2617
      %v2619 = vpop.f32.mrb[0].mxu0
      %2620 = vmatprep.mubr.bf16.mxu0 0
      %2621 = vmatmul.mubr.bf16.gmra.mrb[0].mxu0 %v2549
      %v2622 = vpop.f32.mrb[0].mxu0
      %v2623 = vadd.f32 %v2516, %v2622
      %v2624 = vpop.f32.mrb[0].mxu0
      %v2625 = vpop.f32.mrb[0].mxu0
      %v2626 = vadd.f32 %v2516, %v2625
      %v2627 = vpop.f32.mrb[0].mxu0
      %2628 = vmatprep.mubr.bf16.mxu0 0
      %2629 = vmatmul.mubr.bf16.gmra.mrb[0].mxu0 %v2552
      %v2630 = vpop.f32.mrb[0].mxu0
      %v2631 = vadd.f32 %v2516, %v2630
      %v2632 = vpop.f32.mrb[0].mxu0
      %v2633 = vpop.f32.mrb[0].mxu0
      %v2634 = vadd.f32 %v2516, %v2633
      %v2635 = vpop.f32.mrb[0].mxu0
      %2636 = vmatprep.mubr.bf16.mxu0 0
      %2637 = vmatmul.mubr.bf16.gmra.mrb[0].mxu0 %v2555
      %v2638 = vpop.f32.mrb[0].mxu0
      %v2639 = vadd.f32 %v2516, %v2638
      %v2640 = vpop.f32.mrb[0].mxu0
      %v2641 = vpop.f32.mrb[0].mxu0
      %v2642 = vadd.f32 %v2516, %v2641
      %v2643 = vpop.f32.mrb[0].mxu0
      %2644 = vmatprep.mubr.bf16.mxu0 0
      %2645 = vmatmul.mubr.bf16.gmra.mrb[0].mxu0 %v2558
      %v2646 = vpop.f32.mrb[0].mxu0
      %v2647 = vadd.f32 %v2516, %v2646
      %v2648 = vpop.f32.mrb[0].mxu0
      %v2649 = vpop.f32.mrb[0].mxu0
      %v2650 = vadd.f32 %v2516, %v2649
      %v2651 = vpop.f32.mrb[0].mxu0
      %2652 = vmatprep.mubr.bf16.mxu0 0
      %2653 = vmatmul.mubr.bf16.gmra.mrb[0].mxu0 %v2561
      %v2654 = vpop.f32.mrb[0].mxu0
      %v2655 = vadd.f32 %v2516, %v2654
      %v2656 = vpop.f32.mrb[0].mxu0
      %v2657 = vpop.f32.mrb[0].mxu0
      %v2658 = vadd.f32 %v2516, %v2657
      %v2659 = vpop.f32.mrb[0].mxu0
      %2660 = vmatprep.mubr.bf16.mxu0 0
      %2661 = vmatmul.mubr.bf16.gmra.mrb[0].mxu0 %v2564
      %v2662 = vpop.f32.mrb[0].mxu0
      %v2663 = vadd.f32 %v2516, %v2662
      %v2664 = vpop.f32.mrb[0].mxu0
      %v2665 = vpop.f32.mrb[0].mxu0
      %v2666 = vadd.f32 %v2516, %v2665
      %v2667 = vpop.f32.mrb[0].mxu0
      %2668 = vmatprep.mubr.bf16.mxu0 0
      %2669 = vmatmul.mubr.bf16.gmra.mrb[0].mxu0 %v2567
      %v2670 = vpop.f32.mrb[0].mxu0
      %v2671 = vadd.f32 %v2516, %v2670
      %v2672 = vpop.f32.mrb[0].mxu0
      %v2673 = vpop.f32.mrb[0].mxu0
      %v2674 = vadd.f32 %v2516, %v2673
      %v2675 = vpop.f32.mrb[0].mxu0
      %2676 = vmatprep.mubr.bf16.mxu0 0
      %2677 = vmatmul.mubr.bf16.gmra.mrb[0].mxu0 %v2570
      %v2678 = vpop.f32.mrb[0].mxu0
      %v2679 = vadd.f32 %v2516, %v2678
      %v2680 = vpop.f32.mrb[0].mxu0
      %v2681 = vpop.f32.mrb[0].mxu0
      %v2682 = vadd.f32 %v2516, %v2681
      %v2683 = vpop.f32.mrb[0].mxu0
      %2684 = vdwg.mxu0
      %v2685 = vmax.f32 %v2607, 0.0
      %v2686 = vmax.f32 %v2610, 0.0
      %v2687 = vmax.f32 %v2615, 0.0
      %v2688 = vmax.f32 %v2618, 0.0
      %v2689 = vmax.f32 %v2623, 0.0
      %v2690 = vmax.f32 %v2626, 0.0
      %v2691 = vmax.f32 %v2631, 0.0
      %v2692 = vmax.f32 %v2634, 0.0
      %v2693 = vmax.f32 %v2639, 0.0
      %v2694 = vmax.f32 %v2642, 0.0
      %v2695 = vmax.f32 %v2647, 0.0
      %v2696 = vmax.f32 %v2650, 0.0
      %v2697 = vmax.f32 %v2655, 0.0
      %v2698 = vmax.f32 %v2658, 0.0
      %v2699 = vmax.f32 %v2663, 0.0
      %v2700 = vmax.f32 %v2666, 0.0
      %v2701 = vmax.f32 %v2671, 0.0
      %v2702 = vmax.f32 %v2674, 0.0
      %v2703 = vmax.f32 %v2679, 0.0
      %v2704 = vmax.f32 %v2682, 0.0
      %v2705 = vsel %vm531, %v2685, -inf
      %v2706 = vsel %vm531, %v2687, -inf
      %v2707 = vsel %vm531, %v2689, -inf
      %v2708 = vmax.f32 %v2705, %v2707
      %v2709 = vsel %vm531, %v2691, -inf
      %v2710 = vmax.f32 %v2706, %v2709
      %v2711 = vsel %vm531, %v2693, -inf
      %v2712 = vmax.f32 %v2708, %v2711
      %v2713 = vsel %vm531, %v2695, -inf
      %v2714 = vmax.f32 %v2710, %v2713
      %v2715 = vsel %vm531, %v2697, -inf
      %v2716 = vmax.f32 %v2712, %v2715
      %v2717 = vsel %vm531, %v2699, -inf
      %v2718 = vmax.f32 %v2714, %v2717
      %v2719 = vsel %vm531, %v2701, -inf
      %v2720 = vmax.f32 %v2716, %v2719
      %v2721 = vsel %vm531, %v2703, -inf
      %v2722 = vmax.f32 %v2718, %v2721
      %v2723 = vmax.f32 %v2720, %v2722
      %v2724 = vsel %vm531, %v2686, -inf
      %v2725 = vsel %vm531, %v2688, -inf
      %v2726 = vsel %vm531, %v2690, -inf
      %v2727 = vmax.f32 %v2724, %v2726
      %v2728 = vsel %vm531, %v2692, -inf
      %v2729 = vmax.f32 %v2725, %v2728
      %v2730 = vsel %vm531, %v2694, -inf
      %v2731 = vmax.f32 %v2727, %v2730
      %v2732 = vsel %vm531, %v2696, -inf
      %v2733 = vmax.f32 %v2729, %v2732
      %v2734 = vsel %vm531, %v2698, -inf
      %v2735 = vmax.f32 %v2731, %v2734
      %v2736 = vsel %vm531, %v2700, -inf
      %v2737 = vmax.f32 %v2733, %v2736
      %v2738 = vsel %vm531, %v2702, -inf
      %v2739 = vmax.f32 %v2735, %v2738
      %v2740 = vsel %vm531, %v2704, -inf
      %v2741 = vmax.f32 %v2737, %v2740
      %v2742 = vmax.f32 %v2739, %v2741
      %2745 = vrot.lane.b32.xlu0 %v1987, 64
      %v2746 = vpop.permute.xlu0 %2745
      %2747 = vrot.lane.b32.xlu0 %v2006, 64
      %v2748 = vpop.permute.xlu0 %2747
      %v2751 = vsel %vm531, %v1251, %v2746
      %v2752 = vsel %vm531, %v1270, %v2748
      %v2753 = vpack.c.bf16 %v2752, %v2751
      %v2754 = vpack.c.bf16 %v2742, %v2723
      %v2757 = vunpack.c.l.b16 %v2753
      %v2758 = vunpack.c.l.b16 %v2754
      %v2759 = vunpack.c.h.b16 %v2753
      %v2760 = vunpack.c.h.b16 %v2754
      %v2761 = vpack.c.b16 %v2758, %v2757
      %v2762 = vpack.c.b16 %v2760, %v2759
      %vm2765 = vcmask 1043456
      %vm2766 = vcmask 523268
      %vm2767 = vmor %vm2766, %vm2765
      %2768 = vst.msk [vmem:[%s408] sm:$0xff] %vm2767, %v2761
      %2769 = vst.msk [vmem:[%s408 + $0x8] sm:$0xff] %vm2767, %v2762
      %s2770 = smul.u32 2, %s25
      %p2771 = scmp.lt.s32.totalorder %s24, 1
      %s2772 = scalar_select %p2771, %s24, 1
      %p2773 = scmp.lt.s32.totalorder %s2770, 1
      %s2774 = scalar_select %p2773, %s2770, 1
      %s2775 = smul.addr %s2774, 2
      %s2776 = smul.addr %s2772, 4
      %s2777 = sadd.s32 %s2775, %s2776
      %s2778 = smul.addr %s2777, 4
      %s2779 = scalar_lea.vmem %s9, %s2778
      // Predicated region
      $region57: #{dgcnn_segment_forward.12} parent=55 // pred_check
        %p2780 = pneg %p255
      $region58: #{dgcnn_segment_forward.12} parent=55 // pred_check_branch
        %2782 = sbr.rel (%p2780) target = $region60
      $region59: #{dgcnn_segment_forward.12} parent=55 // pred_region
        %s2783 = smul.u32 2, %s25
      $region60: #{dgcnn_segment_forward.12} parent=55 // pred_fallthru
        _
    $region56: #{dgcnn_segment_forward.12} parent=5 // pred_fallthru
      _
    %p2784 = scmp.le.s32.totalorder 2, %s15
    // Predicated region
    $region61: #{dgcnn_segment_forward.12} parent=5 // pred_check
      %p2785 = pneg %p2784
    $region62: #{dgcnn_segment_forward.12} parent=5 // pred_check_branch
      %2787 = sbr.rel (%p2785) target = $region64
    $region63: #{dgcnn_segment_forward.12} parent=5 // pred_region
      %s2788 = ssub.s32 %s15, 2
      // Predicated region
      $region65: #{dgcnn_segment_forward.12} parent=63 // pred_check
        %p2789 = pneg %p261
      $region66: #{dgcnn_segment_forward.12} parent=63 // pred_check_branch
        %2791 = sbr.rel (%p2789) target = $region68
      $region67: #{dgcnn_segment_forward.12} parent=63 // pred_region
        %s2792 = smul.u32 2, %s27
        %p2793 = scmp.lt.s32.totalorder %s26, 1
        %s2794 = scalar_select %p2793, %s26, 1
        %p2795 = scmp.lt.s32.totalorder %s2792, 1
        %s2796 = scalar_select %p2795, %s2792, 1
        %s2797 = smul.addr %s2796, 2
        %s2798 = smul.addr %s2794, 4
        %s2799 = sadd.s32 %s2797, %s2798
        %s2800 = smul.addr %s2799, 4
        %s2801 = scalar_lea.vmem %s9, %s2800
      $region68: #{dgcnn_segment_forward.12} parent=63 // pred_fallthru
        _
    $region64: #{dgcnn_segment_forward.12} parent=5 // pred_fallthru
      _
  $region6: #{dgcnn_segment_forward.12} parent=0 // loop_footer
    %s19 = sadd.s32 1, %s15
  $region7: #{dgcnn_segment_forward.12} parent=0 // loop_footer_branch
    %14 = sbr.rel target = $region3
  $region8: #{dgcnn_segment_forward.12} parent=0 // loop_exit
    _

</llo_original>
